<compile_context>
chip_gen: v5e
topology: v5e:2x2
jax: 0.10.0
libtpu: 0.0.40
codegen_flags: <defaults>
</compile_context>

<pallas_src>
import math
from functools import partial

import jax
import jax.numpy as jnp
from jax.experimental import pallas as pl
from jax.experimental.pallas import tpu as pltpu

# True-f32 matmuls for both the kernel trace and the pure-JAX reference.
jax.config.update("jax_default_matmul_precision", "highest")

ALPHA = 0.2        # LeakyReLU negative slope
NEG_BIG = -1e30    # softmax mask value / running-max init (avoids inf arithmetic)


def _round_up(x, m):
    return (x + m - 1) // m * m


def gat_kernel(src_ref, dst_ref, x_ref, w_ref, a12_ref, out_ref,
               wh_ref, m_ref, l_ref, acc_ref, *, n_edges, n_pad, tile_e):
    """One grid step = one tile of `tile_e` edges (grid axis 0, 'arbitrary')."""
    f32 = jnp.float32
    hi = jax.lax.Precision.HIGHEST
    t = pl.program_id(0)

    # ---- once, at the first edge tile: Wh = x @ W, init online-softmax state ----
    @pl.when(t == 0)
    def _init():
        wh_ref[...] = jnp.dot(x_ref[...], w_ref[...],
                              preferred_element_type=f32, precision=hi)
        m_ref[...] = jnp.full((1, 1), NEG_BIG, f32)
        l_ref[...] = jnp.zeros((1, 1), f32)
        acc_ref[...] = jnp.zeros_like(acc_ref)

    wh = wh_ref[...]                                    # [N_pad, F_pad] f32
    src = src_ref[...]                                  # [1, tile_e]   int32
    dst = dst_ref[...]                                  # [1, tile_e]   int32

    # Per-node partial scores s = Wh @ [a1 | a2] -> [N_pad, 2]; recomputed per
    # tile (2*N*F MACs, <1% of the tile's matmul work, avoids a lane-padded
    # per-kernel scratch).
    s = jnp.dot(wh, a12_ref[...], preferred_element_type=f32, precision=hi)
    s_stack = jnp.concatenate([s[:, 0:1], s[:, 1:2]], axis=0)       # [2N_pad, 1]

    # In-kernel one-hot build (no O(N*E) HBM traffic, no bf16->f32 upcasts).
    # Rows [0, N) one-hot the edge sources, rows [N, 2N) the destinations.
    row = jax.lax.broadcasted_iota(jnp.int32, (2 * n_pad, tile_e), 0)
    tgt = jnp.where(row < n_pad, src, dst + n_pad)                  # bcast [1,tile_e]
    gsd = (row == tgt).astype(f32)                                  # [2N_pad, tile_e]
    g_src = gsd[:n_pad]                                             # [N_pad, tile_e]
    g_dst = gsd[n_pad:]                                             # [N_pad, tile_e]

    # Fused edge scores (single M=1 MXU pass): e[0,k] = s1[src_k] + s2[dst_k].
    dn = (((0,), (0,)), ((), ()))                                   # contract node axis
    e = jax.lax.dot_general(s_stack, gsd, dn,
                            preferred_element_type=f32, precision=hi)   # [1, tile_e]
    e = jnp.where(e > 0, e, ALPHA * e)                              # LeakyReLU

    # Mask padded edge lanes so the global softmax ignores them.
    lane = jax.lax.broadcasted_iota(jnp.int32, (1, tile_e), 1) + t * tile_e
    e = jnp.where(lane < n_edges, e, jnp.float32(NEG_BIG))

    # Online (flash-style) running statistics of the *global* edge softmax
    # (matches torch F.softmax(e, dim=0)).
    m_old = m_ref[...]
    m_new = jnp.maximum(m_old, jnp.max(e, axis=1, keepdims=True))
    scale = jnp.exp(m_old - m_new)                                  # [1, 1]
    p = jnp.exp(e - m_new)                                          # [1, tile_e]
    l_ref[...] = l_ref[...] * scale + jnp.sum(p, axis=1, keepdims=True)
    m_ref[...] = m_new
    # TODO(synk): F.dropout on the attention weights is skipped (eval mode -> identity).

    # Gather destination rows: Wh_dst[k] = Wh[dst_k]                [tile_e, F_pad]
    # TODO(synk): inspect the bundle dump for a hidden XLU relayout of g_dst here
    # (sublane-axis contraction); if present, build this one-hot edge-major instead.
    wh_dst = jax.lax.dot_general(g_dst, wh, dn,
                                 preferred_element_type=f32, precision=hi)

    # Scatter-add by edge_src with attention folded into the one-hot operand we
    # already hold in vregs (padded lanes have p == 0, so they contribute nothing).
    # TODO(synk): for N_pad < 2*F_pad, a (g_src*p) @ g_dst^T -> [N,N] @ Wh
    # contraction order has fewer MACs; add a shape-dependent switch.
    acc_ref[...] = acc_ref[...] * scale + jnp.dot(
        g_src * p, wh_dst, preferred_element_type=f32, precision=hi)

    # ---- once, after the last edge tile: normalize + ELU, lane-dense store ----
    @pl.when(t == pl.num_programs(0) - 1)
    def _finalize():
        h = acc_ref[...] * pl.reciprocal(l_ref[...], approx=False)
        # ELU; clamp inside exp so the unselected branch never produces inf.
        out_ref[...] = jnp.where(h > 0, h, jnp.exp(jnp.minimum(h, 0.0)) - 1.0)


def single_head_gat_conv(x, edge_index, W, a, *, tile_e=128):
    """x: [N, Fin] f32, edge_index: [2, E] int32, W: [Fin, Fout], a: [2*Fout, 1]."""
    N, Fin = x.shape
    Fout = W.shape[1]
    E = edge_index.shape[1]

    N_pad = _round_up(N, 8)
    Fin_pad = _round_up(Fin, 128)
    F_pad = _round_up(Fout, 128)
    E_pad = _round_up(E, tile_e)
    n_tiles = E_pad // tile_e

    x_p = jnp.zeros((N_pad, Fin_pad), jnp.float32).at[:N, :Fin].set(x)
    W_p = jnp.zeros((Fin_pad, F_pad), jnp.float32).at[:Fin, :Fout].set(W)
    a12 = (jnp.zeros((F_pad, 2), jnp.float32)
           .at[:Fout, 0].set(a[:Fout, 0])
           .at[:Fout, 1].set(a[Fout:, 0]))

    # Edge indices streamed as int32 rows (O(E) bytes total).  Padded edges point
    # at node 0 but get attention weight 0 from the in-kernel lane mask.  They are
    # kept as VMEM vectors (not SMEM scalar prefetch) because the kernel consumes
    # them as vectors in an iota comparison, not as index_map scalars.
    src = jnp.zeros((1, E_pad), jnp.int32).at[0, :E].set(edge_index[0])
    dst = jnp.zeros((1, E_pad), jnp.int32).at[0, :E].set(edge_index[1])

    kernel = partial(gat_kernel, n_edges=E, n_pad=N_pad, tile_e=tile_e)
    resident = lambda t: (0, 0)   # block index constant -> loaded once, stays in VMEM

    out = pl.pallas_call(
        kernel,
        out_shape=jax.ShapeDtypeStruct((N_pad, F_pad), jnp.float32),
        grid_spec=pltpu.PrefetchScalarGridSpec(
            num_scalar_prefetch=0,
            grid=(n_tiles,),
            in_specs=[
                pl.BlockSpec((1, tile_e), lambda t: (0, t)),       # src edge tile
                pl.BlockSpec((1, tile_e), lambda t: (0, t)),       # dst edge tile
                pl.BlockSpec((N_pad, Fin_pad), resident),          # x
                pl.BlockSpec((Fin_pad, F_pad), resident),          # W
                pl.BlockSpec((F_pad, 2), resident),                # [a1 | a2]
            ],
            out_specs=pl.BlockSpec((N_pad, F_pad), resident),
            scratch_shapes=[
                pltpu.VMEM((N_pad, F_pad), jnp.float32),           # Wh (resident)
                pltpu.VMEM((1, 1), jnp.float32),                   # running max
                pltpu.VMEM((1, 1), jnp.float32),                   # running denom
                pltpu.VMEM((N_pad, F_pad), jnp.float32),           # h' accumulator
            ]),
        # Edge axis reduces into the resident accumulator -> "arbitrary".
        # TODO(synk): add an N-tiled "parallel" output axis for v7x's 2 TensorCores.
        # NOTE: no blanket vmem_limit_bytes; default scoped limit is ample here.
        # For large graphs pick tile_e so ~2*N_pad*tile_e*4 B of in-kernel one-hot
        # temporaries + the resident [N_pad, F_pad] buffers stay under ~48 MiB (v7x).
        compiler_params=pltpu.CompilerParams(
            dimension_semantics=("arbitrary",)),
    )(src, dst, x_p, W_p, a12)
    return out[:N, :Fout]


def reference(x, edge_index, W, a):
    """Pure-JAX mirror of the PyTorch forward (eval mode; dropout = identity)."""
    Wh = x @ W
    src, dst = edge_index[0], edge_index[1]
    e = (jnp.concatenate([Wh[src], Wh[dst]], axis=1) @ a)[:, 0]
    e = jnp.where(e > 0, e, ALPHA * e)
    attn = jax.nn.softmax(e, axis=0)
    h_prime = jnp.zeros_like(Wh).at[src].add(Wh[dst] * attn[:, None])
    return jnp.where(h_prime > 0, h_prime, jnp.expm1(h_prime))


if __name__ == "__main__":
    key = jax.random.PRNGKey(0)
    k_x, k_e, k_w, k_a = jax.random.split(key, 4)

    N, Fin, Fout, E = 64, 16, 24, 200          # E=200 -> two 128-wide edge tiles

    x = jax.random.normal(k_x, (N, Fin), dtype=jnp.float32)
    edge_index = jax.random.randint(k_e, (2, E), 0, N, dtype=jnp.int32)

    # Deterministic xavier_uniform_ with gain=1.414, as in SingleHeadGATConv.__init__.
    gain = 1.414
    bw = gain * math.sqrt(6.0 / (Fin + Fout))
    W = jax.random.uniform(k_w, (Fin, Fout), jnp.float32, -bw, bw)
    ba = gain * math.sqrt(6.0 / (2 * Fout + 1))
    a = jax.random.uniform(k_a, (2 * Fout, 1), jnp.float32, -ba, ba)

    out = jax.block_until_ready(single_head_gat_conv(x, edge_index, W, a))
    ref = reference(x, edge_index, W, a)

    assert out.shape == (N, Fout)
    err = jnp.max(jnp.abs(out - ref))
    assert jnp.allclose(out, ref, atol=1e-5, rtol=1e-5), f"max abs err {err}"

    print("KERNEL_OK")
</pallas_src>

<mosaic_0001>
module attributes {stable_mosaic.version = 11 : i64} {
  func.func @gat_kernel(%arg0: i32, %arg1: memref<1x128xi32, #tpu.memory_space<vmem>>, %arg2: memref<1x128xi32, #tpu.memory_space<vmem>>, %arg3: memref<64x128xf32, #tpu.memory_space<vmem>>, %arg4: memref<128x128xf32, #tpu.memory_space<vmem>>, %arg5: memref<128x2xf32, #tpu.memory_space<vmem>>, %arg6: memref<64x128xf32, #tpu.memory_space<vmem>>, %arg7: memref<64x128xf32, #tpu.memory_space<vmem>>, %arg8: memref<1x1xf32, #tpu.memory_space<vmem>>, %arg9: memref<1x1xf32, #tpu.memory_space<vmem>>, %arg10: memref<64x128xf32, #tpu.memory_space<vmem>>) attributes {dimension_semantics = [#tpu.dimension_semantics<arbitrary>], iteration_bounds = array<i64: 2>, scalar_prefetch = 0 : i64, scratch_operands = 4 : i64, tpu.core_type = #tpu.core_type<tc>, window_params = [{transform_indices = @transform_0, window_bounds = array<i64: 1, 128>}, {transform_indices = @transform_1, window_bounds = array<i64: 1, 128>}, {pipeline_mode = #tpu.pipeline_mode<synchronous>, transform_indices = @transform_2, window_bounds = array<i64: 64, 128>}, {pipeline_mode = #tpu.pipeline_mode<synchronous>, transform_indices = @transform_3, window_bounds = array<i64: 128, 128>}, {pipeline_mode = #tpu.pipeline_mode<synchronous>, transform_indices = @transform_4, window_bounds = array<i64: 128, 2>}, {pipeline_mode = #tpu.pipeline_mode<synchronous>, transform_indices = @transform_5, window_bounds = array<i64: 64, 128>}]} {
    %c0_i32 = arith.constant 0 : i32
    %0 = arith.cmpi eq, %arg0, %c0_i32 : i32
    %1 = arith.extui %0 : i1 to i32
    %c0_i32_0 = arith.constant 0 : i32
    %2 = arith.cmpi ne, %1, %c0_i32_0 : i32
    scf.if %2 {
      %c0_30 = arith.constant 0 : index
      %c0_31 = arith.constant 0 : index
      %68 = vector.load %arg3[%c0_30, %c0_31] : memref<64x128xf32, #tpu.memory_space<vmem>>, vector<64x128xf32>
      %c0_32 = arith.constant 0 : index
      %c0_33 = arith.constant 0 : index
      %69 = vector.load %arg4[%c0_32, %c0_33] : memref<128x128xf32, #tpu.memory_space<vmem>>, vector<128x128xf32>
      %cst_34 = arith.constant dense<0.000000e+00> : vector<64x128xf32>
      %70 = tpu.matmul %68, %69, %cst_34 {dimension_numbers = #tpu.dot_dimension_numbers<[1], [0], [0], [1], [0, 0, 1, 1], [], []>, precision = #tpu.contract_precision<fp32>} : vector<64x128xf32>, vector<128x128xf32>, vector<64x128xf32> -> vector<64x128xf32>
      %c0_35 = arith.constant 0 : index
      %c0_36 = arith.constant 0 : index
      %71 = vector.load %arg7[%c0_35, %c0_36] : memref<64x128xf32, #tpu.memory_space<vmem>>, vector<64x128xf32>
      tpu.vector_store %arg7[%c0_35, %c0_36], %70 {strides = array<i32>} : memref<64x128xf32, #tpu.memory_space<vmem>>, vector<64x128xf32>,
      %cst_37 = arith.constant -1.000000e+30 : f32
      %72 = vector.broadcast %cst_37 : f32 to vector<1x1xf32>
      %c0_38 = arith.constant 0 : index
      %c0_39 = arith.constant 0 : index
      %73 = vector.load %arg8[%c0_38, %c0_39] : memref<1x1xf32, #tpu.memory_space<vmem>>, vector<1x1xf32>
      tpu.vector_store %arg8[%c0_38, %c0_39], %72 {strides = array<i32>} : memref<1x1xf32, #tpu.memory_space<vmem>>, vector<1x1xf32>,
      %cst_40 = arith.constant 0.000000e+00 : f32
      %74 = vector.broadcast %cst_40 : f32 to vector<1x1xf32>
      %c0_41 = arith.constant 0 : index
      %c0_42 = arith.constant 0 : index
      %75 = vector.load %arg9[%c0_41, %c0_42] : memref<1x1xf32, #tpu.memory_space<vmem>>, vector<1x1xf32>
      tpu.vector_store %arg9[%c0_41, %c0_42], %74 {strides = array<i32>} : memref<1x1xf32, #tpu.memory_space<vmem>>, vector<1x1xf32>,
      %cst_43 = arith.constant 0.000000e+00 : f32
      %76 = vector.broadcast %cst_43 : f32 to vector<64x128xf32>
      %c0_44 = arith.constant 0 : index
      %c0_45 = arith.constant 0 : index
      %77 = vector.load %arg10[%c0_44, %c0_45] : memref<64x128xf32, #tpu.memory_space<vmem>>, vector<64x128xf32>
      tpu.vector_store %arg10[%c0_44, %c0_45], %76 {strides = array<i32>} : memref<64x128xf32, #tpu.memory_space<vmem>>, vector<64x128xf32>,
    } else {
    }
    %c0 = arith.constant 0 : index
    %c0_1 = arith.constant 0 : index
    %3 = vector.load %arg7[%c0, %c0_1] : memref<64x128xf32, #tpu.memory_space<vmem>>, vector<64x128xf32>
    %c0_2 = arith.constant 0 : index
    %c0_3 = arith.constant 0 : index
    %4 = vector.load %arg1[%c0_2, %c0_3] : memref<1x128xi32, #tpu.memory_space<vmem>>, vector<1x128xi32>
    %c0_4 = arith.constant 0 : index
    %c0_5 = arith.constant 0 : index
    %5 = vector.load %arg2[%c0_4, %c0_5] : memref<1x128xi32, #tpu.memory_space<vmem>>, vector<1x128xi32>
    %c0_6 = arith.constant 0 : index
    %c0_7 = arith.constant 0 : index
    %6 = vector.load %arg5[%c0_6, %c0_7] : memref<128x2xf32, #tpu.memory_space<vmem>>, vector<128x2xf32>
    %cst = arith.constant dense<0.000000e+00> : vector<64x2xf32>
    %7 = tpu.matmul %3, %6, %cst {dimension_numbers = #tpu.dot_dimension_numbers<[1], [0], [0], [1], [0, 0, 1, 1], [], []>, precision = #tpu.contract_precision<fp32>} : vector<64x128xf32>, vector<128x2xf32>, vector<64x2xf32> -> vector<64x2xf32>
    %8 = vector.extract_strided_slice %7 {offsets = [0, 0], sizes = [64, 1], strides = [1, 1]} : vector<64x2xf32> to vector<64x1xf32>
    %9 = vector.extract_strided_slice %7 {offsets = [0, 1], sizes = [64, 1], strides = [1, 1]} : vector<64x2xf32> to vector<64x1xf32>
    %10 = tpu.concatenate %8, %9 in 0 : vector<64x1xf32>, vector<64x1xf32> -> vector<128x1xf32>
    %11 = tpu.iota {dimensions = array<i32: 0>} : vector<128x128xi32>
    %c64_i32 = arith.constant 64 : i32
    %12 = vector.broadcast %c64_i32 : i32 to vector<128x128xi32>
    %13 = arith.cmpi slt, %11, %12 : vector<128x128xi32>
    %c64_i32_8 = arith.constant 64 : i32
    %14 = vector.broadcast %c64_i32_8 : i32 to vector<1x128xi32>
    %15 = arith.addi %5, %14 : vector<1x128xi32>
    %16 = vector.shape_cast %4 : vector<1x128xi32> to vector<1x128xi32>
    %17 = vector.broadcast %16 : vector<1x128xi32> to vector<128x128xi32>
    %18 = vector.shape_cast %15 : vector<1x128xi32> to vector<1x128xi32>
    %19 = vector.broadcast %18 : vector<1x128xi32> to vector<128x128xi32>
    %20 = arith.select %13, %17, %19 : vector<128x128xi1>, vector<128x128xi32>
    %21 = arith.cmpi eq, %11, %20 : vector<128x128xi32>
    %22 = arith.extui %21 : vector<128x128xi1> to vector<128x128xi32>
    %23 = arith.sitofp %22 : vector<128x128xi32> to vector<128x128xf32>
    %24 = vector.extract_strided_slice %23 {offsets = [0, 0], sizes = [64, 128], strides = [1, 1]} : vector<128x128xf32> to vector<64x128xf32>
    %25 = vector.extract_strided_slice %23 {offsets = [64, 0], sizes = [64, 128], strides = [1, 1]} : vector<128x128xf32> to vector<64x128xf32>
    %cst_9 = arith.constant dense<0.000000e+00> : vector<1x128xf32>
    %26 = tpu.matmul %10, %23, %cst_9 {dimension_numbers = #tpu.dot_dimension_numbers<[0], [0], [1], [1], [0, 1, 1, 1], [], []>, precision = #tpu.contract_precision<fp32>} : vector<128x1xf32>, vector<128x128xf32>, vector<1x128xf32> -> vector<1x128xf32>
    %cst_10 = arith.constant 0.000000e+00 : f32
    %27 = vector.broadcast %cst_10 : f32 to vector<1x128xf32>
    %28 = arith.cmpf ogt, %26, %27 : vector<1x128xf32>
    %cst_11 = arith.constant 2.000000e-01 : f32
    %29 = vector.broadcast %cst_11 : f32 to vector<1x128xf32>
    %30 = arith.mulf %29, %26 : vector<1x128xf32>
    %31 = arith.select %28, %26, %30 : vector<1x128xi1>, vector<1x128xf32>
    %32 = tpu.iota {dimensions = array<i32: 1>} : vector<1x128xi32>
    %c128_i32 = arith.constant 128 : i32
    %33 = arith.muli %arg0, %c128_i32 : i32
    %34 = vector.broadcast %33 : i32 to vector<1x128xi32>
    %35 = arith.addi %32, %34 : vector<1x128xi32>
    %c200_i32 = arith.constant 200 : i32
    %36 = vector.broadcast %c200_i32 : i32 to vector<1x128xi32>
    %37 = arith.cmpi slt, %35, %36 : vector<1x128xi32>
    %cst_12 = arith.constant -1.000000e+30 : f32
    %38 = vector.broadcast %cst_12 : f32 to vector<1x128xf32>
    %39 = arith.select %37, %31, %38 : vector<1x128xi1>, vector<1x128xf32>
    %c0_13 = arith.constant 0 : index
    %c0_14 = arith.constant 0 : index
    %40 = vector.load %arg8[%c0_13, %c0_14] : memref<1x1xf32, #tpu.memory_space<vmem>>, vector<1x1xf32>
    %cst_15 = arith.constant dense<0xFF800000> : vector<1xf32>
    %41 = vector.multi_reduction <maximumf>, %39, %cst_15 [1] : vector<1x128xf32> to vector<1xf32>
    %42 = vector.shape_cast %41 : vector<1xf32> to vector<1x1xf32>
    %43 = arith.maximumf %40, %42 : vector<1x1xf32>
    %44 = arith.subf %40, %43 : vector<1x1xf32>
    %45 = math.exp %44 : vector<1x1xf32>
    %46 = vector.broadcast %43 : vector<1x1xf32> to vector<1x128xf32>
    %47 = arith.subf %39, %46 : vector<1x128xf32>
    %48 = math.exp %47 : vector<1x128xf32>
    %c0_16 = arith.constant 0 : index
    %c0_17 = arith.constant 0 : index
    %49 = vector.load %arg9[%c0_16, %c0_17] : memref<1x1xf32, #tpu.memory_space<vmem>>, vector<1x1xf32>
    %50 = arith.mulf %49, %45 : vector<1x1xf32>
    %cst_18 = arith.constant dense<0.000000e+00> : vector<1xf32>
    %51 = vector.multi_reduction <add>, %48, %cst_18 [1] : vector<1x128xf32> to vector<1xf32>
    %52 = vector.shape_cast %51 : vector<1xf32> to vector<1x1xf32>
    %53 = arith.addf %50, %52 : vector<1x1xf32>
    %c0_19 = arith.constant 0 : index
    %c0_20 = arith.constant 0 : index
    %54 = vector.load %arg9[%c0_19, %c0_20] : memref<1x1xf32, #tpu.memory_space<vmem>>, vector<1x1xf32>
    tpu.vector_store %arg9[%c0_19, %c0_20], %53 {strides = array<i32>} : memref<1x1xf32, #tpu.memory_space<vmem>>, vector<1x1xf32>,
    %c0_21 = arith.constant 0 : index
    %c0_22 = arith.constant 0 : index
    %55 = vector.load %arg8[%c0_21, %c0_22] : memref<1x1xf32, #tpu.memory_space<vmem>>, vector<1x1xf32>
    tpu.vector_store %arg8[%c0_21, %c0_22], %43 {strides = array<i32>} : memref<1x1xf32, #tpu.memory_space<vmem>>, vector<1x1xf32>,
    %cst_23 = arith.constant dense<0.000000e+00> : vector<128x128xf32>
    %56 = tpu.matmul %25, %3, %cst_23 {dimension_numbers = #tpu.dot_dimension_numbers<[0], [0], [1], [1], [0, 1, 1, 1], [], []>, precision = #tpu.contract_precision<fp32>} : vector<64x128xf32>, vector<64x128xf32>, vector<128x128xf32> -> vector<128x128xf32>
    %c0_24 = arith.constant 0 : index
    %c0_25 = arith.constant 0 : index
    %57 = vector.load %arg10[%c0_24, %c0_25] : memref<64x128xf32, #tpu.memory_space<vmem>>, vector<64x128xf32>
    %58 = vector.broadcast %45 : vector<1x1xf32> to vector<64x128xf32>
    %59 = arith.mulf %57, %58 : vector<64x128xf32>
    %60 = vector.broadcast %48 : vector<1x128xf32> to vector<64x128xf32>
    %61 = arith.mulf %24, %60 : vector<64x128xf32>
    %cst_26 = arith.constant dense<0.000000e+00> : vector<64x128xf32>
    %62 = tpu.matmul %61, %56, %cst_26 {dimension_numbers = #tpu.dot_dimension_numbers<[1], [0], [0], [1], [0, 0, 1, 1], [], []>, precision = #tpu.contract_precision<fp32>} : vector<64x128xf32>, vector<128x128xf32>, vector<64x128xf32> -> vector<64x128xf32>
    %63 = arith.addf %59, %62 : vector<64x128xf32>
    %c0_27 = arith.constant 0 : index
    %c0_28 = arith.constant 0 : index
    %64 = vector.load %arg10[%c0_27, %c0_28] : memref<64x128xf32, #tpu.memory_space<vmem>>, vector<64x128xf32>
    tpu.vector_store %arg10[%c0_27, %c0_28], %63 {strides = array<i32>} : memref<64x128xf32, #tpu.memory_space<vmem>>, vector<64x128xf32>,
    %c1_i32 = arith.constant 1 : i32
    %65 = arith.cmpi eq, %arg0, %c1_i32 : i32
    %66 = arith.extui %65 : i1 to i32
    %c0_i32_29 = arith.constant 0 : i32
    %67 = arith.cmpi ne, %66, %c0_i32_29 : i32
    scf.if %67 {
      %c0_30 = arith.constant 0 : index
      %c0_31 = arith.constant 0 : index
      %68 = vector.load %arg10[%c0_30, %c0_31] : memref<64x128xf32, #tpu.memory_space<vmem>>, vector<64x128xf32>
      %c0_32 = arith.constant 0 : index
      %c0_33 = arith.constant 0 : index
      %69 = vector.load %arg9[%c0_32, %c0_33] : memref<1x1xf32, #tpu.memory_space<vmem>>, vector<1x1xf32>
      %70 = tpu.reciprocal %69 : vector<1x1xf32> -> vector<1x1xf32>
      %71 = vector.broadcast %70 : vector<1x1xf32> to vector<64x128xf32>
      %72 = arith.mulf %68, %71 : vector<64x128xf32>
      %cst_34 = arith.constant 0.000000e+00 : f32
      %73 = vector.broadcast %cst_34 : f32 to vector<64x128xf32>
      %74 = arith.cmpf ogt, %72, %73 : vector<64x128xf32>
      %cst_35 = arith.constant 0.000000e+00 : f32
      %75 = vector.broadcast %cst_35 : f32 to vector<64x128xf32>
      %76 = arith.minimumf %72, %75 : vector<64x128xf32>
      %77 = math.exp %76 : vector<64x128xf32>
      %cst_36 = arith.constant 1.000000e+00 : f32
      %78 = vector.broadcast %cst_36 : f32 to vector<64x128xf32>
      %79 = arith.subf %77, %78 : vector<64x128xf32>
      %80 = arith.select %74, %72, %79 : vector<64x128xi1>, vector<64x128xf32>
      %c0_37 = arith.constant 0 : index
      %c0_38 = arith.constant 0 : index
      %81 = vector.load %arg6[%c0_37, %c0_38] : memref<64x128xf32, #tpu.memory_space<vmem>>, vector<64x128xf32>
      tpu.vector_store %arg6[%c0_37, %c0_38], %80 {strides = array<i32>} : memref<64x128xf32, #tpu.memory_space<vmem>>, vector<64x128xf32>,
    } else {
    }
    return
  }
  func.func @transform_0(%arg0: i32) -> (i32, i32) {
    %c0_i32 = arith.constant 0 : i32
    %c0_i32_0 = arith.constant 0 : i32
    return %c0_i32, %arg0 : i32, i32
  }
  func.func @transform_1(%arg0: i32) -> (i32, i32) {
    %c0_i32 = arith.constant 0 : i32
    %c0_i32_0 = arith.constant 0 : i32
    return %c0_i32, %arg0 : i32, i32
  }
  func.func @transform_2(%arg0: i32) -> (i32, i32) {
    %c0_i32 = arith.constant 0 : i32
    %c0_i32_0 = arith.constant 0 : i32
    %c0_i32_1 = arith.constant 0 : i32
    return %c0_i32, %c0_i32_0 : i32, i32
  }
  func.func @transform_3(%arg0: i32) -> (i32, i32) {
    %c0_i32 = arith.constant 0 : i32
    %c0_i32_0 = arith.constant 0 : i32
    %c0_i32_1 = arith.constant 0 : i32
    return %c0_i32, %c0_i32_0 : i32, i32
  }
  func.func @transform_4(%arg0: i32) -> (i32, i32) {
    %c0_i32 = arith.constant 0 : i32
    %c0_i32_0 = arith.constant 0 : i32
    %c0_i32_1 = arith.constant 0 : i32
    return %c0_i32, %c0_i32_0 : i32, i32
  }
  func.func @transform_5(%arg0: i32) -> (i32, i32) {
    %c0_i32 = arith.constant 0 : i32
    %c0_i32_0 = arith.constant 0 : i32
    %c0_i32_1 = arith.constant 0 : i32
    return %c0_i32, %c0_i32_0 : i32, i32
  }
}

</mosaic_0001>

<llo_original>
// kernel: tpu_custom_call.1
$region0: #{tpu_custom_call.1}
  #allocation0 [shape = 'u32[]', space=smem, size = 0x4, offset = 0x4, fixed_abs, tag = 'smem constant byte address 0x4 - core index']
  #allocation1 [shape = 'u32[72,128]{1,0:T(1,128)}', space=vmem, size = 0x9000, scoped, tag = 'internal scratch']
  #allocation2 [shape = 'f32[64,128]{1,0:T(8,128)}', space=vmem, size = 0x8000, scoped, tag = 'scratch operand']
  #allocation3 [shape = 'f32[1,1]{1,0:T(1,128)}', space=vmem, size = 0x200, scoped, tag = 'scratch operand']
  #allocation4 [shape = 'f32[1,1]{1,0:T(1,128)}', space=vmem, size = 0x200, scoped, tag = 'scratch operand']
  #allocation5 [shape = 'f32[64,128]{1,0:T(8,128)}', space=vmem, size = 0x8000, scoped, tag = 'scratch operand']
  %s0 = inlined_call_operand.vmem [shape: s32[1,256], index: 0, kind: input, shape index: {}]
  %s1 = inlined_call_operand.hbm [shape: s32[1,256], index: 1, kind: input, shape index: {}]
  %s2 = inlined_call_operand.hbm [shape: f32[64,128], index: 2, kind: input, shape index: {}]
  %s3 = inlined_call_operand.vmem [shape: f32[128,128], index: 3, kind: input, shape index: {}]
  %s4 = inlined_call_operand.vmem [shape: f32[128,2], index: 4, kind: input, shape index: {}]
  %s5 = inlined_call_operand.hbm [shape: f32[64,128], index: 5, kind: output, shape index: {}]
  %s6 = sld [smem:[#allocation0]]
  $region69: #{tpu_custom_call.1} parent=0
    _
  %s8 = ssub.s32 1, %s6
  %s9 = scalar_select 0, %s8, %s6
  $region1: #{tpu_custom_call.1} parent=0
    #allocation6 [shape = 'u8[1024]{0}', space=vmem, size = 0x400, scoped, tag = 'input window, operand 1']
    #allocation7 [shape = 's32[2]{0}', space=sflag, size = 0x8, scoped, tag = 'scoped memory for tpu_custom_call.1']
    #allocation8 [shape = 's32[2]{0}', space=sflag, size = 0x8, scoped, tag = 'scoped memory for tpu_custom_call.1']
    #allocation9 [shape = 'u8[32768]{0}', space=vmem, size = 0x8000, scoped, tag = 'input window, operand 2, single buffered']
    #allocation10 [shape = 's32[1]{0}', space=sflag, size = 0x4, scoped, tag = 'scoped memory for tpu_custom_call.1']
    #allocation11 [shape = 'u8[32768]{0}', space=vmem, size = 0x8000, scoped, tag = 'output window, operand 0, single buffered']
    %10 = vsyncpa [#allocation7], 0
    %s11 = scalar_lea.sflag [#allocation7], 1
    %12 = vsyncpa %s11, 0
    %13 = vsyncpa [#allocation10], 0
    %14 = vsyncpa [#allocation8], 0
    loop: start=0, step=1, limit=4
    $region2: #{tpu_custom_call.1} parent=1 // loop_pre_header
      _
    $region3: #{tpu_custom_call.1} parent=1 // loop_header
      %s16 = sphi 0, %s20
      %p17 = scmp.ge.s32.totalorder %s16, 4
      %s26 = sphi 0, %s28
      %s29 = sphi 0, %s26
      %s30 = sphi 0, %s29
      %s46 = sphi 0, %s30
      %s52 = sphi 0, %s54
      %s55 = sphi 0, %s52
      %s56 = sphi 0, %s55
      %s72 = sphi 0, %s56
      %s76 = sphi 0, %s76
      %s78 = sphi 0, %s76
      %s79 = sphi 0, %s78
      %s93 = sphi 0, %s79
      %s97 = sphi 0, %s97
      %s99 = sphi 0, %s97
      %s100 = sphi 0, %s99
      %s114 = sphi 0, %s100
      %s118 = sphi 0, %s118
      %s120 = sphi 0, %s118
      %s121 = sphi 0, %s120
      %s135 = sphi 0, %s121
      %s139 = sphi 0, %s139
      %s141 = sphi 0, %s139
      %s142 = sphi 0, %s141
      %s156 = sphi 0, %s142
    $region4: #{tpu_custom_call.1} parent=1 // loop_header_branch
      %19 = sbr.rel (%p17) target = $region8
    $region5: #{tpu_custom_call.1} parent=1 // loop_body
      %s21 = ssub.s32 %s16, 1
      %s22 = ssub.s32 %s16, 2
      %s23 = sadd.s32 %s16, 1
      %s24 = ssub.s32 %s16, %s23
      %p25 = scmp.eq.s32.totalorder %s24, 0
      %s27 = sadd.s32 %s26, 1
      %s28 = scalar_select %p25, %s26, %s27
      %p31 = pneg %p25
      %p32 = scmp.eq.s32.totalorder %s16, 1
      %p33 = por %p31, %p32
      %p34 = scmp.ne.s32.totalorder %s26, %s29
      %p35 = scmp.eq.s32.totalorder %s16, 0
      %p36 = por %p34, %p35
      %p37 = scmp.ne.s32.totalorder %s26, %s29
      %p38 = scmp.eq.s32.totalorder %s21, 1
      %p39 = por %p37, %p38
      %p40 = scmp.ne.s32.totalorder %s29, %s30
      %p41 = scmp.eq.s32.totalorder %s21, 0
      %p42 = por %p40, %p41
      %p43 = scmp.ne.s32.totalorder %s29, %s30
      %p44 = scmp.eq.s32.totalorder %s22, 1
      %p45 = por %p43, %p44
      %p47 = scmp.ne.s32.totalorder %s30, %s46
      %p48 = scmp.eq.s32.totalorder %s22, 0
      %p49 = por %p47, %p48
      %s50 = ssub.s32 %s16, %s23
      %p51 = scmp.eq.s32.totalorder %s50, 0
      %s53 = sadd.s32 %s52, 1
      %s54 = scalar_select %p51, %s52, %s53
      %p57 = pneg %p51
      %p58 = scmp.eq.s32.totalorder %s16, 1
      %p59 = por %p57, %p58
      %p60 = scmp.ne.s32.totalorder %s52, %s55
      %p61 = scmp.eq.s32.totalorder %s16, 0
      %p62 = por %p60, %p61
      %p63 = scmp.ne.s32.totalorder %s52, %s55
      %p64 = scmp.eq.s32.totalorder %s21, 1
      %p65 = por %p63, %p64
      %p66 = scmp.ne.s32.totalorder %s55, %s56
      %p67 = scmp.eq.s32.totalorder %s21, 0
      %p68 = por %p66, %p67
      %p69 = scmp.ne.s32.totalorder %s55, %s56
      %p70 = scmp.eq.s32.totalorder %s22, 1
      %p71 = por %p69, %p70
      %p73 = scmp.ne.s32.totalorder %s56, %s72
      %p74 = scmp.eq.s32.totalorder %s22, 0
      %p75 = por %p73, %p74
      %s77 = sadd.s32 %s76, 1
      %p80 = scmp.eq.s32.totalorder %s16, 1
      %p81 = scmp.ne.s32.totalorder %s76, %s78
      %p82 = scmp.eq.s32.totalorder %s16, 0
      %p83 = por %p81, %p82
      %p84 = scmp.ne.s32.totalorder %s76, %s78
      %p85 = scmp.eq.s32.totalorder %s21, 1
      %p86 = por %p84, %p85
      %p87 = scmp.ne.s32.totalorder %s78, %s79
      %p88 = scmp.eq.s32.totalorder %s21, 0
      %p89 = por %p87, %p88
      %p90 = scmp.ne.s32.totalorder %s78, %s79
      %p91 = scmp.eq.s32.totalorder %s22, 1
      %p92 = por %p90, %p91
      %p94 = scmp.ne.s32.totalorder %s79, %s93
      %p95 = scmp.eq.s32.totalorder %s22, 0
      %p96 = por %p94, %p95
      %s98 = sadd.s32 %s97, 1
      %p101 = scmp.eq.s32.totalorder %s16, 1
      %p102 = scmp.ne.s32.totalorder %s97, %s99
      %p103 = scmp.eq.s32.totalorder %s16, 0
      %p104 = por %p102, %p103
      %p105 = scmp.ne.s32.totalorder %s97, %s99
      %p106 = scmp.eq.s32.totalorder %s21, 1
      %p107 = por %p105, %p106
      %p108 = scmp.ne.s32.totalorder %s99, %s100
      %p109 = scmp.eq.s32.totalorder %s21, 0
      %p110 = por %p108, %p109
      %p111 = scmp.ne.s32.totalorder %s99, %s100
      %p112 = scmp.eq.s32.totalorder %s22, 1
      %p113 = por %p111, %p112
      %p115 = scmp.ne.s32.totalorder %s100, %s114
      %p116 = scmp.eq.s32.totalorder %s22, 0
      %p117 = por %p115, %p116
      %s119 = sadd.s32 %s118, 1
      %p122 = scmp.eq.s32.totalorder %s16, 1
      %p123 = scmp.ne.s32.totalorder %s118, %s120
      %p124 = scmp.eq.s32.totalorder %s16, 0
      %p125 = por %p123, %p124
      %p126 = scmp.ne.s32.totalorder %s118, %s120
      %p127 = scmp.eq.s32.totalorder %s21, 1
      %p128 = por %p126, %p127
      %p129 = scmp.ne.s32.totalorder %s120, %s121
      %p130 = scmp.eq.s32.totalorder %s21, 0
      %p131 = por %p129, %p130
      %p132 = scmp.ne.s32.totalorder %s120, %s121
      %p133 = scmp.eq.s32.totalorder %s22, 1
      %p134 = por %p132, %p133
      %p136 = scmp.ne.s32.totalorder %s121, %s135
      %p137 = scmp.eq.s32.totalorder %s22, 0
      %p138 = por %p136, %p137
      %s140 = sadd.s32 %s139, 1
      %p143 = scmp.eq.s32.totalorder %s16, 1
      %p144 = scmp.ne.s32.totalorder %s139, %s141
      %p145 = scmp.eq.s32.totalorder %s16, 0
      %p146 = por %p144, %p145
      %p147 = scmp.ne.s32.totalorder %s139, %s141
      %p148 = scmp.eq.s32.totalorder %s21, 1
      %p149 = por %p147, %p148
      %p150 = scmp.ne.s32.totalorder %s141, %s142
      %p151 = scmp.eq.s32.totalorder %s21, 0
      %p152 = por %p150, %p151
      %p153 = scmp.ne.s32.totalorder %s141, %s142
      %p154 = scmp.eq.s32.totalorder %s22, 1
      %p155 = por %p153, %p154
      %p157 = scmp.ne.s32.totalorder %s142, %s156
      %p158 = scmp.eq.s32.totalorder %s22, 0
      %p159 = por %p157, %p158
      %p160 = scmp.le.s32.totalorder 1, %s16
      %p161 = scmp.lt.s32.totalorder %s16, 3
      %p162 = pnand %p160, %p161
      %p163 = pneg %p162
      // Predicated region
      $region9: #{tpu_custom_call.1} parent=5 // pred_check
        _
      $region10: #{tpu_custom_call.1} parent=5 // pred_check_branch
        %165 = sbr.rel (%p162) target = $region12
      $region11: #{tpu_custom_call.1} parent=5 // pred_region
        %s166 = ssub.s32 %s16, 1
        // Predicated region
        $region13: #{tpu_custom_call.1} parent=11 // pred_check
          %p167 = pneg %p89
        $region14: #{tpu_custom_call.1} parent=11 // pred_check_branch
          %169 = sbr.rel (%p167) target = $region16
        $region15: #{tpu_custom_call.1} parent=11 // pred_region
          %171 = vsyncadd [#allocation10], 0
          %s172 = sshll.u32 %s2, 4
          %s173 = int_to_ptr.hbm [resolvable:$true] %s172
          %s174 = sshll.u32 [#allocation9], 4
          %s175 = int_to_ptr.vmem [resolvable:$true] %s174
          %180 = dma.hbm_to_vmem [thread:$0]  %s173, 1024, %s175, [#allocation10], 128, 128, 8
        $region16: #{tpu_custom_call.1} parent=11 // pred_fallthru
          _
        // Predicated region
        $region17: #{tpu_custom_call.1} parent=11 // pred_check
          %p181 = pneg %p110
        $region18: #{tpu_custom_call.1} parent=11 // pred_check_branch
          %183 = sbr.rel (%p181) target = $region20
        $region19: #{tpu_custom_call.1} parent=11 // pred_region
          _
        $region20: #{tpu_custom_call.1} parent=11 // pred_fallthru
          _
        // Predicated region
        $region21: #{tpu_custom_call.1} parent=11 // pred_check
          %p184 = pneg %p131
        $region22: #{tpu_custom_call.1} parent=11 // pred_check_branch
          %186 = sbr.rel (%p184) target = $region24
        $region23: #{tpu_custom_call.1} parent=11 // pred_region
          _
        $region24: #{tpu_custom_call.1} parent=11 // pred_fallthru
          _
      $region12: #{tpu_custom_call.1} parent=5 // pred_fallthru
        _
      %p187 = scmp.lt.s32.totalorder %s16, 2
      // Predicated region
      $region25: #{tpu_custom_call.1} parent=5 // pred_check
        %p188 = pneg %p187
      $region26: #{tpu_custom_call.1} parent=5 // pred_check_branch
        %190 = sbr.rel (%p188) target = $region28
      $region27: #{tpu_custom_call.1} parent=5 // pred_region
        // Predicated region
        $region29: #{tpu_custom_call.1} parent=27 // pred_check
          %p191 = pneg %p36
        $region30: #{tpu_custom_call.1} parent=27 // pred_check_branch
          %193 = sbr.rel (%p191) target = $region32
        $region31: #{tpu_custom_call.1} parent=27 // pred_region
          %p194 = scmp.lt.s32.totalorder %s16, 1
          %s195 = scalar_select %p194, %s16, 1
          %s196 = scalar_lea.vmem %s0, %s195
        $region32: #{tpu_custom_call.1} parent=27 // pred_fallthru
          _
        // Predicated region
        $region33: #{tpu_custom_call.1} parent=27 // pred_check
          %p197 = pneg %p62
        $region34: #{tpu_custom_call.1} parent=27 // pred_check_branch
          %199 = sbr.rel (%p197) target = $region36
        $region35: #{tpu_custom_call.1} parent=27 // pred_region
          %s200 = sand.u32 %s52, 1
          %s201 = scalar_lea.sflag [#allocation7], %s200
          %s202 = sand.u32 %s52, 1
          %s203 = scalar_lea.vmem [#allocation6], %s202
          %205 = vsyncadd %s201, 0
          %s206 = scalar_lea.hbm %s1, %s16
          %s208 = sshll.u32 %s206, 4
          %s209 = int_to_ptr.hbm [resolvable:$true] %s208
          %s210 = sshll.u32 %s203, 4
          %s211 = int_to_ptr.vmem [resolvable:$true] %s210
          %213 = dma.hbm_to_vmem [thread:$0]  %s209, 16, %s211, %s201
        $region36: #{tpu_custom_call.1} parent=27 // pred_fallthru
          _
      $region28: #{tpu_custom_call.1} parent=5 // pred_fallthru
        _
      %p214 = scmp.le.s32.totalorder 1, %s16
      %p215 = scmp.lt.s32.totalorder %s16, 3
      %p216 = pnand %p214, %p215
      %p217 = pneg %p216
      // Predicated region
      $region37: #{tpu_custom_call.1} parent=5 // pred_check
        _
      $region38: #{tpu_custom_call.1} parent=5 // pred_check_branch
        %219 = sbr.rel (%p216) target = $region40
      $region39: #{tpu_custom_call.1} parent=5 // pred_region
        %s220 = ssub.s32 %s16, 1
        %s221 = sand.u32 %s55, 1
        %s222 = scalar_lea.sflag [#allocation7], %s221
        %s223 = sand.u32 %s55, 1
        %s224 = scalar_lea.vmem [#allocation6], %s223
        // Predicated region
        $region41: #{tpu_custom_call.1} parent=39 // pred_check
          %p225 = pneg %p68
        $region42: #{tpu_custom_call.1} parent=39 // pred_check_branch
          %227 = sbr.rel (%p225) target = $region44
        $region43: #{tpu_custom_call.1} parent=39 // pred_region
          %229 = dma.done %s222, 16
        $region44: #{tpu_custom_call.1} parent=39 // pred_fallthru
          _
        // Predicated region
        $region45: #{tpu_custom_call.1} parent=39 // pred_check
          %p230 = pneg %p89
        $region46: #{tpu_custom_call.1} parent=39 // pred_check_branch
          %232 = sbr.rel (%p230) target = $region48
        $region47: #{tpu_custom_call.1} parent=39 // pred_region
          %234 = dma.done [#allocation10], 1024
        $region48: #{tpu_custom_call.1} parent=39 // pred_fallthru
          _
        %p235 = scmp.lt.s32.totalorder %s21, 1
        %s236 = scalar_select %p235, %s21, 1
        %s237 = scalar_lea.vmem %s0, %s236
        %p238 = pneg %p42
        %p239 = pneg %p39
        %s240 = sand.u32 %s55, 1
        %s241 = scalar_lea.sflag [#allocation7], %s240
        %s242 = sand.u32 %s55, 1
        %s243 = scalar_lea.vmem [#allocation6], %s242
        %p244 = pneg %p68
        %p245 = pneg %p65
        %p246 = pneg %p89
        %p247 = pneg %p86
        %p248 = pneg %p110
        %p249 = pneg %p107
        %p250 = pneg %p131
        %p251 = pneg %p128
        %p252 = pneg %p152
        %p253 = pneg %p149
        %p254 = scmp.lt.s32.totalorder %s21, 1
        %s255 = scalar_select %p254, %s21, 1
        %s256 = scalar_lea.vmem %s0, %s255
        %p257 = scmp.eq.s32.totalorder %s21, 0
        // Predicated region
        $region49: #{tpu_custom_call.1} parent=39 // pred_check
          %p258 = pneg %p257
        $region50: #{tpu_custom_call.1} parent=39 // pred_check_branch
          %260 = sbr.rel (%p258) target = $region52
        $region51: #{tpu_custom_call.1} parent=39 // pred_region
          %v261 = vld [vmem:[#allocation9] sm:$0xff]
          %v262 = vld [vmem:[#allocation9 + $0x8] sm:$0xff]
          %v263 = vld [vmem:[#allocation9 + $0x10] sm:$0xff]
          %v264 = vld [vmem:[#allocation9 + $0x18] sm:$0xff]
          %v265 = vld [vmem:[#allocation9 + $0x20] sm:$0xff]
          %v266 = vld [vmem:[#allocation9 + $0x28] sm:$0xff]
          %v267 = vld [vmem:[#allocation9 + $0x30] sm:$0xff]
          %v268 = vld [vmem:[#allocation9 + $0x38] sm:$0xff]
          %v269 = vld [vmem:[%s3] sm:$0xff]
          %v270 = vld [vmem:[%s3 + $0x8] sm:$0xff]
          %v271 = vld [vmem:[%s3 + $0x10] sm:$0xff]
          %v272 = vld [vmem:[%s3 + $0x18] sm:$0xff]
          %v273 = vld [vmem:[%s3 + $0x20] sm:$0xff]
          %v274 = vld [vmem:[%s3 + $0x28] sm:$0xff]
          %v275 = vld [vmem:[%s3 + $0x30] sm:$0xff]
          %v276 = vld [vmem:[%s3 + $0x38] sm:$0xff]
          %v277 = vld [vmem:[%s3 + $0x40] sm:$0xff]
          %v278 = vld [vmem:[%s3 + $0x48] sm:$0xff]
          %v279 = vld [vmem:[%s3 + $0x50] sm:$0xff]
          %v280 = vld [vmem:[%s3 + $0x58] sm:$0xff]
          %v281 = vld [vmem:[%s3 + $0x60] sm:$0xff]
          %v282 = vld [vmem:[%s3 + $0x68] sm:$0xff]
          %v283 = vld [vmem:[%s3 + $0x70] sm:$0xff]
          %v284 = vld [vmem:[%s3 + $0x78] sm:$0xff]
          %v285 = vand.u32 %v284, 4294901760
          %286 = vmatpush.msra.mxu0 %v285
          %v287 = vand.u32 %v283, 4294901760
          %288 = vmatpush.msra.mxu0 %v287
          %v289 = vand.u32 %v282, 4294901760
          %290 = vmatpush.msra.mxu0 %v289
          %v291 = vand.u32 %v281, 4294901760
          %292 = vmatpush.msra.mxu0 %v291
          %v293 = vand.u32 %v280, 4294901760
          %294 = vmatpush.msra.mxu0 %v293
          %v295 = vand.u32 %v279, 4294901760
          %296 = vmatpush.msra.mxu0 %v295
          %v297 = vand.u32 %v278, 4294901760
          %298 = vmatpush.msra.mxu0 %v297
          %v299 = vand.u32 %v277, 4294901760
          %300 = vmatpush.msra.mxu0 %v299
          %v301 = vand.u32 %v276, 4294901760
          %302 = vmatpush.msra.mxu0 %v301
          %v303 = vand.u32 %v275, 4294901760
          %304 = vmatpush.msra.mxu0 %v303
          %v305 = vand.u32 %v274, 4294901760
          %306 = vmatpush.msra.mxu0 %v305
          %v307 = vand.u32 %v273, 4294901760
          %308 = vmatpush.msra.mxu0 %v307
          %v309 = vand.u32 %v272, 4294901760
          %310 = vmatpush.msra.mxu0 %v309
          %v311 = vand.u32 %v271, 4294901760
          %312 = vmatpush.msra.mxu0 %v311
          %v313 = vand.u32 %v270, 4294901760
          %314 = vmatpush.msra.mxu0 %v313
          %v315 = vand.u32 %v269, 4294901760
          %316 = vmatpush.msra.mxu0 %v315
          %v317 = vand.u32 %v261, 4294901760
          %v318 = vsub.f32 %v261, %v317
          %v319 = vand.u32 %v318, 4294901760
          %v320 = vsub.f32 %v318, %v319
          %v321 = vand.u32 %v320, 4294901760
          %322 = vmatmul.f32.gmra.mxu0 %v321
          %v323 = vpop.f32.mrf.mxu0
          %v324 = vadd.f32 0.0, %v323
          %v325 = vand.u32 %v262, 4294901760
          %v326 = vsub.f32 %v262, %v325
          %v327 = vand.u32 %v326, 4294901760
          %v328 = vsub.f32 %v326, %v327
          %v329 = vand.u32 %v328, 4294901760
          %330 = vmatmul.f32.gmra.mxu0 %v329
          %v331 = vpop.f32.mrf.mxu0
          %v332 = vadd.f32 0.0, %v331
          %v333 = vand.u32 %v263, 4294901760
          %v334 = vsub.f32 %v263, %v333
          %v335 = vand.u32 %v334, 4294901760
          %v336 = vsub.f32 %v334, %v335
          %v337 = vand.u32 %v336, 4294901760
          %338 = vmatmul.f32.gmra.mxu0 %v337
          %v339 = vpop.f32.mrf.mxu0
          %v340 = vadd.f32 0.0, %v339
          %v341 = vand.u32 %v264, 4294901760
          %v342 = vsub.f32 %v264, %v341
          %v343 = vand.u32 %v342, 4294901760
          %v344 = vsub.f32 %v342, %v343
          %v345 = vand.u32 %v344, 4294901760
          %346 = vmatmul.f32.gmra.mxu0 %v345
          %v347 = vpop.f32.mrf.mxu0
          %v348 = vadd.f32 0.0, %v347
          %v349 = vand.u32 %v265, 4294901760
          %v350 = vsub.f32 %v265, %v349
          %v351 = vand.u32 %v350, 4294901760
          %v352 = vsub.f32 %v350, %v351
          %v353 = vand.u32 %v352, 4294901760
          %354 = vmatmul.f32.gmra.mxu0 %v353
          %v355 = vpop.f32.mrf.mxu0
          %v356 = vadd.f32 0.0, %v355
          %v357 = vand.u32 %v266, 4294901760
          %v358 = vsub.f32 %v266, %v357
          %v359 = vand.u32 %v358, 4294901760
          %v360 = vsub.f32 %v358, %v359
          %v361 = vand.u32 %v360, 4294901760
          %362 = vmatmul.f32.gmra.mxu0 %v361
          %v363 = vpop.f32.mrf.mxu0
          %v364 = vadd.f32 0.0, %v363
          %v365 = vand.u32 %v267, 4294901760
          %v366 = vsub.f32 %v267, %v365
          %v367 = vand.u32 %v366, 4294901760
          %v368 = vsub.f32 %v366, %v367
          %v369 = vand.u32 %v368, 4294901760
          %370 = vmatmul.f32.gmra.mxu0 %v369
          %v371 = vpop.f32.mrf.mxu0
          %v372 = vadd.f32 0.0, %v371
          %v373 = vand.u32 %v268, 4294901760
          %v374 = vsub.f32 %v268, %v373
          %v375 = vand.u32 %v374, 4294901760
          %v376 = vsub.f32 %v374, %v375
          %v377 = vand.u32 %v376, 4294901760
          %378 = vmatmul.f32.gmra.mxu0 %v377
          %v379 = vpop.f32.mrf.mxu0
          %v380 = vadd.f32 0.0, %v379
          %381 = vdwg.mxu0
          %v382 = vand.u32 %v284, 4294901760
          %v383 = vsub.f32 %v284, %v382
          %v384 = vand.u32 %v383, 4294901760
          %v385 = vsub.f32 %v383, %v384
          %v386 = vand.u32 %v385, 4294901760
          %387 = vmatpush.msra.mxu0 %v386
          %v388 = vand.u32 %v283, 4294901760
          %v389 = vsub.f32 %v283, %v388
          %v390 = vand.u32 %v389, 4294901760
          %v391 = vsub.f32 %v389, %v390
          %v392 = vand.u32 %v391, 4294901760
          %393 = vmatpush.msra.mxu0 %v392
          %v394 = vand.u32 %v282, 4294901760
          %v395 = vsub.f32 %v282, %v394
          %v396 = vand.u32 %v395, 4294901760
          %v397 = vsub.f32 %v395, %v396
          %v398 = vand.u32 %v397, 4294901760
          %399 = vmatpush.msra.mxu0 %v398
          %v400 = vand.u32 %v281, 4294901760
          %v401 = vsub.f32 %v281, %v400
          %v402 = vand.u32 %v401, 4294901760
          %v403 = vsub.f32 %v401, %v402
          %v404 = vand.u32 %v403, 4294901760
          %405 = vmatpush.msra.mxu0 %v404
          %v406 = vand.u32 %v280, 4294901760
          %v407 = vsub.f32 %v280, %v406
          %v408 = vand.u32 %v407, 4294901760
          %v409 = vsub.f32 %v407, %v408
          %v410 = vand.u32 %v409, 4294901760
          %411 = vmatpush.msra.mxu0 %v410
          %v412 = vand.u32 %v279, 4294901760
          %v413 = vsub.f32 %v279, %v412
          %v414 = vand.u32 %v413, 4294901760
          %v415 = vsub.f32 %v413, %v414
          %v416 = vand.u32 %v415, 4294901760
          %417 = vmatpush.msra.mxu0 %v416
          %v418 = vand.u32 %v278, 4294901760
          %v419 = vsub.f32 %v278, %v418
          %v420 = vand.u32 %v419, 4294901760
          %v421 = vsub.f32 %v419, %v420
          %v422 = vand.u32 %v421, 4294901760
          %423 = vmatpush.msra.mxu0 %v422
          %v424 = vand.u32 %v277, 4294901760
          %v425 = vsub.f32 %v277, %v424
          %v426 = vand.u32 %v425, 4294901760
          %v427 = vsub.f32 %v425, %v426
          %v428 = vand.u32 %v427, 4294901760
          %429 = vmatpush.msra.mxu0 %v428
          %v430 = vand.u32 %v276, 4294901760
          %v431 = vsub.f32 %v276, %v430
          %v432 = vand.u32 %v431, 4294901760
          %v433 = vsub.f32 %v431, %v432
          %v434 = vand.u32 %v433, 4294901760
          %435 = vmatpush.msra.mxu0 %v434
          %v436 = vand.u32 %v275, 4294901760
          %v437 = vsub.f32 %v275, %v436
          %v438 = vand.u32 %v437, 4294901760
          %v439 = vsub.f32 %v437, %v438
          %v440 = vand.u32 %v439, 4294901760
          %441 = vmatpush.msra.mxu0 %v440
          %v442 = vand.u32 %v274, 4294901760
          %v443 = vsub.f32 %v274, %v442
          %v444 = vand.u32 %v443, 4294901760
          %v445 = vsub.f32 %v443, %v444
          %v446 = vand.u32 %v445, 4294901760
          %447 = vmatpush.msra.mxu0 %v446
          %v448 = vand.u32 %v273, 4294901760
          %v449 = vsub.f32 %v273, %v448
          %v450 = vand.u32 %v449, 4294901760
          %v451 = vsub.f32 %v449, %v450
          %v452 = vand.u32 %v451, 4294901760
          %453 = vmatpush.msra.mxu0 %v452
          %v454 = vand.u32 %v272, 4294901760
          %v455 = vsub.f32 %v272, %v454
          %v456 = vand.u32 %v455, 4294901760
          %v457 = vsub.f32 %v455, %v456
          %v458 = vand.u32 %v457, 4294901760
          %459 = vmatpush.msra.mxu0 %v458
          %v460 = vand.u32 %v271, 4294901760
          %v461 = vsub.f32 %v271, %v460
          %v462 = vand.u32 %v461, 4294901760
          %v463 = vsub.f32 %v461, %v462
          %v464 = vand.u32 %v463, 4294901760
          %465 = vmatpush.msra.mxu0 %v464
          %v466 = vand.u32 %v270, 4294901760
          %v467 = vsub.f32 %v270, %v466
          %v468 = vand.u32 %v467, 4294901760
          %v469 = vsub.f32 %v467, %v468
          %v470 = vand.u32 %v469, 4294901760
          %471 = vmatpush.msra.mxu0 %v470
          %v472 = vand.u32 %v269, 4294901760
          %v473 = vsub.f32 %v269, %v472
          %v474 = vand.u32 %v473, 4294901760
          %v475 = vsub.f32 %v473, %v474
          %v476 = vand.u32 %v475, 4294901760
          %477 = vmatpush.msra.mxu0 %v476
          %v478 = vand.u32 %v261, 4294901760
          %479 = vmatmul.f32.gmra.mxu0 %v478
          %v480 = vpop.f32.mrf.mxu0
          %v481 = vadd.f32 %v324, %v480
          %v482 = vand.u32 %v262, 4294901760
          %483 = vmatmul.f32.gmra.mxu0 %v482
          %v484 = vpop.f32.mrf.mxu0
          %v485 = vadd.f32 %v332, %v484
          %v486 = vand.u32 %v263, 4294901760
          %487 = vmatmul.f32.gmra.mxu0 %v486
          %v488 = vpop.f32.mrf.mxu0
          %v489 = vadd.f32 %v340, %v488
          %v490 = vand.u32 %v264, 4294901760
          %491 = vmatmul.f32.gmra.mxu0 %v490
          %v492 = vpop.f32.mrf.mxu0
          %v493 = vadd.f32 %v348, %v492
          %v494 = vand.u32 %v265, 4294901760
          %495 = vmatmul.f32.gmra.mxu0 %v494
          %v496 = vpop.f32.mrf.mxu0
          %v497 = vadd.f32 %v356, %v496
          %v498 = vand.u32 %v266, 4294901760
          %499 = vmatmul.f32.gmra.mxu0 %v498
          %v500 = vpop.f32.mrf.mxu0
          %v501 = vadd.f32 %v364, %v500
          %v502 = vand.u32 %v267, 4294901760
          %503 = vmatmul.f32.gmra.mxu0 %v502
          %v504 = vpop.f32.mrf.mxu0
          %v505 = vadd.f32 %v372, %v504
          %v506 = vand.u32 %v268, 4294901760
          %507 = vmatmul.f32.gmra.mxu0 %v506
          %v508 = vpop.f32.mrf.mxu0
          %v509 = vadd.f32 %v380, %v508
          %510 = vdwg.mxu0
          %v511 = vand.u32 %v284, 4294901760
          %v512 = vsub.f32 %v284, %v511
          %513 = vmatpush.msra.mxu0 %v512
          %v514 = vand.u32 %v283, 4294901760
          %v515 = vsub.f32 %v283, %v514
          %516 = vmatpush.msra.mxu0 %v515
          %v517 = vand.u32 %v282, 4294901760
          %v518 = vsub.f32 %v282, %v517
          %519 = vmatpush.msra.mxu0 %v518
          %v520 = vand.u32 %v281, 4294901760
          %v521 = vsub.f32 %v281, %v520
          %522 = vmatpush.msra.mxu0 %v521
          %v523 = vand.u32 %v280, 4294901760
          %v524 = vsub.f32 %v280, %v523
          %525 = vmatpush.msra.mxu0 %v524
          %v526 = vand.u32 %v279, 4294901760
          %v527 = vsub.f32 %v279, %v526
          %528 = vmatpush.msra.mxu0 %v527
          %v529 = vand.u32 %v278, 4294901760
          %v530 = vsub.f32 %v278, %v529
          %531 = vmatpush.msra.mxu0 %v530
          %v532 = vand.u32 %v277, 4294901760
          %v533 = vsub.f32 %v277, %v532
          %534 = vmatpush.msra.mxu0 %v533
          %v535 = vand.u32 %v276, 4294901760
          %v536 = vsub.f32 %v276, %v535
          %537 = vmatpush.msra.mxu0 %v536
          %v538 = vand.u32 %v275, 4294901760
          %v539 = vsub.f32 %v275, %v538
          %540 = vmatpush.msra.mxu0 %v539
          %v541 = vand.u32 %v274, 4294901760
          %v542 = vsub.f32 %v274, %v541
          %543 = vmatpush.msra.mxu0 %v542
          %v544 = vand.u32 %v273, 4294901760
          %v545 = vsub.f32 %v273, %v544
          %546 = vmatpush.msra.mxu0 %v545
          %v547 = vand.u32 %v272, 4294901760
          %v548 = vsub.f32 %v272, %v547
          %549 = vmatpush.msra.mxu0 %v548
          %v550 = vand.u32 %v271, 4294901760
          %v551 = vsub.f32 %v271, %v550
          %552 = vmatpush.msra.mxu0 %v551
          %v553 = vand.u32 %v270, 4294901760
          %v554 = vsub.f32 %v270, %v553
          %555 = vmatpush.msra.mxu0 %v554
          %v556 = vand.u32 %v269, 4294901760
          %v557 = vsub.f32 %v269, %v556
          %558 = vmatpush.msra.mxu0 %v557
          %v559 = vand.u32 %v261, 4294901760
          %v560 = vsub.f32 %v261, %v559
          %561 = vmatmul.f32.gmra.mxu0 %v560
          %v562 = vpop.f32.mrf.mxu0
          %v563 = vadd.f32 %v481, %v562
          %v564 = vand.u32 %v262, 4294901760
          %v565 = vsub.f32 %v262, %v564
          %566 = vmatmul.f32.gmra.mxu0 %v565
          %v567 = vpop.f32.mrf.mxu0
          %v568 = vadd.f32 %v485, %v567
          %v569 = vand.u32 %v263, 4294901760
          %v570 = vsub.f32 %v263, %v569
          %571 = vmatmul.f32.gmra.mxu0 %v570
          %v572 = vpop.f32.mrf.mxu0
          %v573 = vadd.f32 %v489, %v572
          %v574 = vand.u32 %v264, 4294901760
          %v575 = vsub.f32 %v264, %v574
          %576 = vmatmul.f32.gmra.mxu0 %v575
          %v577 = vpop.f32.mrf.mxu0
          %v578 = vadd.f32 %v493, %v577
          %v579 = vand.u32 %v265, 4294901760
          %v580 = vsub.f32 %v265, %v579
          %581 = vmatmul.f32.gmra.mxu0 %v580
          %v582 = vpop.f32.mrf.mxu0
          %v583 = vadd.f32 %v497, %v582
          %v584 = vand.u32 %v266, 4294901760
          %v585 = vsub.f32 %v266, %v584
          %586 = vmatmul.f32.gmra.mxu0 %v585
          %v587 = vpop.f32.mrf.mxu0
          %v588 = vadd.f32 %v501, %v587
          %v589 = vand.u32 %v267, 4294901760
          %v590 = vsub.f32 %v267, %v589
          %591 = vmatmul.f32.gmra.mxu0 %v590
          %v592 = vpop.f32.mrf.mxu0
          %v593 = vadd.f32 %v505, %v592
          %v594 = vand.u32 %v268, 4294901760
          %v595 = vsub.f32 %v268, %v594
          %596 = vmatmul.f32.gmra.mxu0 %v595
          %v597 = vpop.f32.mrf.mxu0
          %v598 = vadd.f32 %v509, %v597
          %599 = vdwg.mxu0
          %v600 = vand.u32 %v284, 4294901760
          %601 = vmatpush.msra.mxu0 %v600
          %v602 = vand.u32 %v283, 4294901760
          %603 = vmatpush.msra.mxu0 %v602
          %v604 = vand.u32 %v282, 4294901760
          %605 = vmatpush.msra.mxu0 %v604
          %v606 = vand.u32 %v281, 4294901760
          %607 = vmatpush.msra.mxu0 %v606
          %v608 = vand.u32 %v280, 4294901760
          %609 = vmatpush.msra.mxu0 %v608
          %v610 = vand.u32 %v279, 4294901760
          %611 = vmatpush.msra.mxu0 %v610
          %v612 = vand.u32 %v278, 4294901760
          %613 = vmatpush.msra.mxu0 %v612
          %v614 = vand.u32 %v277, 4294901760
          %615 = vmatpush.msra.mxu0 %v614
          %v616 = vand.u32 %v276, 4294901760
          %617 = vmatpush.msra.mxu0 %v616
          %v618 = vand.u32 %v275, 4294901760
          %619 = vmatpush.msra.mxu0 %v618
          %v620 = vand.u32 %v274, 4294901760
          %621 = vmatpush.msra.mxu0 %v620
          %v622 = vand.u32 %v273, 4294901760
          %623 = vmatpush.msra.mxu0 %v622
          %v624 = vand.u32 %v272, 4294901760
          %625 = vmatpush.msra.mxu0 %v624
          %v626 = vand.u32 %v271, 4294901760
          %627 = vmatpush.msra.mxu0 %v626
          %v628 = vand.u32 %v270, 4294901760
          %629 = vmatpush.msra.mxu0 %v628
          %v630 = vand.u32 %v269, 4294901760
          %631 = vmatpush.msra.mxu0 %v630
          %v632 = vand.u32 %v261, 4294901760
          %v633 = vsub.f32 %v261, %v632
          %v634 = vand.u32 %v633, 4294901760
          %635 = vmatmul.f32.gmra.mxu0 %v634
          %v636 = vpop.f32.mrf.mxu0
          %v637 = vadd.f32 %v563, %v636
          %v638 = vand.u32 %v262, 4294901760
          %v639 = vsub.f32 %v262, %v638
          %v640 = vand.u32 %v639, 4294901760
          %641 = vmatmul.f32.gmra.mxu0 %v640
          %v642 = vpop.f32.mrf.mxu0
          %v643 = vadd.f32 %v568, %v642
          %v644 = vand.u32 %v263, 4294901760
          %v645 = vsub.f32 %v263, %v644
          %v646 = vand.u32 %v645, 4294901760
          %647 = vmatmul.f32.gmra.mxu0 %v646
          %v648 = vpop.f32.mrf.mxu0
          %v649 = vadd.f32 %v573, %v648
          %v650 = vand.u32 %v264, 4294901760
          %v651 = vsub.f32 %v264, %v650
          %v652 = vand.u32 %v651, 4294901760
          %653 = vmatmul.f32.gmra.mxu0 %v652
          %v654 = vpop.f32.mrf.mxu0
          %v655 = vadd.f32 %v578, %v654
          %v656 = vand.u32 %v265, 4294901760
          %v657 = vsub.f32 %v265, %v656
          %v658 = vand.u32 %v657, 4294901760
          %659 = vmatmul.f32.gmra.mxu0 %v658
          %v660 = vpop.f32.mrf.mxu0
          %v661 = vadd.f32 %v583, %v660
          %v662 = vand.u32 %v266, 4294901760
          %v663 = vsub.f32 %v266, %v662
          %v664 = vand.u32 %v663, 4294901760
          %665 = vmatmul.f32.gmra.mxu0 %v664
          %v666 = vpop.f32.mrf.mxu0
          %v667 = vadd.f32 %v588, %v666
          %v668 = vand.u32 %v267, 4294901760
          %v669 = vsub.f32 %v267, %v668
          %v670 = vand.u32 %v669, 4294901760
          %671 = vmatmul.f32.gmra.mxu0 %v670
          %v672 = vpop.f32.mrf.mxu0
          %v673 = vadd.f32 %v593, %v672
          %v674 = vand.u32 %v268, 4294901760
          %v675 = vsub.f32 %v268, %v674
          %v676 = vand.u32 %v675, 4294901760
          %677 = vmatmul.f32.gmra.mxu0 %v676
          %v678 = vpop.f32.mrf.mxu0
          %v679 = vadd.f32 %v598, %v678
          %680 = vdwg.mxu0
          %v681 = vand.u32 %v284, 4294901760
          %v682 = vsub.f32 %v284, %v681
          %v683 = vand.u32 %v682, 4294901760
          %684 = vmatpush.msra.mxu0 %v683
          %v685 = vand.u32 %v283, 4294901760
          %v686 = vsub.f32 %v283, %v685
          %v687 = vand.u32 %v686, 4294901760
          %688 = vmatpush.msra.mxu0 %v687
          %v689 = vand.u32 %v282, 4294901760
          %v690 = vsub.f32 %v282, %v689
          %v691 = vand.u32 %v690, 4294901760
          %692 = vmatpush.msra.mxu0 %v691
          %v693 = vand.u32 %v281, 4294901760
          %v694 = vsub.f32 %v281, %v693
          %v695 = vand.u32 %v694, 4294901760
          %696 = vmatpush.msra.mxu0 %v695
          %v697 = vand.u32 %v280, 4294901760
          %v698 = vsub.f32 %v280, %v697
          %v699 = vand.u32 %v698, 4294901760
          %700 = vmatpush.msra.mxu0 %v699
          %v701 = vand.u32 %v279, 4294901760
          %v702 = vsub.f32 %v279, %v701
          %v703 = vand.u32 %v702, 4294901760
          %704 = vmatpush.msra.mxu0 %v703
          %v705 = vand.u32 %v278, 4294901760
          %v706 = vsub.f32 %v278, %v705
          %v707 = vand.u32 %v706, 4294901760
          %708 = vmatpush.msra.mxu0 %v707
          %v709 = vand.u32 %v277, 4294901760
          %v710 = vsub.f32 %v277, %v709
          %v711 = vand.u32 %v710, 4294901760
          %712 = vmatpush.msra.mxu0 %v711
          %v713 = vand.u32 %v276, 4294901760
          %v714 = vsub.f32 %v276, %v713
          %v715 = vand.u32 %v714, 4294901760
          %716 = vmatpush.msra.mxu0 %v715
          %v717 = vand.u32 %v275, 4294901760
          %v718 = vsub.f32 %v275, %v717
          %v719 = vand.u32 %v718, 4294901760
          %720 = vmatpush.msra.mxu0 %v719
          %v721 = vand.u32 %v274, 4294901760
          %v722 = vsub.f32 %v274, %v721
          %v723 = vand.u32 %v722, 4294901760
          %724 = vmatpush.msra.mxu0 %v723
          %v725 = vand.u32 %v273, 4294901760
          %v726 = vsub.f32 %v273, %v725
          %v727 = vand.u32 %v726, 4294901760
          %728 = vmatpush.msra.mxu0 %v727
          %v729 = vand.u32 %v272, 4294901760
          %v730 = vsub.f32 %v272, %v729
          %v731 = vand.u32 %v730, 4294901760
          %732 = vmatpush.msra.mxu0 %v731
          %v733 = vand.u32 %v271, 4294901760
          %v734 = vsub.f32 %v271, %v733
          %v735 = vand.u32 %v734, 4294901760
          %736 = vmatpush.msra.mxu0 %v735
          %v737 = vand.u32 %v270, 4294901760
          %v738 = vsub.f32 %v270, %v737
          %v739 = vand.u32 %v738, 4294901760
          %740 = vmatpush.msra.mxu0 %v739
          %v741 = vand.u32 %v269, 4294901760
          %v742 = vsub.f32 %v269, %v741
          %v743 = vand.u32 %v742, 4294901760
          %744 = vmatpush.msra.mxu0 %v743
          %v745 = vand.u32 %v261, 4294901760
          %746 = vmatmul.f32.gmra.mxu0 %v745
          %v747 = vpop.f32.mrf.mxu0
          %v748 = vadd.f32 %v637, %v747
          %v749 = vand.u32 %v262, 4294901760
          %750 = vmatmul.f32.gmra.mxu0 %v749
          %v751 = vpop.f32.mrf.mxu0
          %v752 = vadd.f32 %v643, %v751
          %v753 = vand.u32 %v263, 4294901760
          %754 = vmatmul.f32.gmra.mxu0 %v753
          %v755 = vpop.f32.mrf.mxu0
          %v756 = vadd.f32 %v649, %v755
          %v757 = vand.u32 %v264, 4294901760
          %758 = vmatmul.f32.gmra.mxu0 %v757
          %v759 = vpop.f32.mrf.mxu0
          %v760 = vadd.f32 %v655, %v759
          %v761 = vand.u32 %v265, 4294901760
          %762 = vmatmul.f32.gmra.mxu0 %v761
          %v763 = vpop.f32.mrf.mxu0
          %v764 = vadd.f32 %v661, %v763
          %v765 = vand.u32 %v266, 4294901760
          %766 = vmatmul.f32.gmra.mxu0 %v765
          %v767 = vpop.f32.mrf.mxu0
          %v768 = vadd.f32 %v667, %v767
          %v769 = vand.u32 %v267, 4294901760
          %770 = vmatmul.f32.gmra.mxu0 %v769
          %v771 = vpop.f32.mrf.mxu0
          %v772 = vadd.f32 %v673, %v771
          %v773 = vand.u32 %v268, 4294901760
          %774 = vmatmul.f32.gmra.mxu0 %v773
          %v775 = vpop.f32.mrf.mxu0
          %v776 = vadd.f32 %v679, %v775
          %777 = vdwg.mxu0
          %v778 = vand.u32 %v284, 4294901760
          %779 = vmatpush.msra.mxu0 %v778
          %v780 = vand.u32 %v283, 4294901760
          %781 = vmatpush.msra.mxu0 %v780
          %v782 = vand.u32 %v282, 4294901760
          %783 = vmatpush.msra.mxu0 %v782
          %v784 = vand.u32 %v281, 4294901760
          %785 = vmatpush.msra.mxu0 %v784
          %v786 = vand.u32 %v280, 4294901760
          %787 = vmatpush.msra.mxu0 %v786
          %v788 = vand.u32 %v279, 4294901760
          %789 = vmatpush.msra.mxu0 %v788
          %v790 = vand.u32 %v278, 4294901760
          %791 = vmatpush.msra.mxu0 %v790
          %v792 = vand.u32 %v277, 4294901760
          %793 = vmatpush.msra.mxu0 %v792
          %v794 = vand.u32 %v276, 4294901760
          %795 = vmatpush.msra.mxu0 %v794
          %v796 = vand.u32 %v275, 4294901760
          %797 = vmatpush.msra.mxu0 %v796
          %v798 = vand.u32 %v274, 4294901760
          %799 = vmatpush.msra.mxu0 %v798
          %v800 = vand.u32 %v273, 4294901760
          %801 = vmatpush.msra.mxu0 %v800
          %v802 = vand.u32 %v272, 4294901760
          %803 = vmatpush.msra.mxu0 %v802
          %v804 = vand.u32 %v271, 4294901760
          %805 = vmatpush.msra.mxu0 %v804
          %v806 = vand.u32 %v270, 4294901760
          %807 = vmatpush.msra.mxu0 %v806
          %v808 = vand.u32 %v269, 4294901760
          %809 = vmatpush.msra.mxu0 %v808
          %v810 = vand.u32 %v261, 4294901760
          %811 = vmatmul.f32.gmra.mxu0 %v810
          %v812 = vpop.f32.mrf.mxu0
          %v813 = vadd.f32 %v748, %v812
          %v814 = vand.u32 %v262, 4294901760
          %815 = vmatmul.f32.gmra.mxu0 %v814
          %v816 = vpop.f32.mrf.mxu0
          %v817 = vadd.f32 %v752, %v816
          %v818 = vand.u32 %v263, 4294901760
          %819 = vmatmul.f32.gmra.mxu0 %v818
          %v820 = vpop.f32.mrf.mxu0
          %v821 = vadd.f32 %v756, %v820
          %v822 = vand.u32 %v264, 4294901760
          %823 = vmatmul.f32.gmra.mxu0 %v822
          %v824 = vpop.f32.mrf.mxu0
          %v825 = vadd.f32 %v760, %v824
          %v826 = vand.u32 %v265, 4294901760
          %827 = vmatmul.f32.gmra.mxu0 %v826
          %v828 = vpop.f32.mrf.mxu0
          %v829 = vadd.f32 %v764, %v828
          %v830 = vand.u32 %v266, 4294901760
          %831 = vmatmul.f32.gmra.mxu0 %v830
          %v832 = vpop.f32.mrf.mxu0
          %v833 = vadd.f32 %v768, %v832
          %v834 = vand.u32 %v267, 4294901760
          %835 = vmatmul.f32.gmra.mxu0 %v834
          %v836 = vpop.f32.mrf.mxu0
          %v837 = vadd.f32 %v772, %v836
          %v838 = vand.u32 %v268, 4294901760
          %839 = vmatmul.f32.gmra.mxu0 %v838
          %v840 = vpop.f32.mrf.mxu0
          %v841 = vadd.f32 %v776, %v840
          %842 = vdwg.mxu0
          %843 = vst [vmem:[#allocation2] sm:$0xff] %v813
          %844 = vst [vmem:[#allocation2 + $0x8] sm:$0xff] %v817
          %845 = vst [vmem:[#allocation2 + $0x10] sm:$0xff] %v821
          %846 = vst [vmem:[#allocation2 + $0x18] sm:$0xff] %v825
          %847 = vst [vmem:[#allocation2 + $0x20] sm:$0xff] %v829
          %848 = vst [vmem:[#allocation2 + $0x28] sm:$0xff] %v833
          %849 = vst [vmem:[#allocation2 + $0x30] sm:$0xff] %v837
          %850 = vst [vmem:[#allocation2 + $0x38] sm:$0xff] %v841
          %vm851 = vcmask 0
          %852 = vst.msk [vmem:[#allocation3] sm:$0x1] %vm851, -1e+30
          %853 = vst.msk [vmem:[#allocation4] sm:$0x1] %vm851, 0.0
          %854 = vst [vmem:[#allocation5] sm:$0xff] 0.0
          %855 = vst [vmem:[#allocation5 + $0x8] sm:$0xff] 0.0
          %856 = vst [vmem:[#allocation5 + $0x10] sm:$0xff] 0.0
          %857 = vst [vmem:[#allocation5 + $0x18] sm:$0xff] 0.0
          %858 = vst [vmem:[#allocation5 + $0x20] sm:$0xff] 0.0
          %859 = vst [vmem:[#allocation5 + $0x28] sm:$0xff] 0.0
          %860 = vst [vmem:[#allocation5 + $0x30] sm:$0xff] 0.0
          %861 = vst [vmem:[#allocation5 + $0x38] sm:$0xff] 0.0
        $region52: #{tpu_custom_call.1} parent=39 // pred_fallthru
          _
        %v862 = vld [vmem:[#allocation2] sm:$0xff]
        %v863 = vld [vmem:[#allocation2 + $0x8] sm:$0xff]
        %v864 = vld [vmem:[#allocation2 + $0x10] sm:$0xff]
        %v865 = vld [vmem:[#allocation2 + $0x18] sm:$0xff]
        %v866 = vld [vmem:[#allocation2 + $0x20] sm:$0xff]
        %v867 = vld [vmem:[#allocation2 + $0x28] sm:$0xff]
        %v868 = vld [vmem:[#allocation2 + $0x30] sm:$0xff]
        %v869 = vld [vmem:[#allocation2 + $0x38] sm:$0xff]
        %v870 = vld [vmem:[%s256] sm:$0x1]
        %v871 = vld [vmem:[%s224] sm:$0x1]
        %v872 = vld [vmem:[%s4] sm:$0xff]
        %v873 = vld [vmem:[%s4 + $0x8] sm:$0xff]
        %v874 = vld [vmem:[%s4 + $0x10] sm:$0xff]
        %v875 = vld [vmem:[%s4 + $0x18] sm:$0xff]
        %v876 = vld [vmem:[%s4 + $0x20] sm:$0xff]
        %v877 = vld [vmem:[%s4 + $0x28] sm:$0xff]
        %v878 = vld [vmem:[%s4 + $0x30] sm:$0xff]
        %v879 = vld [vmem:[%s4 + $0x38] sm:$0xff]
        %v880 = vld [vmem:[%s4 + $0x40] sm:$0xff]
        %v881 = vld [vmem:[%s4 + $0x48] sm:$0xff]
        %v882 = vld [vmem:[%s4 + $0x50] sm:$0xff]
        %v883 = vld [vmem:[%s4 + $0x58] sm:$0xff]
        %v884 = vld [vmem:[%s4 + $0x60] sm:$0xff]
        %v885 = vld [vmem:[%s4 + $0x68] sm:$0xff]
        %v886 = vld [vmem:[%s4 + $0x70] sm:$0xff]
        %v887 = vld [vmem:[%s4 + $0x78] sm:$0xff]
        %v888 = vand.u32 %v887, 4294901760
        %889 = vmatpush.msra.mxu0 %v888
        %v890 = vand.u32 %v886, 4294901760
        %891 = vmatpush.msra.mxu0 %v890
        %v892 = vand.u32 %v885, 4294901760
        %893 = vmatpush.msra.mxu0 %v892
        %v894 = vand.u32 %v884, 4294901760
        %895 = vmatpush.msra.mxu0 %v894
        %v896 = vand.u32 %v883, 4294901760
        %897 = vmatpush.msra.mxu0 %v896
        %v898 = vand.u32 %v882, 4294901760
        %899 = vmatpush.msra.mxu0 %v898
        %v900 = vand.u32 %v881, 4294901760
        %901 = vmatpush.msra.mxu0 %v900
        %v902 = vand.u32 %v880, 4294901760
        %903 = vmatpush.msra.mxu0 %v902
        %v904 = vand.u32 %v879, 4294901760
        %905 = vmatpush.msra.mxu0 %v904
        %v906 = vand.u32 %v878, 4294901760
        %907 = vmatpush.msra.mxu0 %v906
        %v908 = vand.u32 %v877, 4294901760
        %909 = vmatpush.msra.mxu0 %v908
        %v910 = vand.u32 %v876, 4294901760
        %911 = vmatpush.msra.mxu0 %v910
        %v912 = vand.u32 %v875, 4294901760
        %913 = vmatpush.msra.mxu0 %v912
        %v914 = vand.u32 %v874, 4294901760
        %915 = vmatpush.msra.mxu0 %v914
        %v916 = vand.u32 %v873, 4294901760
        %917 = vmatpush.msra.mxu0 %v916
        %v918 = vand.u32 %v872, 4294901760
        %919 = vmatpush.msra.mxu0 %v918
        %v920 = vand.u32 %v862, 4294901760
        %v921 = vsub.f32 %v862, %v920
        %v922 = vand.u32 %v921, 4294901760
        %v923 = vsub.f32 %v921, %v922
        %v924 = vand.u32 %v923, 4294901760
        %925 = vmatmul.f32.gmra.mxu0 %v924
        %v926 = vpop.f32.mrf.mxu0
        %v927 = vadd.f32 0.0, %v926
        %v928 = vand.u32 %v863, 4294901760
        %v929 = vsub.f32 %v863, %v928
        %v930 = vand.u32 %v929, 4294901760
        %v931 = vsub.f32 %v929, %v930
        %v932 = vand.u32 %v931, 4294901760
        %933 = vmatmul.f32.gmra.mxu0 %v932
        %v934 = vpop.f32.mrf.mxu0
        %v935 = vadd.f32 0.0, %v934
        %v936 = vand.u32 %v864, 4294901760
        %v937 = vsub.f32 %v864, %v936
        %v938 = vand.u32 %v937, 4294901760
        %v939 = vsub.f32 %v937, %v938
        %v940 = vand.u32 %v939, 4294901760
        %941 = vmatmul.f32.gmra.mxu0 %v940
        %v942 = vpop.f32.mrf.mxu0
        %v943 = vadd.f32 0.0, %v942
        %v944 = vand.u32 %v865, 4294901760
        %v945 = vsub.f32 %v865, %v944
        %v946 = vand.u32 %v945, 4294901760
        %v947 = vsub.f32 %v945, %v946
        %v948 = vand.u32 %v947, 4294901760
        %949 = vmatmul.f32.gmra.mxu0 %v948
        %v950 = vpop.f32.mrf.mxu0
        %v951 = vadd.f32 0.0, %v950
        %v952 = vand.u32 %v866, 4294901760
        %v953 = vsub.f32 %v866, %v952
        %v954 = vand.u32 %v953, 4294901760
        %v955 = vsub.f32 %v953, %v954
        %v956 = vand.u32 %v955, 4294901760
        %957 = vmatmul.f32.gmra.mxu0 %v956
        %v958 = vpop.f32.mrf.mxu0
        %v959 = vadd.f32 0.0, %v958
        %v960 = vand.u32 %v867, 4294901760
        %v961 = vsub.f32 %v867, %v960
        %v962 = vand.u32 %v961, 4294901760
        %v963 = vsub.f32 %v961, %v962
        %v964 = vand.u32 %v963, 4294901760
        %965 = vmatmul.f32.gmra.mxu0 %v964
        %v966 = vpop.f32.mrf.mxu0
        %v967 = vadd.f32 0.0, %v966
        %v968 = vand.u32 %v868, 4294901760
        %v969 = vsub.f32 %v868, %v968
        %v970 = vand.u32 %v969, 4294901760
        %v971 = vsub.f32 %v969, %v970
        %v972 = vand.u32 %v971, 4294901760
        %973 = vmatmul.f32.gmra.mxu0 %v972
        %v974 = vpop.f32.mrf.mxu0
        %v975 = vadd.f32 0.0, %v974
        %v976 = vand.u32 %v869, 4294901760
        %v977 = vsub.f32 %v869, %v976
        %v978 = vand.u32 %v977, 4294901760
        %v979 = vsub.f32 %v977, %v978
        %v980 = vand.u32 %v979, 4294901760
        %981 = vmatmul.f32.gmra.mxu0 %v980
        %v982 = vpop.f32.mrf.mxu0
        %v983 = vadd.f32 0.0, %v982
        %984 = vdwg.mxu0
        %v985 = vand.u32 %v887, 4294901760
        %v986 = vsub.f32 %v887, %v985
        %v987 = vand.u32 %v986, 4294901760
        %v988 = vsub.f32 %v986, %v987
        %v989 = vand.u32 %v988, 4294901760
        %990 = vmatpush.msra.mxu0 %v989
        %v991 = vand.u32 %v886, 4294901760
        %v992 = vsub.f32 %v886, %v991
        %v993 = vand.u32 %v992, 4294901760
        %v994 = vsub.f32 %v992, %v993
        %v995 = vand.u32 %v994, 4294901760
        %996 = vmatpush.msra.mxu0 %v995
        %v997 = vand.u32 %v885, 4294901760
        %v998 = vsub.f32 %v885, %v997
        %v999 = vand.u32 %v998, 4294901760
        %v1000 = vsub.f32 %v998, %v999
        %v1001 = vand.u32 %v1000, 4294901760
        %1002 = vmatpush.msra.mxu0 %v1001
        %v1003 = vand.u32 %v884, 4294901760
        %v1004 = vsub.f32 %v884, %v1003
        %v1005 = vand.u32 %v1004, 4294901760
        %v1006 = vsub.f32 %v1004, %v1005
        %v1007 = vand.u32 %v1006, 4294901760
        %1008 = vmatpush.msra.mxu0 %v1007
        %v1009 = vand.u32 %v883, 4294901760
        %v1010 = vsub.f32 %v883, %v1009
        %v1011 = vand.u32 %v1010, 4294901760
        %v1012 = vsub.f32 %v1010, %v1011
        %v1013 = vand.u32 %v1012, 4294901760
        %1014 = vmatpush.msra.mxu0 %v1013
        %v1015 = vand.u32 %v882, 4294901760
        %v1016 = vsub.f32 %v882, %v1015
        %v1017 = vand.u32 %v1016, 4294901760
        %v1018 = vsub.f32 %v1016, %v1017
        %v1019 = vand.u32 %v1018, 4294901760
        %1020 = vmatpush.msra.mxu0 %v1019
        %v1021 = vand.u32 %v881, 4294901760
        %v1022 = vsub.f32 %v881, %v1021
        %v1023 = vand.u32 %v1022, 4294901760
        %v1024 = vsub.f32 %v1022, %v1023
        %v1025 = vand.u32 %v1024, 4294901760
        %1026 = vmatpush.msra.mxu0 %v1025
        %v1027 = vand.u32 %v880, 4294901760
        %v1028 = vsub.f32 %v880, %v1027
        %v1029 = vand.u32 %v1028, 4294901760
        %v1030 = vsub.f32 %v1028, %v1029
        %v1031 = vand.u32 %v1030, 4294901760
        %1032 = vmatpush.msra.mxu0 %v1031
        %v1033 = vand.u32 %v879, 4294901760
        %v1034 = vsub.f32 %v879, %v1033
        %v1035 = vand.u32 %v1034, 4294901760
        %v1036 = vsub.f32 %v1034, %v1035
        %v1037 = vand.u32 %v1036, 4294901760
        %1038 = vmatpush.msra.mxu0 %v1037
        %v1039 = vand.u32 %v878, 4294901760
        %v1040 = vsub.f32 %v878, %v1039
        %v1041 = vand.u32 %v1040, 4294901760
        %v1042 = vsub.f32 %v1040, %v1041
        %v1043 = vand.u32 %v1042, 4294901760
        %1044 = vmatpush.msra.mxu0 %v1043
        %v1045 = vand.u32 %v877, 4294901760
        %v1046 = vsub.f32 %v877, %v1045
        %v1047 = vand.u32 %v1046, 4294901760
        %v1048 = vsub.f32 %v1046, %v1047
        %v1049 = vand.u32 %v1048, 4294901760
        %1050 = vmatpush.msra.mxu0 %v1049
        %v1051 = vand.u32 %v876, 4294901760
        %v1052 = vsub.f32 %v876, %v1051
        %v1053 = vand.u32 %v1052, 4294901760
        %v1054 = vsub.f32 %v1052, %v1053
        %v1055 = vand.u32 %v1054, 4294901760
        %1056 = vmatpush.msra.mxu0 %v1055
        %v1057 = vand.u32 %v875, 4294901760
        %v1058 = vsub.f32 %v875, %v1057
        %v1059 = vand.u32 %v1058, 4294901760
        %v1060 = vsub.f32 %v1058, %v1059
        %v1061 = vand.u32 %v1060, 4294901760
        %1062 = vmatpush.msra.mxu0 %v1061
        %v1063 = vand.u32 %v874, 4294901760
        %v1064 = vsub.f32 %v874, %v1063
        %v1065 = vand.u32 %v1064, 4294901760
        %v1066 = vsub.f32 %v1064, %v1065
        %v1067 = vand.u32 %v1066, 4294901760
        %1068 = vmatpush.msra.mxu0 %v1067
        %v1069 = vand.u32 %v873, 4294901760
        %v1070 = vsub.f32 %v873, %v1069
        %v1071 = vand.u32 %v1070, 4294901760
        %v1072 = vsub.f32 %v1070, %v1071
        %v1073 = vand.u32 %v1072, 4294901760
        %1074 = vmatpush.msra.mxu0 %v1073
        %v1075 = vand.u32 %v872, 4294901760
        %v1076 = vsub.f32 %v872, %v1075
        %v1077 = vand.u32 %v1076, 4294901760
        %v1078 = vsub.f32 %v1076, %v1077
        %v1079 = vand.u32 %v1078, 4294901760
        %1080 = vmatpush.msra.mxu0 %v1079
        %v1081 = vand.u32 %v862, 4294901760
        %1082 = vmatmul.f32.gmra.mxu0 %v1081
        %v1083 = vpop.f32.mrf.mxu0
        %v1084 = vadd.f32 %v927, %v1083
        %v1085 = vand.u32 %v863, 4294901760
        %1086 = vmatmul.f32.gmra.mxu0 %v1085
        %v1087 = vpop.f32.mrf.mxu0
        %v1088 = vadd.f32 %v935, %v1087
        %v1089 = vand.u32 %v864, 4294901760
        %1090 = vmatmul.f32.gmra.mxu0 %v1089
        %v1091 = vpop.f32.mrf.mxu0
        %v1092 = vadd.f32 %v943, %v1091
        %v1093 = vand.u32 %v865, 4294901760
        %1094 = vmatmul.f32.gmra.mxu0 %v1093
        %v1095 = vpop.f32.mrf.mxu0
        %v1096 = vadd.f32 %v951, %v1095
        %v1097 = vand.u32 %v866, 4294901760
        %1098 = vmatmul.f32.gmra.mxu0 %v1097
        %v1099 = vpop.f32.mrf.mxu0
        %v1100 = vadd.f32 %v959, %v1099
        %v1101 = vand.u32 %v867, 4294901760
        %1102 = vmatmul.f32.gmra.mxu0 %v1101
        %v1103 = vpop.f32.mrf.mxu0
        %v1104 = vadd.f32 %v967, %v1103
        %v1105 = vand.u32 %v868, 4294901760
        %1106 = vmatmul.f32.gmra.mxu0 %v1105
        %v1107 = vpop.f32.mrf.mxu0
        %v1108 = vadd.f32 %v975, %v1107
        %v1109 = vand.u32 %v869, 4294901760
        %1110 = vmatmul.f32.gmra.mxu0 %v1109
        %v1111 = vpop.f32.mrf.mxu0
        %v1112 = vadd.f32 %v983, %v1111
        %1113 = vdwg.mxu0
        %v1114 = vand.u32 %v887, 4294901760
        %v1115 = vsub.f32 %v887, %v1114
        %1116 = vmatpush.msra.mxu0 %v1115
        %v1117 = vand.u32 %v886, 4294901760
        %v1118 = vsub.f32 %v886, %v1117
        %1119 = vmatpush.msra.mxu0 %v1118
        %v1120 = vand.u32 %v885, 4294901760
        %v1121 = vsub.f32 %v885, %v1120
        %1122 = vmatpush.msra.mxu0 %v1121
        %v1123 = vand.u32 %v884, 4294901760
        %v1124 = vsub.f32 %v884, %v1123
        %1125 = vmatpush.msra.mxu0 %v1124
        %v1126 = vand.u32 %v883, 4294901760
        %v1127 = vsub.f32 %v883, %v1126
        %1128 = vmatpush.msra.mxu0 %v1127
        %v1129 = vand.u32 %v882, 4294901760
        %v1130 = vsub.f32 %v882, %v1129
        %1131 = vmatpush.msra.mxu0 %v1130
        %v1132 = vand.u32 %v881, 4294901760
        %v1133 = vsub.f32 %v881, %v1132
        %1134 = vmatpush.msra.mxu0 %v1133
        %v1135 = vand.u32 %v880, 4294901760
        %v1136 = vsub.f32 %v880, %v1135
        %1137 = vmatpush.msra.mxu0 %v1136
        %v1138 = vand.u32 %v879, 4294901760
        %v1139 = vsub.f32 %v879, %v1138
        %1140 = vmatpush.msra.mxu0 %v1139
        %v1141 = vand.u32 %v878, 4294901760
        %v1142 = vsub.f32 %v878, %v1141
        %1143 = vmatpush.msra.mxu0 %v1142
        %v1144 = vand.u32 %v877, 4294901760
        %v1145 = vsub.f32 %v877, %v1144
        %1146 = vmatpush.msra.mxu0 %v1145
        %v1147 = vand.u32 %v876, 4294901760
        %v1148 = vsub.f32 %v876, %v1147
        %1149 = vmatpush.msra.mxu0 %v1148
        %v1150 = vand.u32 %v875, 4294901760
        %v1151 = vsub.f32 %v875, %v1150
        %1152 = vmatpush.msra.mxu0 %v1151
        %v1153 = vand.u32 %v874, 4294901760
        %v1154 = vsub.f32 %v874, %v1153
        %1155 = vmatpush.msra.mxu0 %v1154
        %v1156 = vand.u32 %v873, 4294901760
        %v1157 = vsub.f32 %v873, %v1156
        %1158 = vmatpush.msra.mxu0 %v1157
        %v1159 = vand.u32 %v872, 4294901760
        %v1160 = vsub.f32 %v872, %v1159
        %1161 = vmatpush.msra.mxu0 %v1160
        %v1162 = vand.u32 %v862, 4294901760
        %v1163 = vsub.f32 %v862, %v1162
        %1164 = vmatmul.f32.gmra.mxu0 %v1163
        %v1165 = vpop.f32.mrf.mxu0
        %v1166 = vadd.f32 %v1084, %v1165
        %v1167 = vand.u32 %v863, 4294901760
        %v1168 = vsub.f32 %v863, %v1167
        %1169 = vmatmul.f32.gmra.mxu0 %v1168
        %v1170 = vpop.f32.mrf.mxu0
        %v1171 = vadd.f32 %v1088, %v1170
        %v1172 = vand.u32 %v864, 4294901760
        %v1173 = vsub.f32 %v864, %v1172
        %1174 = vmatmul.f32.gmra.mxu0 %v1173
        %v1175 = vpop.f32.mrf.mxu0
        %v1176 = vadd.f32 %v1092, %v1175
        %v1177 = vand.u32 %v865, 4294901760
        %v1178 = vsub.f32 %v865, %v1177
        %1179 = vmatmul.f32.gmra.mxu0 %v1178
        %v1180 = vpop.f32.mrf.mxu0
        %v1181 = vadd.f32 %v1096, %v1180
        %v1182 = vand.u32 %v866, 4294901760
        %v1183 = vsub.f32 %v866, %v1182
        %1184 = vmatmul.f32.gmra.mxu0 %v1183
        %v1185 = vpop.f32.mrf.mxu0
        %v1186 = vadd.f32 %v1100, %v1185
        %v1187 = vand.u32 %v867, 4294901760
        %v1188 = vsub.f32 %v867, %v1187
        %1189 = vmatmul.f32.gmra.mxu0 %v1188
        %v1190 = vpop.f32.mrf.mxu0
        %v1191 = vadd.f32 %v1104, %v1190
        %v1192 = vand.u32 %v868, 4294901760
        %v1193 = vsub.f32 %v868, %v1192
        %1194 = vmatmul.f32.gmra.mxu0 %v1193
        %v1195 = vpop.f32.mrf.mxu0
        %v1196 = vadd.f32 %v1108, %v1195
        %v1197 = vand.u32 %v869, 4294901760
        %v1198 = vsub.f32 %v869, %v1197
        %1199 = vmatmul.f32.gmra.mxu0 %v1198
        %v1200 = vpop.f32.mrf.mxu0
        %v1201 = vadd.f32 %v1112, %v1200
        %1202 = vdwg.mxu0
        %v1203 = vand.u32 %v887, 4294901760
        %1204 = vmatpush.msra.mxu0 %v1203
        %v1205 = vand.u32 %v886, 4294901760
        %1206 = vmatpush.msra.mxu0 %v1205
        %v1207 = vand.u32 %v885, 4294901760
        %1208 = vmatpush.msra.mxu0 %v1207
        %v1209 = vand.u32 %v884, 4294901760
        %1210 = vmatpush.msra.mxu0 %v1209
        %v1211 = vand.u32 %v883, 4294901760
        %1212 = vmatpush.msra.mxu0 %v1211
        %v1213 = vand.u32 %v882, 4294901760
        %1214 = vmatpush.msra.mxu0 %v1213
        %v1215 = vand.u32 %v881, 4294901760
        %1216 = vmatpush.msra.mxu0 %v1215
        %v1217 = vand.u32 %v880, 4294901760
        %1218 = vmatpush.msra.mxu0 %v1217
        %v1219 = vand.u32 %v879, 4294901760
        %1220 = vmatpush.msra.mxu0 %v1219
        %v1221 = vand.u32 %v878, 4294901760
        %1222 = vmatpush.msra.mxu0 %v1221
        %v1223 = vand.u32 %v877, 4294901760
        %1224 = vmatpush.msra.mxu0 %v1223
        %v1225 = vand.u32 %v876, 4294901760
        %1226 = vmatpush.msra.mxu0 %v1225
        %v1227 = vand.u32 %v875, 4294901760
        %1228 = vmatpush.msra.mxu0 %v1227
        %v1229 = vand.u32 %v874, 4294901760
        %1230 = vmatpush.msra.mxu0 %v1229
        %v1231 = vand.u32 %v873, 4294901760
        %1232 = vmatpush.msra.mxu0 %v1231
        %v1233 = vand.u32 %v872, 4294901760
        %1234 = vmatpush.msra.mxu0 %v1233
        %v1235 = vand.u32 %v862, 4294901760
        %v1236 = vsub.f32 %v862, %v1235
        %v1237 = vand.u32 %v1236, 4294901760
        %1238 = vmatmul.f32.gmra.mxu0 %v1237
        %v1239 = vpop.f32.mrf.mxu0
        %v1240 = vadd.f32 %v1166, %v1239
        %v1241 = vand.u32 %v863, 4294901760
        %v1242 = vsub.f32 %v863, %v1241
        %v1243 = vand.u32 %v1242, 4294901760
        %1244 = vmatmul.f32.gmra.mxu0 %v1243
        %v1245 = vpop.f32.mrf.mxu0
        %v1246 = vadd.f32 %v1171, %v1245
        %v1247 = vand.u32 %v864, 4294901760
        %v1248 = vsub.f32 %v864, %v1247
        %v1249 = vand.u32 %v1248, 4294901760
        %1250 = vmatmul.f32.gmra.mxu0 %v1249
        %v1251 = vpop.f32.mrf.mxu0
        %v1252 = vadd.f32 %v1176, %v1251
        %v1253 = vand.u32 %v865, 4294901760
        %v1254 = vsub.f32 %v865, %v1253
        %v1255 = vand.u32 %v1254, 4294901760
        %1256 = vmatmul.f32.gmra.mxu0 %v1255
        %v1257 = vpop.f32.mrf.mxu0
        %v1258 = vadd.f32 %v1181, %v1257
        %v1259 = vand.u32 %v866, 4294901760
        %v1260 = vsub.f32 %v866, %v1259
        %v1261 = vand.u32 %v1260, 4294901760
        %1262 = vmatmul.f32.gmra.mxu0 %v1261
        %v1263 = vpop.f32.mrf.mxu0
        %v1264 = vadd.f32 %v1186, %v1263
        %v1265 = vand.u32 %v867, 4294901760
        %v1266 = vsub.f32 %v867, %v1265
        %v1267 = vand.u32 %v1266, 4294901760
        %1268 = vmatmul.f32.gmra.mxu0 %v1267
        %v1269 = vpop.f32.mrf.mxu0
        %v1270 = vadd.f32 %v1191, %v1269
        %v1271 = vand.u32 %v868, 4294901760
        %v1272 = vsub.f32 %v868, %v1271
        %v1273 = vand.u32 %v1272, 4294901760
        %1274 = vmatmul.f32.gmra.mxu0 %v1273
        %v1275 = vpop.f32.mrf.mxu0
        %v1276 = vadd.f32 %v1196, %v1275
        %v1277 = vand.u32 %v869, 4294901760
        %v1278 = vsub.f32 %v869, %v1277
        %v1279 = vand.u32 %v1278, 4294901760
        %1280 = vmatmul.f32.gmra.mxu0 %v1279
        %v1281 = vpop.f32.mrf.mxu0
        %v1282 = vadd.f32 %v1201, %v1281
        %1283 = vdwg.mxu0
        %v1284 = vand.u32 %v887, 4294901760
        %v1285 = vsub.f32 %v887, %v1284
        %v1286 = vand.u32 %v1285, 4294901760
        %1287 = vmatpush.msra.mxu0 %v1286
        %v1288 = vand.u32 %v886, 4294901760
        %v1289 = vsub.f32 %v886, %v1288
        %v1290 = vand.u32 %v1289, 4294901760
        %1291 = vmatpush.msra.mxu0 %v1290
        %v1292 = vand.u32 %v885, 4294901760
        %v1293 = vsub.f32 %v885, %v1292
        %v1294 = vand.u32 %v1293, 4294901760
        %1295 = vmatpush.msra.mxu0 %v1294
        %v1296 = vand.u32 %v884, 4294901760
        %v1297 = vsub.f32 %v884, %v1296
        %v1298 = vand.u32 %v1297, 4294901760
        %1299 = vmatpush.msra.mxu0 %v1298
        %v1300 = vand.u32 %v883, 4294901760
        %v1301 = vsub.f32 %v883, %v1300
        %v1302 = vand.u32 %v1301, 4294901760
        %1303 = vmatpush.msra.mxu0 %v1302
        %v1304 = vand.u32 %v882, 4294901760
        %v1305 = vsub.f32 %v882, %v1304
        %v1306 = vand.u32 %v1305, 4294901760
        %1307 = vmatpush.msra.mxu0 %v1306
        %v1308 = vand.u32 %v881, 4294901760
        %v1309 = vsub.f32 %v881, %v1308
        %v1310 = vand.u32 %v1309, 4294901760
        %1311 = vmatpush.msra.mxu0 %v1310
        %v1312 = vand.u32 %v880, 4294901760
        %v1313 = vsub.f32 %v880, %v1312
        %v1314 = vand.u32 %v1313, 4294901760
        %1315 = vmatpush.msra.mxu0 %v1314
        %v1316 = vand.u32 %v879, 4294901760
        %v1317 = vsub.f32 %v879, %v1316
        %v1318 = vand.u32 %v1317, 4294901760
        %1319 = vmatpush.msra.mxu0 %v1318
        %v1320 = vand.u32 %v878, 4294901760
        %v1321 = vsub.f32 %v878, %v1320
        %v1322 = vand.u32 %v1321, 4294901760
        %1323 = vmatpush.msra.mxu0 %v1322
        %v1324 = vand.u32 %v877, 4294901760
        %v1325 = vsub.f32 %v877, %v1324
        %v1326 = vand.u32 %v1325, 4294901760
        %1327 = vmatpush.msra.mxu0 %v1326
        %v1328 = vand.u32 %v876, 4294901760
        %v1329 = vsub.f32 %v876, %v1328
        %v1330 = vand.u32 %v1329, 4294901760
        %1331 = vmatpush.msra.mxu0 %v1330
        %v1332 = vand.u32 %v875, 4294901760
        %v1333 = vsub.f32 %v875, %v1332
        %v1334 = vand.u32 %v1333, 4294901760
        %1335 = vmatpush.msra.mxu0 %v1334
        %v1336 = vand.u32 %v874, 4294901760
        %v1337 = vsub.f32 %v874, %v1336
        %v1338 = vand.u32 %v1337, 4294901760
        %1339 = vmatpush.msra.mxu0 %v1338
        %v1340 = vand.u32 %v873, 4294901760
        %v1341 = vsub.f32 %v873, %v1340
        %v1342 = vand.u32 %v1341, 4294901760
        %1343 = vmatpush.msra.mxu0 %v1342
        %v1344 = vand.u32 %v872, 4294901760
        %v1345 = vsub.f32 %v872, %v1344
        %v1346 = vand.u32 %v1345, 4294901760
        %1347 = vmatpush.msra.mxu0 %v1346
        %v1348 = vand.u32 %v862, 4294901760
        %1349 = vmatmul.f32.gmra.mxu0 %v1348
        %v1350 = vpop.f32.mrf.mxu0
        %v1351 = vadd.f32 %v1240, %v1350
        %v1352 = vand.u32 %v863, 4294901760
        %1353 = vmatmul.f32.gmra.mxu0 %v1352
        %v1354 = vpop.f32.mrf.mxu0
        %v1355 = vadd.f32 %v1246, %v1354
        %v1356 = vand.u32 %v864, 4294901760
        %1357 = vmatmul.f32.gmra.mxu0 %v1356
        %v1358 = vpop.f32.mrf.mxu0
        %v1359 = vadd.f32 %v1252, %v1358
        %v1360 = vand.u32 %v865, 4294901760
        %1361 = vmatmul.f32.gmra.mxu0 %v1360
        %v1362 = vpop.f32.mrf.mxu0
        %v1363 = vadd.f32 %v1258, %v1362
        %v1364 = vand.u32 %v866, 4294901760
        %1365 = vmatmul.f32.gmra.mxu0 %v1364
        %v1366 = vpop.f32.mrf.mxu0
        %v1367 = vadd.f32 %v1264, %v1366
        %v1368 = vand.u32 %v867, 4294901760
        %1369 = vmatmul.f32.gmra.mxu0 %v1368
        %v1370 = vpop.f32.mrf.mxu0
        %v1371 = vadd.f32 %v1270, %v1370
        %v1372 = vand.u32 %v868, 4294901760
        %1373 = vmatmul.f32.gmra.mxu0 %v1372
        %v1374 = vpop.f32.mrf.mxu0
        %v1375 = vadd.f32 %v1276, %v1374
        %v1376 = vand.u32 %v869, 4294901760
        %1377 = vmatmul.f32.gmra.mxu0 %v1376
        %v1378 = vpop.f32.mrf.mxu0
        %v1379 = vadd.f32 %v1282, %v1378
        %1380 = vdwg.mxu0
        %v1381 = vand.u32 %v887, 4294901760
        %1382 = vmatpush.msra.mxu0 %v1381
        %v1383 = vand.u32 %v886, 4294901760
        %1384 = vmatpush.msra.mxu0 %v1383
        %v1385 = vand.u32 %v885, 4294901760
        %1386 = vmatpush.msra.mxu0 %v1385
        %v1387 = vand.u32 %v884, 4294901760
        %1388 = vmatpush.msra.mxu0 %v1387
        %v1389 = vand.u32 %v883, 4294901760
        %1390 = vmatpush.msra.mxu0 %v1389
        %v1391 = vand.u32 %v882, 4294901760
        %1392 = vmatpush.msra.mxu0 %v1391
        %v1393 = vand.u32 %v881, 4294901760
        %1394 = vmatpush.msra.mxu0 %v1393
        %v1395 = vand.u32 %v880, 4294901760
        %1396 = vmatpush.msra.mxu0 %v1395
        %v1397 = vand.u32 %v879, 4294901760
        %1398 = vmatpush.msra.mxu0 %v1397
        %v1399 = vand.u32 %v878, 4294901760
        %1400 = vmatpush.msra.mxu0 %v1399
        %v1401 = vand.u32 %v877, 4294901760
        %1402 = vmatpush.msra.mxu0 %v1401
        %v1403 = vand.u32 %v876, 4294901760
        %1404 = vmatpush.msra.mxu0 %v1403
        %v1405 = vand.u32 %v875, 4294901760
        %1406 = vmatpush.msra.mxu0 %v1405
        %v1407 = vand.u32 %v874, 4294901760
        %1408 = vmatpush.msra.mxu0 %v1407
        %v1409 = vand.u32 %v873, 4294901760
        %1410 = vmatpush.msra.mxu0 %v1409
        %v1411 = vand.u32 %v872, 4294901760
        %1412 = vmatpush.msra.mxu0 %v1411
        %v1413 = vand.u32 %v862, 4294901760
        %1414 = vmatmul.f32.gmra.mxu0 %v1413
        %v1415 = vpop.f32.mrf.mxu0
        %v1416 = vadd.f32 %v1351, %v1415
        %v1417 = vand.u32 %v863, 4294901760
        %1418 = vmatmul.f32.gmra.mxu0 %v1417
        %v1419 = vpop.f32.mrf.mxu0
        %v1420 = vadd.f32 %v1355, %v1419
        %v1421 = vand.u32 %v864, 4294901760
        %1422 = vmatmul.f32.gmra.mxu0 %v1421
        %v1423 = vpop.f32.mrf.mxu0
        %v1424 = vadd.f32 %v1359, %v1423
        %v1425 = vand.u32 %v865, 4294901760
        %1426 = vmatmul.f32.gmra.mxu0 %v1425
        %v1427 = vpop.f32.mrf.mxu0
        %v1428 = vadd.f32 %v1363, %v1427
        %v1429 = vand.u32 %v866, 4294901760
        %1430 = vmatmul.f32.gmra.mxu0 %v1429
        %v1431 = vpop.f32.mrf.mxu0
        %v1432 = vadd.f32 %v1367, %v1431
        %v1433 = vand.u32 %v867, 4294901760
        %1434 = vmatmul.f32.gmra.mxu0 %v1433
        %v1435 = vpop.f32.mrf.mxu0
        %v1436 = vadd.f32 %v1371, %v1435
        %v1437 = vand.u32 %v868, 4294901760
        %1438 = vmatmul.f32.gmra.mxu0 %v1437
        %v1439 = vpop.f32.mrf.mxu0
        %v1440 = vadd.f32 %v1375, %v1439
        %v1441 = vand.u32 %v869, 4294901760
        %1442 = vmatmul.f32.gmra.mxu0 %v1441
        %v1443 = vpop.f32.mrf.mxu0
        %v1444 = vadd.f32 %v1379, %v1443
        %1445 = vdwg.mxu0
        %1454 = vrot.lane.b32.xlu0 %v1416, 127
        %v1455 = vpop.permute.xlu0 %1454
        %1456 = vrot.lane.b32.xlu0 %v1420, 127
        %v1457 = vpop.permute.xlu0 %1456
        %1458 = vrot.lane.b32.xlu0 %v1424, 127
        %v1459 = vpop.permute.xlu0 %1458
        %1460 = vrot.lane.b32.xlu0 %v1428, 127
        %v1461 = vpop.permute.xlu0 %1460
        %1462 = vrot.lane.b32.xlu0 %v1432, 127
        %v1463 = vpop.permute.xlu0 %1462
        %1464 = vrot.lane.b32.xlu0 %v1436, 127
        %v1465 = vpop.permute.xlu0 %1464
        %1466 = vrot.lane.b32.xlu0 %v1440, 127
        %v1467 = vpop.permute.xlu0 %1466
        %1468 = vrot.lane.b32.xlu0 %v1444, 127
        %v1469 = vpop.permute.xlu0 %1468
        %v1478 = vlaneseq
        %v1479 = vshrl.u32 %v1478, 7
        %v1480 = vadd.s32 %v1479, 8
        %v1481 = vadd.s32 %v1479, 16
        %v1482 = vadd.s32 %v1479, 24
        %v1483 = vadd.s32 %v1479, 32
        %v1484 = vadd.s32 %v1479, 40
        %v1485 = vadd.s32 %v1479, 48
        %v1486 = vadd.s32 %v1479, 56
        %v1487 = vadd.s32 %v1479, 64
        %v1488 = vadd.s32 %v1479, 72
        %v1489 = vadd.s32 %v1479, 80
        %v1490 = vadd.s32 %v1479, 88
        %v1491 = vadd.s32 %v1479, 96
        %v1492 = vadd.s32 %v1479, 104
        %v1493 = vadd.s32 %v1479, 112
        %v1494 = vadd.s32 %v1479, 120
        %vm1495 = vcmp.lt.s32.totalorder %v1479, 64
        %vm1496 = vcmp.lt.s32.totalorder %v1480, 64
        %vm1497 = vcmp.lt.s32.totalorder %v1481, 64
        %vm1498 = vcmp.lt.s32.totalorder %v1482, 64
        %vm1499 = vcmp.lt.s32.totalorder %v1483, 64
        %vm1500 = vcmp.lt.s32.totalorder %v1484, 64
        %vm1501 = vcmp.lt.s32.totalorder %v1485, 64
        %vm1502 = vcmp.lt.s32.totalorder %v1486, 64
        %vm1503 = vcmp.lt.s32.totalorder %v1487, 64
        %vm1504 = vcmp.lt.s32.totalorder %v1488, 64
        %vm1505 = vcmp.lt.s32.totalorder %v1489, 64
        %vm1506 = vcmp.lt.s32.totalorder %v1490, 64
        %vm1507 = vcmp.lt.s32.totalorder %v1491, 64
        %vm1508 = vcmp.lt.s32.totalorder %v1492, 64
        %vm1509 = vcmp.lt.s32.totalorder %v1493, 64
        %vm1510 = vcmp.lt.s32.totalorder %v1494, 64
        %v1511 = vadd.s32 %v871, 64
        %v1512 = vperm.slane %v870, 0
        %v1513 = vperm.slane %v1511, 0
        %v1514 = vsel %vm1495, %v1512, %v1513
        %v1515 = vsel %vm1496, %v1512, %v1513
        %v1516 = vsel %vm1497, %v1512, %v1513
        %v1517 = vsel %vm1498, %v1512, %v1513
        %v1518 = vsel %vm1499, %v1512, %v1513
        %v1519 = vsel %vm1500, %v1512, %v1513
        %v1520 = vsel %vm1501, %v1512, %v1513
        %v1521 = vsel %vm1502, %v1512, %v1513
        %v1522 = vsel %vm1503, %v1512, %v1513
        %v1523 = vsel %vm1504, %v1512, %v1513
        %v1524 = vsel %vm1505, %v1512, %v1513
        %v1525 = vsel %vm1506, %v1512, %v1513
        %v1526 = vsel %vm1507, %v1512, %v1513
        %v1527 = vsel %vm1508, %v1512, %v1513
        %v1528 = vsel %vm1509, %v1512, %v1513
        %v1529 = vsel %vm1510, %v1512, %v1513
        %vm1530 = vcmp.eq.s32.totalorder %v1479, %v1514
        %vm1531 = vcmp.eq.s32.totalorder %v1480, %v1515
        %vm1532 = vcmp.eq.s32.totalorder %v1481, %v1516
        %vm1533 = vcmp.eq.s32.totalorder %v1482, %v1517
        %vm1534 = vcmp.eq.s32.totalorder %v1483, %v1518
        %vm1535 = vcmp.eq.s32.totalorder %v1484, %v1519
        %vm1536 = vcmp.eq.s32.totalorder %v1485, %v1520
        %vm1537 = vcmp.eq.s32.totalorder %v1486, %v1521
        %vm1538 = vcmp.eq.s32.totalorder %v1487, %v1522
        %vm1539 = vcmp.eq.s32.totalorder %v1488, %v1523
        %vm1540 = vcmp.eq.s32.totalorder %v1489, %v1524
        %vm1541 = vcmp.eq.s32.totalorder %v1490, %v1525
        %vm1542 = vcmp.eq.s32.totalorder %v1491, %v1526
        %vm1543 = vcmp.eq.s32.totalorder %v1492, %v1527
        %vm1544 = vcmp.eq.s32.totalorder %v1493, %v1528
        %vm1545 = vcmp.eq.s32.totalorder %v1494, %v1529
        %v1546 = vsel %vm1530, 1, 0
        %v1547 = vsel %vm1531, 1, 0
        %v1548 = vsel %vm1532, 1, 0
        %v1549 = vsel %vm1533, 1, 0
        %v1550 = vsel %vm1534, 1, 0
        %v1551 = vsel %vm1535, 1, 0
        %v1552 = vsel %vm1536, 1, 0
        %v1553 = vsel %vm1537, 1, 0
        %v1554 = vsel %vm1538, 1, 0
        %v1555 = vsel %vm1539, 1, 0
        %v1556 = vsel %vm1540, 1, 0
        %v1557 = vsel %vm1541, 1, 0
        %v1558 = vsel %vm1542, 1, 0
        %v1559 = vsel %vm1543, 1, 0
        %v1560 = vsel %vm1544, 1, 0
        %v1561 = vsel %vm1545, 1, 0
        %v1562 = vcvt.s32.f32 %v1546
        %v1563 = vcvt.s32.f32 %v1547
        %v1564 = vcvt.s32.f32 %v1548
        %v1565 = vcvt.s32.f32 %v1549
        %v1566 = vcvt.s32.f32 %v1550
        %v1567 = vcvt.s32.f32 %v1551
        %v1568 = vcvt.s32.f32 %v1552
        %v1569 = vcvt.s32.f32 %v1553
        %v1570 = vcvt.s32.f32 %v1554
        %v1571 = vcvt.s32.f32 %v1555
        %v1572 = vcvt.s32.f32 %v1556
        %v1573 = vcvt.s32.f32 %v1557
        %v1574 = vcvt.s32.f32 %v1558
        %v1575 = vcvt.s32.f32 %v1559
        %v1576 = vcvt.s32.f32 %v1560
        %v1577 = vcvt.s32.f32 %v1561
        %1578 = vxpose.xlu0.b32.start [1/16] %v1416, 128
        %1579 = vxpose.xlu0.b32.cont [2/16] %v1420, 128
        %1580 = vxpose.xlu0.b32.cont [3/16] %v1424, 128
        %1581 = vxpose.xlu0.b32.cont [4/16] %v1428, 128
        %1582 = vxpose.xlu0.b32.cont [5/16] %v1432, 128
        %1583 = vxpose.xlu0.b32.cont [6/16] %v1436, 128
        %1584 = vxpose.xlu0.b32.cont [7/16] %v1440, 128
        %1585 = vxpose.xlu0.b32.cont [8/16] %v1444, 128
        %1586 = vxpose.xlu0.b32.cont [9/16] %v1455, 128
        %1587 = vxpose.xlu0.b32.cont [10/16] %v1457, 128
        %1588 = vxpose.xlu0.b32.cont [11/16] %v1459, 128
        %1589 = vxpose.xlu0.b32.cont [12/16] %v1461, 128
        %1590 = vxpose.xlu0.b32.cont [13/16] %v1463, 128
        %1591 = vxpose.xlu0.b32.cont [14/16] %v1465, 128
        %1592 = vxpose.xlu0.b32.cont [15/16] %v1467, 128
        %1593 = vxpose.xlu0.b32.end [16/16] %v1469, 128
        %v1594 = vpop.trf.xlu0
        %v1595 = vpop.trf.xlu0
        %v1596 = vpop.trf.xlu0
        %v1597 = vpop.trf.xlu0
        %v1598 = vpop.trf.xlu0
        %v1599 = vpop.trf.xlu0
        %v1600 = vpop.trf.xlu0
        %v1601 = vpop.trf.xlu0
        %v1602 = vpop.trf.xlu0
        %v1603 = vpop.trf.xlu0
        %v1604 = vpop.trf.xlu0
        %v1605 = vpop.trf.xlu0
        %v1606 = vpop.trf.xlu0
        %v1607 = vpop.trf.xlu0
        %v1608 = vpop.trf.xlu0
        %v1609 = vpop.trf.xlu0
        %v1610 = vand.u32 %v1577, 4294901760
        %1611 = vmatpush.msra.mxu0 %v1610
        %v1612 = vand.u32 %v1576, 4294901760
        %1613 = vmatpush.msra.mxu0 %v1612
        %v1614 = vand.u32 %v1575, 4294901760
        %1615 = vmatpush.msra.mxu0 %v1614
        %v1616 = vand.u32 %v1574, 4294901760
        %1617 = vmatpush.msra.mxu0 %v1616
        %v1618 = vand.u32 %v1573, 4294901760
        %1619 = vmatpush.msra.mxu0 %v1618
        %v1620 = vand.u32 %v1572, 4294901760
        %1621 = vmatpush.msra.mxu0 %v1620
        %v1622 = vand.u32 %v1571, 4294901760
        %1623 = vmatpush.msra.mxu0 %v1622
        %v1624 = vand.u32 %v1570, 4294901760
        %1625 = vmatpush.msra.mxu0 %v1624
        %v1626 = vand.u32 %v1569, 4294901760
        %1627 = vmatpush.msra.mxu0 %v1626
        %v1628 = vand.u32 %v1568, 4294901760
        %1629 = vmatpush.msra.mxu0 %v1628
        %v1630 = vand.u32 %v1567, 4294901760
        %1631 = vmatpush.msra.mxu0 %v1630
        %v1632 = vand.u32 %v1566, 4294901760
        %1633 = vmatpush.msra.mxu0 %v1632
        %v1634 = vand.u32 %v1565, 4294901760
        %1635 = vmatpush.msra.mxu0 %v1634
        %v1636 = vand.u32 %v1564, 4294901760
        %1637 = vmatpush.msra.mxu0 %v1636
        %v1638 = vand.u32 %v1563, 4294901760
        %1639 = vmatpush.msra.mxu0 %v1638
        %v1640 = vand.u32 %v1562, 4294901760
        %1641 = vmatpush.msra.mxu0 %v1640
        %v1642 = vand.u32 %v1594, 4294901760
        %v1643 = vsub.f32 %v1594, %v1642
        %v1644 = vand.u32 %v1643, 4294901760
        %v1645 = vsub.f32 %v1643, %v1644
        %v1646 = vand.u32 %v1645, 4294901760
        %1647 = vmatmul.f32.gmra.mxu0 %v1646
        %v1648 = vpop.f32.mrf.mxu0
        %v1649 = vadd.f32 0.0, %v1648
        %1650 = vdwg.mxu0
        %v1651 = vand.u32 %v1577, 4294901760
        %v1652 = vsub.f32 %v1577, %v1651
        %v1653 = vand.u32 %v1652, 4294901760
        %v1654 = vsub.f32 %v1652, %v1653
        %v1655 = vand.u32 %v1654, 4294901760
        %1656 = vmatpush.msra.mxu0 %v1655
        %v1657 = vand.u32 %v1576, 4294901760
        %v1658 = vsub.f32 %v1576, %v1657
        %v1659 = vand.u32 %v1658, 4294901760
        %v1660 = vsub.f32 %v1658, %v1659
        %v1661 = vand.u32 %v1660, 4294901760
        %1662 = vmatpush.msra.mxu0 %v1661
        %v1663 = vand.u32 %v1575, 4294901760
        %v1664 = vsub.f32 %v1575, %v1663
        %v1665 = vand.u32 %v1664, 4294901760
        %v1666 = vsub.f32 %v1664, %v1665
        %v1667 = vand.u32 %v1666, 4294901760
        %1668 = vmatpush.msra.mxu0 %v1667
        %v1669 = vand.u32 %v1574, 4294901760
        %v1670 = vsub.f32 %v1574, %v1669
        %v1671 = vand.u32 %v1670, 4294901760
        %v1672 = vsub.f32 %v1670, %v1671
        %v1673 = vand.u32 %v1672, 4294901760
        %1674 = vmatpush.msra.mxu0 %v1673
        %v1675 = vand.u32 %v1573, 4294901760
        %v1676 = vsub.f32 %v1573, %v1675
        %v1677 = vand.u32 %v1676, 4294901760
        %v1678 = vsub.f32 %v1676, %v1677
        %v1679 = vand.u32 %v1678, 4294901760
        %1680 = vmatpush.msra.mxu0 %v1679
        %v1681 = vand.u32 %v1572, 4294901760
        %v1682 = vsub.f32 %v1572, %v1681
        %v1683 = vand.u32 %v1682, 4294901760
        %v1684 = vsub.f32 %v1682, %v1683
        %v1685 = vand.u32 %v1684, 4294901760
        %1686 = vmatpush.msra.mxu0 %v1685
        %v1687 = vand.u32 %v1571, 4294901760
        %v1688 = vsub.f32 %v1571, %v1687
        %v1689 = vand.u32 %v1688, 4294901760
        %v1690 = vsub.f32 %v1688, %v1689
        %v1691 = vand.u32 %v1690, 4294901760
        %1692 = vmatpush.msra.mxu0 %v1691
        %v1693 = vand.u32 %v1570, 4294901760
        %v1694 = vsub.f32 %v1570, %v1693
        %v1695 = vand.u32 %v1694, 4294901760
        %v1696 = vsub.f32 %v1694, %v1695
        %v1697 = vand.u32 %v1696, 4294901760
        %1698 = vmatpush.msra.mxu0 %v1697
        %v1699 = vand.u32 %v1569, 4294901760
        %v1700 = vsub.f32 %v1569, %v1699
        %v1701 = vand.u32 %v1700, 4294901760
        %v1702 = vsub.f32 %v1700, %v1701
        %v1703 = vand.u32 %v1702, 4294901760
        %1704 = vmatpush.msra.mxu0 %v1703
        %v1705 = vand.u32 %v1568, 4294901760
        %v1706 = vsub.f32 %v1568, %v1705
        %v1707 = vand.u32 %v1706, 4294901760
        %v1708 = vsub.f32 %v1706, %v1707
        %v1709 = vand.u32 %v1708, 4294901760
        %1710 = vmatpush.msra.mxu0 %v1709
        %v1711 = vand.u32 %v1567, 4294901760
        %v1712 = vsub.f32 %v1567, %v1711
        %v1713 = vand.u32 %v1712, 4294901760
        %v1714 = vsub.f32 %v1712, %v1713
        %v1715 = vand.u32 %v1714, 4294901760
        %1716 = vmatpush.msra.mxu0 %v1715
        %v1717 = vand.u32 %v1566, 4294901760
        %v1718 = vsub.f32 %v1566, %v1717
        %v1719 = vand.u32 %v1718, 4294901760
        %v1720 = vsub.f32 %v1718, %v1719
        %v1721 = vand.u32 %v1720, 4294901760
        %1722 = vmatpush.msra.mxu0 %v1721
        %v1723 = vand.u32 %v1565, 4294901760
        %v1724 = vsub.f32 %v1565, %v1723
        %v1725 = vand.u32 %v1724, 4294901760
        %v1726 = vsub.f32 %v1724, %v1725
        %v1727 = vand.u32 %v1726, 4294901760
        %1728 = vmatpush.msra.mxu0 %v1727
        %v1729 = vand.u32 %v1564, 4294901760
        %v1730 = vsub.f32 %v1564, %v1729
        %v1731 = vand.u32 %v1730, 4294901760
        %v1732 = vsub.f32 %v1730, %v1731
        %v1733 = vand.u32 %v1732, 4294901760
        %1734 = vmatpush.msra.mxu0 %v1733
        %v1735 = vand.u32 %v1563, 4294901760
        %v1736 = vsub.f32 %v1563, %v1735
        %v1737 = vand.u32 %v1736, 4294901760
        %v1738 = vsub.f32 %v1736, %v1737
        %v1739 = vand.u32 %v1738, 4294901760
        %1740 = vmatpush.msra.mxu0 %v1739
        %v1741 = vand.u32 %v1562, 4294901760
        %v1742 = vsub.f32 %v1562, %v1741
        %v1743 = vand.u32 %v1742, 4294901760
        %v1744 = vsub.f32 %v1742, %v1743
        %v1745 = vand.u32 %v1744, 4294901760
        %1746 = vmatpush.msra.mxu0 %v1745
        %v1747 = vand.u32 %v1594, 4294901760
        %1748 = vmatmul.f32.gmra.mxu0 %v1747
        %v1749 = vpop.f32.mrf.mxu0
        %v1750 = vadd.f32 %v1649, %v1749
        %1751 = vdwg.mxu0
        %v1752 = vand.u32 %v1577, 4294901760
        %v1753 = vsub.f32 %v1577, %v1752
        %1754 = vmatpush.msra.mxu0 %v1753
        %v1755 = vand.u32 %v1576, 4294901760
        %v1756 = vsub.f32 %v1576, %v1755
        %1757 = vmatpush.msra.mxu0 %v1756
        %v1758 = vand.u32 %v1575, 4294901760
        %v1759 = vsub.f32 %v1575, %v1758
        %1760 = vmatpush.msra.mxu0 %v1759
        %v1761 = vand.u32 %v1574, 4294901760
        %v1762 = vsub.f32 %v1574, %v1761
        %1763 = vmatpush.msra.mxu0 %v1762
        %v1764 = vand.u32 %v1573, 4294901760
        %v1765 = vsub.f32 %v1573, %v1764
        %1766 = vmatpush.msra.mxu0 %v1765
        %v1767 = vand.u32 %v1572, 4294901760
        %v1768 = vsub.f32 %v1572, %v1767
        %1769 = vmatpush.msra.mxu0 %v1768
        %v1770 = vand.u32 %v1571, 4294901760
        %v1771 = vsub.f32 %v1571, %v1770
        %1772 = vmatpush.msra.mxu0 %v1771
        %v1773 = vand.u32 %v1570, 4294901760
        %v1774 = vsub.f32 %v1570, %v1773
        %1775 = vmatpush.msra.mxu0 %v1774
        %v1776 = vand.u32 %v1569, 4294901760
        %v1777 = vsub.f32 %v1569, %v1776
        %1778 = vmatpush.msra.mxu0 %v1777
        %v1779 = vand.u32 %v1568, 4294901760
        %v1780 = vsub.f32 %v1568, %v1779
        %1781 = vmatpush.msra.mxu0 %v1780
        %v1782 = vand.u32 %v1567, 4294901760
        %v1783 = vsub.f32 %v1567, %v1782
        %1784 = vmatpush.msra.mxu0 %v1783
        %v1785 = vand.u32 %v1566, 4294901760
        %v1786 = vsub.f32 %v1566, %v1785
        %1787 = vmatpush.msra.mxu0 %v1786
        %v1788 = vand.u32 %v1565, 4294901760
        %v1789 = vsub.f32 %v1565, %v1788
        %1790 = vmatpush.msra.mxu0 %v1789
        %v1791 = vand.u32 %v1564, 4294901760
        %v1792 = vsub.f32 %v1564, %v1791
        %1793 = vmatpush.msra.mxu0 %v1792
        %v1794 = vand.u32 %v1563, 4294901760
        %v1795 = vsub.f32 %v1563, %v1794
        %1796 = vmatpush.msra.mxu0 %v1795
        %v1797 = vand.u32 %v1562, 4294901760
        %v1798 = vsub.f32 %v1562, %v1797
        %1799 = vmatpush.msra.mxu0 %v1798
        %v1800 = vand.u32 %v1594, 4294901760
        %v1801 = vsub.f32 %v1594, %v1800
        %1802 = vmatmul.f32.gmra.mxu0 %v1801
        %v1803 = vpop.f32.mrf.mxu0
        %v1804 = vadd.f32 %v1750, %v1803
        %1805 = vdwg.mxu0
        %v1806 = vand.u32 %v1577, 4294901760
        %1807 = vmatpush.msra.mxu0 %v1806
        %v1808 = vand.u32 %v1576, 4294901760
        %1809 = vmatpush.msra.mxu0 %v1808
        %v1810 = vand.u32 %v1575, 4294901760
        %1811 = vmatpush.msra.mxu0 %v1810
        %v1812 = vand.u32 %v1574, 4294901760
        %1813 = vmatpush.msra.mxu0 %v1812
        %v1814 = vand.u32 %v1573, 4294901760
        %1815 = vmatpush.msra.mxu0 %v1814
        %v1816 = vand.u32 %v1572, 4294901760
        %1817 = vmatpush.msra.mxu0 %v1816
        %v1818 = vand.u32 %v1571, 4294901760
        %1819 = vmatpush.msra.mxu0 %v1818
        %v1820 = vand.u32 %v1570, 4294901760
        %1821 = vmatpush.msra.mxu0 %v1820
        %v1822 = vand.u32 %v1569, 4294901760
        %1823 = vmatpush.msra.mxu0 %v1822
        %v1824 = vand.u32 %v1568, 4294901760
        %1825 = vmatpush.msra.mxu0 %v1824
        %v1826 = vand.u32 %v1567, 4294901760
        %1827 = vmatpush.msra.mxu0 %v1826
        %v1828 = vand.u32 %v1566, 4294901760
        %1829 = vmatpush.msra.mxu0 %v1828
        %v1830 = vand.u32 %v1565, 4294901760
        %1831 = vmatpush.msra.mxu0 %v1830
        %v1832 = vand.u32 %v1564, 4294901760
        %1833 = vmatpush.msra.mxu0 %v1832
        %v1834 = vand.u32 %v1563, 4294901760
        %1835 = vmatpush.msra.mxu0 %v1834
        %v1836 = vand.u32 %v1562, 4294901760
        %1837 = vmatpush.msra.mxu0 %v1836
        %v1838 = vand.u32 %v1594, 4294901760
        %v1839 = vsub.f32 %v1594, %v1838
        %v1840 = vand.u32 %v1839, 4294901760
        %1841 = vmatmul.f32.gmra.mxu0 %v1840
        %v1842 = vpop.f32.mrf.mxu0
        %v1843 = vadd.f32 %v1804, %v1842
        %1844 = vdwg.mxu0
        %v1845 = vand.u32 %v1577, 4294901760
        %v1846 = vsub.f32 %v1577, %v1845
        %v1847 = vand.u32 %v1846, 4294901760
        %1848 = vmatpush.msra.mxu0 %v1847
        %v1849 = vand.u32 %v1576, 4294901760
        %v1850 = vsub.f32 %v1576, %v1849
        %v1851 = vand.u32 %v1850, 4294901760
        %1852 = vmatpush.msra.mxu0 %v1851
        %v1853 = vand.u32 %v1575, 4294901760
        %v1854 = vsub.f32 %v1575, %v1853
        %v1855 = vand.u32 %v1854, 4294901760
        %1856 = vmatpush.msra.mxu0 %v1855
        %v1857 = vand.u32 %v1574, 4294901760
        %v1858 = vsub.f32 %v1574, %v1857
        %v1859 = vand.u32 %v1858, 4294901760
        %1860 = vmatpush.msra.mxu0 %v1859
        %v1861 = vand.u32 %v1573, 4294901760
        %v1862 = vsub.f32 %v1573, %v1861
        %v1863 = vand.u32 %v1862, 4294901760
        %1864 = vmatpush.msra.mxu0 %v1863
        %v1865 = vand.u32 %v1572, 4294901760
        %v1866 = vsub.f32 %v1572, %v1865
        %v1867 = vand.u32 %v1866, 4294901760
        %1868 = vmatpush.msra.mxu0 %v1867
        %v1869 = vand.u32 %v1571, 4294901760
        %v1870 = vsub.f32 %v1571, %v1869
        %v1871 = vand.u32 %v1870, 4294901760
        %1872 = vmatpush.msra.mxu0 %v1871
        %v1873 = vand.u32 %v1570, 4294901760
        %v1874 = vsub.f32 %v1570, %v1873
        %v1875 = vand.u32 %v1874, 4294901760
        %1876 = vmatpush.msra.mxu0 %v1875
        %v1877 = vand.u32 %v1569, 4294901760
        %v1878 = vsub.f32 %v1569, %v1877
        %v1879 = vand.u32 %v1878, 4294901760
        %1880 = vmatpush.msra.mxu0 %v1879
        %v1881 = vand.u32 %v1568, 4294901760
        %v1882 = vsub.f32 %v1568, %v1881
        %v1883 = vand.u32 %v1882, 4294901760
        %1884 = vmatpush.msra.mxu0 %v1883
        %v1885 = vand.u32 %v1567, 4294901760
        %v1886 = vsub.f32 %v1567, %v1885
        %v1887 = vand.u32 %v1886, 4294901760
        %1888 = vmatpush.msra.mxu0 %v1887
        %v1889 = vand.u32 %v1566, 4294901760
        %v1890 = vsub.f32 %v1566, %v1889
        %v1891 = vand.u32 %v1890, 4294901760
        %1892 = vmatpush.msra.mxu0 %v1891
        %v1893 = vand.u32 %v1565, 4294901760
        %v1894 = vsub.f32 %v1565, %v1893
        %v1895 = vand.u32 %v1894, 4294901760
        %1896 = vmatpush.msra.mxu0 %v1895
        %v1897 = vand.u32 %v1564, 4294901760
        %v1898 = vsub.f32 %v1564, %v1897
        %v1899 = vand.u32 %v1898, 4294901760
        %1900 = vmatpush.msra.mxu0 %v1899
        %v1901 = vand.u32 %v1563, 4294901760
        %v1902 = vsub.f32 %v1563, %v1901
        %v1903 = vand.u32 %v1902, 4294901760
        %1904 = vmatpush.msra.mxu0 %v1903
        %v1905 = vand.u32 %v1562, 4294901760
        %v1906 = vsub.f32 %v1562, %v1905
        %v1907 = vand.u32 %v1906, 4294901760
        %1908 = vmatpush.msra.mxu0 %v1907
        %v1909 = vand.u32 %v1594, 4294901760
        %1910 = vmatmul.f32.gmra.mxu0 %v1909
        %v1911 = vpop.f32.mrf.mxu0
        %v1912 = vadd.f32 %v1843, %v1911
        %1913 = vdwg.mxu0
        %v1914 = vand.u32 %v1577, 4294901760
        %1915 = vmatpush.msra.mxu0 %v1914
        %v1916 = vand.u32 %v1576, 4294901760
        %1917 = vmatpush.msra.mxu0 %v1916
        %v1918 = vand.u32 %v1575, 4294901760
        %1919 = vmatpush.msra.mxu0 %v1918
        %v1920 = vand.u32 %v1574, 4294901760
        %1921 = vmatpush.msra.mxu0 %v1920
        %v1922 = vand.u32 %v1573, 4294901760
        %1923 = vmatpush.msra.mxu0 %v1922
        %v1924 = vand.u32 %v1572, 4294901760
        %1925 = vmatpush.msra.mxu0 %v1924
        %v1926 = vand.u32 %v1571, 4294901760
        %1927 = vmatpush.msra.mxu0 %v1926
        %v1928 = vand.u32 %v1570, 4294901760
        %1929 = vmatpush.msra.mxu0 %v1928
        %v1930 = vand.u32 %v1569, 4294901760
        %1931 = vmatpush.msra.mxu0 %v1930
        %v1932 = vand.u32 %v1568, 4294901760
        %1933 = vmatpush.msra.mxu0 %v1932
        %v1934 = vand.u32 %v1567, 4294901760
        %1935 = vmatpush.msra.mxu0 %v1934
        %v1936 = vand.u32 %v1566, 4294901760
        %1937 = vmatpush.msra.mxu0 %v1936
        %v1938 = vand.u32 %v1565, 4294901760
        %1939 = vmatpush.msra.mxu0 %v1938
        %v1940 = vand.u32 %v1564, 4294901760
        %1941 = vmatpush.msra.mxu0 %v1940
        %v1942 = vand.u32 %v1563, 4294901760
        %1943 = vmatpush.msra.mxu0 %v1942
        %v1944 = vand.u32 %v1562, 4294901760
        %1945 = vmatpush.msra.mxu0 %v1944
        %v1946 = vand.u32 %v1594, 4294901760
        %1947 = vmatmul.f32.gmra.mxu0 %v1946
        %v1948 = vpop.f32.mrf.mxu0
        %v1949 = vadd.f32 %v1912, %v1948
        %1950 = vdwg.mxu0
        %vm1951 = vcmp.gt.f32.partialorder %v1949, 0.0
        %v1952 = vmul.f32 %v1949, 0.2
        %v1953 = vsel %vm1951, %v1949, %v1952
        %v1954 = vlaneseq
        %v1955 = vand.u32 %v1954, 127
        %s1956 = smul.u32 %s21, 128
        %v1957 = vstv %s1956
        %v1958 = vadd.s32 %v1955, %v1957
        %vm1959 = vcmp.lt.s32.totalorder %v1958, 200
        %v1960 = vsel %vm1959, %v1953, -1e+30
        %v1961 = vld [vmem:[#allocation3] sm:$0x1]
        %vm1962 = vcmask 1040384
        %v1963 = vsel %vm1962, %v1960, -inf
        %1964 = vmax.xlane.f32.xlu0 %v1963
        %v1965 = vpop.xlane.xlu0 %1964
        %v1966 = vmax.f32 %v1961, %v1965
        %v1967 = vsub.f32 %v1961, %v1966
        %v1968 = vmul.f32 %v1967, 1.442695
        %v1969 = vpow.pop %v1968
        %1971 = vset.pattern.permute.xlu0 0
        %1972 = vperm.xlu0 %1971, %v1966
        %v1973 = vpop.permute.xlu0 %1972
        %v1975 = vperm.slane %v1973, 0
        %v1976 = vsub.f32 %v1960, %v1975
        %v1977 = vmul.f32 %v1976, 1.442695
        %v1978 = vpow.pop %v1977
        %v1979 = vld [vmem:[#allocation4] sm:$0x1]
        %v1980 = vmul.f32 %v1979, %v1969
        %v1981 = vsel %vm1962, %v1978, 0.0
        %1982 = vadd.xlane.f32.xlu0 %v1981
        %v1983 = vpop.xlane.xlu0 %1982
        %v1984 = vadd.f32 %v1980, %v1983
        %vm1985 = vcmask 0
        %1986 = vst.msk [vmem:[#allocation4] sm:$0x1] %vm1985, %v1984
        %1987 = vst.msk [vmem:[#allocation3] sm:$0x1] %vm1985, %v1966
        %1988 = vxpose.xlu0.b32.start [1/16] %v1570, 128
        %1989 = vxpose.xlu0.b32.cont [2/16] %v1571, 128
        %1990 = vxpose.xlu0.b32.cont [3/16] %v1572, 128
        %1991 = vxpose.xlu0.b32.cont [4/16] %v1573, 128
        %1992 = vxpose.xlu0.b32.cont [5/16] %v1574, 128
        %1993 = vxpose.xlu0.b32.cont [6/16] %v1575, 128
        %1994 = vxpose.xlu0.b32.cont [7/16] %v1576, 128
        %1995 = vxpose.xlu0.b32.cont [8/16] %v1577, 128
        %1996 = vxpose.xlu0.b32.cont [9/16] 0.0, 128
        %1997 = vxpose.xlu0.b32.cont [10/16] 0.0, 128
        %1998 = vxpose.xlu0.b32.cont [11/16] 0.0, 128
        %1999 = vxpose.xlu0.b32.cont [12/16] 0.0, 128
        %2000 = vxpose.xlu0.b32.cont [13/16] 0.0, 128
        %2001 = vxpose.xlu0.b32.cont [14/16] 0.0, 128
        %2002 = vxpose.xlu0.b32.cont [15/16] 0.0, 128
        %2003 = vxpose.xlu0.b32.end [16/16] 0.0, 128
        %v2004 = vpop.trf.xlu0
        %v2005 = vpop.trf.xlu0
        %v2006 = vpop.trf.xlu0
        %v2007 = vpop.trf.xlu0
        %v2008 = vpop.trf.xlu0
        %v2009 = vpop.trf.xlu0
        %v2010 = vpop.trf.xlu0
        %v2011 = vpop.trf.xlu0
        %v2012 = vpop.trf.xlu0
        %v2013 = vpop.trf.xlu0
        %v2014 = vpop.trf.xlu0
        %v2015 = vpop.trf.xlu0
        %v2016 = vpop.trf.xlu0
        %v2017 = vpop.trf.xlu0
        %v2018 = vpop.trf.xlu0
        %v2019 = vpop.trf.xlu0
        %vm2020 = vcmask 523264
        %v2022 = vsel %vm2020, %v2004, 0
        %v2025 = vsel %vm2020, %v2005, 0
        %v2028 = vsel %vm2020, %v2006, 0
        %v2031 = vsel %vm2020, %v2007, 0
        %v2034 = vsel %vm2020, %v2008, 0
        %v2037 = vsel %vm2020, %v2009, 0
        %v2040 = vsel %vm2020, %v2010, 0
        %v2043 = vsel %vm2020, %v2011, 0
        %v2046 = vsel %vm2020, %v2012, 0
        %v2049 = vsel %vm2020, %v2013, 0
        %v2052 = vsel %vm2020, %v2014, 0
        %v2055 = vsel %vm2020, %v2015, 0
        %v2058 = vsel %vm2020, %v2016, 0
        %v2061 = vsel %vm2020, %v2017, 0
        %v2064 = vsel %vm2020, %v2018, 0
        %v2067 = vsel %vm2020, %v2019, 0
        %2069 = vmatpush.msra.mxu0 0.0
        %2070 = vmatpush.msra.mxu0 0.0
        %2071 = vmatpush.msra.mxu0 0.0
        %2072 = vmatpush.msra.mxu0 0.0
        %2073 = vmatpush.msra.mxu0 0.0
        %2074 = vmatpush.msra.mxu0 0.0
        %2075 = vmatpush.msra.mxu0 0.0
        %2076 = vmatpush.msra.mxu0 0.0
        %v2077 = vand.u32 %v869, 4294901760
        %2078 = vmatpush.msra.mxu0 %v2077
        %v2079 = vand.u32 %v868, 4294901760
        %2080 = vmatpush.msra.mxu0 %v2079
        %v2081 = vand.u32 %v867, 4294901760
        %2082 = vmatpush.msra.mxu0 %v2081
        %v2083 = vand.u32 %v866, 4294901760
        %2084 = vmatpush.msra.mxu0 %v2083
        %v2085 = vand.u32 %v865, 4294901760
        %2086 = vmatpush.msra.mxu0 %v2085
        %v2087 = vand.u32 %v864, 4294901760
        %2088 = vmatpush.msra.mxu0 %v2087
        %v2089 = vand.u32 %v863, 4294901760
        %2090 = vmatpush.msra.mxu0 %v2089
        %v2091 = vand.u32 %v862, 4294901760
        %2092 = vmatpush.msra.mxu0 %v2091
        %v2093 = vand.u32 %v2022, 4294901760
        %v2094 = vsub.f32 %v2022, %v2093
        %v2095 = vand.u32 %v2094, 4294901760
        %v2096 = vsub.f32 %v2094, %v2095
        %v2097 = vand.u32 %v2096, 4294901760
        %2098 = vmatmul.f32.gmra.mxu0 %v2097
        %v2099 = vpop.f32.mrf.mxu0
        %v2100 = vadd.f32 0.0, %v2099
        %v2101 = vand.u32 %v2025, 4294901760
        %v2102 = vsub.f32 %v2025, %v2101
        %v2103 = vand.u32 %v2102, 4294901760
        %v2104 = vsub.f32 %v2102, %v2103
        %v2105 = vand.u32 %v2104, 4294901760
        %2106 = vmatmul.f32.gmra.mxu0 %v2105
        %v2107 = vpop.f32.mrf.mxu0
        %v2108 = vadd.f32 0.0, %v2107
        %v2109 = vand.u32 %v2028, 4294901760
        %v2110 = vsub.f32 %v2028, %v2109
        %v2111 = vand.u32 %v2110, 4294901760
        %v2112 = vsub.f32 %v2110, %v2111
        %v2113 = vand.u32 %v2112, 4294901760
        %2114 = vmatmul.f32.gmra.mxu0 %v2113
        %v2115 = vpop.f32.mrf.mxu0
        %v2116 = vadd.f32 0.0, %v2115
        %v2117 = vand.u32 %v2031, 4294901760
        %v2118 = vsub.f32 %v2031, %v2117
        %v2119 = vand.u32 %v2118, 4294901760
        %v2120 = vsub.f32 %v2118, %v2119
        %v2121 = vand.u32 %v2120, 4294901760
        %2122 = vmatmul.f32.gmra.mxu0 %v2121
        %v2123 = vpop.f32.mrf.mxu0
        %v2124 = vadd.f32 0.0, %v2123
        %v2125 = vand.u32 %v2034, 4294901760
        %v2126 = vsub.f32 %v2034, %v2125
        %v2127 = vand.u32 %v2126, 4294901760
        %v2128 = vsub.f32 %v2126, %v2127
        %v2129 = vand.u32 %v2128, 4294901760
        %2130 = vmatmul.f32.gmra.mxu0 %v2129
        %v2131 = vpop.f32.mrf.mxu0
        %v2132 = vadd.f32 0.0, %v2131
        %v2133 = vand.u32 %v2037, 4294901760
        %v2134 = vsub.f32 %v2037, %v2133
        %v2135 = vand.u32 %v2134, 4294901760
        %v2136 = vsub.f32 %v2134, %v2135
        %v2137 = vand.u32 %v2136, 4294901760
        %2138 = vmatmul.f32.gmra.mxu0 %v2137
        %v2139 = vpop.f32.mrf.mxu0
        %v2140 = vadd.f32 0.0, %v2139
        %v2141 = vand.u32 %v2040, 4294901760
        %v2142 = vsub.f32 %v2040, %v2141
        %v2143 = vand.u32 %v2142, 4294901760
        %v2144 = vsub.f32 %v2142, %v2143
        %v2145 = vand.u32 %v2144, 4294901760
        %2146 = vmatmul.f32.gmra.mxu0 %v2145
        %v2147 = vpop.f32.mrf.mxu0
        %v2148 = vadd.f32 0.0, %v2147
        %v2149 = vand.u32 %v2043, 4294901760
        %v2150 = vsub.f32 %v2043, %v2149
        %v2151 = vand.u32 %v2150, 4294901760
        %v2152 = vsub.f32 %v2150, %v2151
        %v2153 = vand.u32 %v2152, 4294901760
        %2154 = vmatmul.f32.gmra.mxu0 %v2153
        %v2155 = vpop.f32.mrf.mxu0
        %v2156 = vadd.f32 0.0, %v2155
        %v2157 = vand.u32 %v2046, 4294901760
        %v2158 = vsub.f32 %v2046, %v2157
        %v2159 = vand.u32 %v2158, 4294901760
        %v2160 = vsub.f32 %v2158, %v2159
        %v2161 = vand.u32 %v2160, 4294901760
        %2162 = vmatmul.f32.gmra.mxu0 %v2161
        %v2163 = vpop.f32.mrf.mxu0
        %v2164 = vadd.f32 0.0, %v2163
        %v2165 = vand.u32 %v2049, 4294901760
        %v2166 = vsub.f32 %v2049, %v2165
        %v2167 = vand.u32 %v2166, 4294901760
        %v2168 = vsub.f32 %v2166, %v2167
        %v2169 = vand.u32 %v2168, 4294901760
        %2170 = vmatmul.f32.gmra.mxu0 %v2169
        %v2171 = vpop.f32.mrf.mxu0
        %v2172 = vadd.f32 0.0, %v2171
        %v2173 = vand.u32 %v2052, 4294901760
        %v2174 = vsub.f32 %v2052, %v2173
        %v2175 = vand.u32 %v2174, 4294901760
        %v2176 = vsub.f32 %v2174, %v2175
        %v2177 = vand.u32 %v2176, 4294901760
        %2178 = vmatmul.f32.gmra.mxu0 %v2177
        %v2179 = vpop.f32.mrf.mxu0
        %v2180 = vadd.f32 0.0, %v2179
        %v2181 = vand.u32 %v2055, 4294901760
        %v2182 = vsub.f32 %v2055, %v2181
        %v2183 = vand.u32 %v2182, 4294901760
        %v2184 = vsub.f32 %v2182, %v2183
        %v2185 = vand.u32 %v2184, 4294901760
        %2186 = vmatmul.f32.gmra.mxu0 %v2185
        %v2187 = vpop.f32.mrf.mxu0
        %v2188 = vadd.f32 0.0, %v2187
        %v2189 = vand.u32 %v2058, 4294901760
        %v2190 = vsub.f32 %v2058, %v2189
        %v2191 = vand.u32 %v2190, 4294901760
        %v2192 = vsub.f32 %v2190, %v2191
        %v2193 = vand.u32 %v2192, 4294901760
        %2194 = vmatmul.f32.gmra.mxu0 %v2193
        %v2195 = vpop.f32.mrf.mxu0
        %v2196 = vadd.f32 0.0, %v2195
        %v2197 = vand.u32 %v2061, 4294901760
        %v2198 = vsub.f32 %v2061, %v2197
        %v2199 = vand.u32 %v2198, 4294901760
        %v2200 = vsub.f32 %v2198, %v2199
        %v2201 = vand.u32 %v2200, 4294901760
        %2202 = vmatmul.f32.gmra.mxu0 %v2201
        %v2203 = vpop.f32.mrf.mxu0
        %v2204 = vadd.f32 0.0, %v2203
        %v2205 = vand.u32 %v2064, 4294901760
        %v2206 = vsub.f32 %v2064, %v2205
        %v2207 = vand.u32 %v2206, 4294901760
        %v2208 = vsub.f32 %v2206, %v2207
        %v2209 = vand.u32 %v2208, 4294901760
        %2210 = vmatmul.f32.gmra.mxu0 %v2209
        %v2211 = vpop.f32.mrf.mxu0
        %v2212 = vadd.f32 0.0, %v2211
        %v2213 = vand.u32 %v2067, 4294901760
        %v2214 = vsub.f32 %v2067, %v2213
        %v2215 = vand.u32 %v2214, 4294901760
        %v2216 = vsub.f32 %v2214, %v2215
        %v2217 = vand.u32 %v2216, 4294901760
        %2218 = vmatmul.f32.gmra.mxu0 %v2217
        %v2219 = vpop.f32.mrf.mxu0
        %v2220 = vadd.f32 0.0, %v2219
        %2221 = vdwg.mxu0
        %2222 = vmatpush.msra.mxu0 0.0
        %2223 = vmatpush.msra.mxu0 0.0
        %2224 = vmatpush.msra.mxu0 0.0
        %2225 = vmatpush.msra.mxu0 0.0
        %2226 = vmatpush.msra.mxu0 0.0
        %2227 = vmatpush.msra.mxu0 0.0
        %2228 = vmatpush.msra.mxu0 0.0
        %2229 = vmatpush.msra.mxu0 0.0
        %v2230 = vand.u32 %v869, 4294901760
        %v2231 = vsub.f32 %v869, %v2230
        %v2232 = vand.u32 %v2231, 4294901760
        %v2233 = vsub.f32 %v2231, %v2232
        %v2234 = vand.u32 %v2233, 4294901760
        %2235 = vmatpush.msra.mxu0 %v2234
        %v2236 = vand.u32 %v868, 4294901760
        %v2237 = vsub.f32 %v868, %v2236
        %v2238 = vand.u32 %v2237, 4294901760
        %v2239 = vsub.f32 %v2237, %v2238
        %v2240 = vand.u32 %v2239, 4294901760
        %2241 = vmatpush.msra.mxu0 %v2240
        %v2242 = vand.u32 %v867, 4294901760
        %v2243 = vsub.f32 %v867, %v2242
        %v2244 = vand.u32 %v2243, 4294901760
        %v2245 = vsub.f32 %v2243, %v2244
        %v2246 = vand.u32 %v2245, 4294901760
        %2247 = vmatpush.msra.mxu0 %v2246
        %v2248 = vand.u32 %v866, 4294901760
        %v2249 = vsub.f32 %v866, %v2248
        %v2250 = vand.u32 %v2249, 4294901760
        %v2251 = vsub.f32 %v2249, %v2250
        %v2252 = vand.u32 %v2251, 4294901760
        %2253 = vmatpush.msra.mxu0 %v2252
        %v2254 = vand.u32 %v865, 4294901760
        %v2255 = vsub.f32 %v865, %v2254
        %v2256 = vand.u32 %v2255, 4294901760
        %v2257 = vsub.f32 %v2255, %v2256
        %v2258 = vand.u32 %v2257, 4294901760
        %2259 = vmatpush.msra.mxu0 %v2258
        %v2260 = vand.u32 %v864, 4294901760
        %v2261 = vsub.f32 %v864, %v2260
        %v2262 = vand.u32 %v2261, 4294901760
        %v2263 = vsub.f32 %v2261, %v2262
        %v2264 = vand.u32 %v2263, 4294901760
        %2265 = vmatpush.msra.mxu0 %v2264
        %v2266 = vand.u32 %v863, 4294901760
        %v2267 = vsub.f32 %v863, %v2266
        %v2268 = vand.u32 %v2267, 4294901760
        %v2269 = vsub.f32 %v2267, %v2268
        %v2270 = vand.u32 %v2269, 4294901760
        %2271 = vmatpush.msra.mxu0 %v2270
        %v2272 = vand.u32 %v862, 4294901760
        %v2273 = vsub.f32 %v862, %v2272
        %v2274 = vand.u32 %v2273, 4294901760
        %v2275 = vsub.f32 %v2273, %v2274
        %v2276 = vand.u32 %v2275, 4294901760
        %2277 = vmatpush.msra.mxu0 %v2276
        %v2278 = vand.u32 %v2022, 4294901760
        %2279 = vmatmul.f32.gmra.mxu0 %v2278
        %v2280 = vpop.f32.mrf.mxu0
        %v2281 = vadd.f32 %v2100, %v2280
        %v2282 = vand.u32 %v2025, 4294901760
        %2283 = vmatmul.f32.gmra.mxu0 %v2282
        %v2284 = vpop.f32.mrf.mxu0
        %v2285 = vadd.f32 %v2108, %v2284
        %v2286 = vand.u32 %v2028, 4294901760
        %2287 = vmatmul.f32.gmra.mxu0 %v2286
        %v2288 = vpop.f32.mrf.mxu0
        %v2289 = vadd.f32 %v2116, %v2288
        %v2290 = vand.u32 %v2031, 4294901760
        %2291 = vmatmul.f32.gmra.mxu0 %v2290
        %v2292 = vpop.f32.mrf.mxu0
        %v2293 = vadd.f32 %v2124, %v2292
        %v2294 = vand.u32 %v2034, 4294901760
        %2295 = vmatmul.f32.gmra.mxu0 %v2294
        %v2296 = vpop.f32.mrf.mxu0
        %v2297 = vadd.f32 %v2132, %v2296
        %v2298 = vand.u32 %v2037, 4294901760
        %2299 = vmatmul.f32.gmra.mxu0 %v2298
        %v2300 = vpop.f32.mrf.mxu0
        %v2301 = vadd.f32 %v2140, %v2300
        %v2302 = vand.u32 %v2040, 4294901760
        %2303 = vmatmul.f32.gmra.mxu0 %v2302
        %v2304 = vpop.f32.mrf.mxu0
        %v2305 = vadd.f32 %v2148, %v2304
        %v2306 = vand.u32 %v2043, 4294901760
        %2307 = vmatmul.f32.gmra.mxu0 %v2306
        %v2308 = vpop.f32.mrf.mxu0
        %v2309 = vadd.f32 %v2156, %v2308
        %v2310 = vand.u32 %v2046, 4294901760
        %2311 = vmatmul.f32.gmra.mxu0 %v2310
        %v2312 = vpop.f32.mrf.mxu0
        %v2313 = vadd.f32 %v2164, %v2312
        %v2314 = vand.u32 %v2049, 4294901760
        %2315 = vmatmul.f32.gmra.mxu0 %v2314
        %v2316 = vpop.f32.mrf.mxu0
        %v2317 = vadd.f32 %v2172, %v2316
        %v2318 = vand.u32 %v2052, 4294901760
        %2319 = vmatmul.f32.gmra.mxu0 %v2318
        %v2320 = vpop.f32.mrf.mxu0
        %v2321 = vadd.f32 %v2180, %v2320
        %v2322 = vand.u32 %v2055, 4294901760
        %2323 = vmatmul.f32.gmra.mxu0 %v2322
        %v2324 = vpop.f32.mrf.mxu0
        %v2325 = vadd.f32 %v2188, %v2324
        %v2326 = vand.u32 %v2058, 4294901760
        %2327 = vmatmul.f32.gmra.mxu0 %v2326
        %v2328 = vpop.f32.mrf.mxu0
        %v2329 = vadd.f32 %v2196, %v2328
        %v2330 = vand.u32 %v2061, 4294901760
        %2331 = vmatmul.f32.gmra.mxu0 %v2330
        %v2332 = vpop.f32.mrf.mxu0
        %v2333 = vadd.f32 %v2204, %v2332
        %v2334 = vand.u32 %v2064, 4294901760
        %2335 = vmatmul.f32.gmra.mxu0 %v2334
        %v2336 = vpop.f32.mrf.mxu0
        %v2337 = vadd.f32 %v2212, %v2336
        %v2338 = vand.u32 %v2067, 4294901760
        %2339 = vmatmul.f32.gmra.mxu0 %v2338
        %v2340 = vpop.f32.mrf.mxu0
        %v2341 = vadd.f32 %v2220, %v2340
        %2342 = vdwg.mxu0
        %2343 = vmatpush.msra.mxu0 0.0
        %2344 = vmatpush.msra.mxu0 0.0
        %2345 = vmatpush.msra.mxu0 0.0
        %2346 = vmatpush.msra.mxu0 0.0
        %2347 = vmatpush.msra.mxu0 0.0
        %2348 = vmatpush.msra.mxu0 0.0
        %2349 = vmatpush.msra.mxu0 0.0
        %2350 = vmatpush.msra.mxu0 0.0
        %v2351 = vand.u32 %v869, 4294901760
        %v2352 = vsub.f32 %v869, %v2351
        %2353 = vmatpush.msra.mxu0 %v2352
        %v2354 = vand.u32 %v868, 4294901760
        %v2355 = vsub.f32 %v868, %v2354
        %2356 = vmatpush.msra.mxu0 %v2355
        %v2357 = vand.u32 %v867, 4294901760
        %v2358 = vsub.f32 %v867, %v2357
        %2359 = vmatpush.msra.mxu0 %v2358
        %v2360 = vand.u32 %v866, 4294901760
        %v2361 = vsub.f32 %v866, %v2360
        %2362 = vmatpush.msra.mxu0 %v2361
        %v2363 = vand.u32 %v865, 4294901760
        %v2364 = vsub.f32 %v865, %v2363
        %2365 = vmatpush.msra.mxu0 %v2364
        %v2366 = vand.u32 %v864, 4294901760
        %v2367 = vsub.f32 %v864, %v2366
        %2368 = vmatpush.msra.mxu0 %v2367
        %v2369 = vand.u32 %v863, 4294901760
        %v2370 = vsub.f32 %v863, %v2369
        %2371 = vmatpush.msra.mxu0 %v2370
        %v2372 = vand.u32 %v862, 4294901760
        %v2373 = vsub.f32 %v862, %v2372
        %2374 = vmatpush.msra.mxu0 %v2373
        %v2375 = vand.u32 %v2022, 4294901760
        %v2376 = vsub.f32 %v2022, %v2375
        %2377 = vmatmul.f32.gmra.mxu0 %v2376
        %v2378 = vpop.f32.mrf.mxu0
        %v2379 = vadd.f32 %v2281, %v2378
        %v2380 = vand.u32 %v2025, 4294901760
        %v2381 = vsub.f32 %v2025, %v2380
        %2382 = vmatmul.f32.gmra.mxu0 %v2381
        %v2383 = vpop.f32.mrf.mxu0
        %v2384 = vadd.f32 %v2285, %v2383
        %v2385 = vand.u32 %v2028, 4294901760
        %v2386 = vsub.f32 %v2028, %v2385
        %2387 = vmatmul.f32.gmra.mxu0 %v2386
        %v2388 = vpop.f32.mrf.mxu0
        %v2389 = vadd.f32 %v2289, %v2388
        %v2390 = vand.u32 %v2031, 4294901760
        %v2391 = vsub.f32 %v2031, %v2390
        %2392 = vmatmul.f32.gmra.mxu0 %v2391
        %v2393 = vpop.f32.mrf.mxu0
        %v2394 = vadd.f32 %v2293, %v2393
        %v2395 = vand.u32 %v2034, 4294901760
        %v2396 = vsub.f32 %v2034, %v2395
        %2397 = vmatmul.f32.gmra.mxu0 %v2396
        %v2398 = vpop.f32.mrf.mxu0
        %v2399 = vadd.f32 %v2297, %v2398
        %v2400 = vand.u32 %v2037, 4294901760
        %v2401 = vsub.f32 %v2037, %v2400
        %2402 = vmatmul.f32.gmra.mxu0 %v2401
        %v2403 = vpop.f32.mrf.mxu0
        %v2404 = vadd.f32 %v2301, %v2403
        %v2405 = vand.u32 %v2040, 4294901760
        %v2406 = vsub.f32 %v2040, %v2405
        %2407 = vmatmul.f32.gmra.mxu0 %v2406
        %v2408 = vpop.f32.mrf.mxu0
        %v2409 = vadd.f32 %v2305, %v2408
        %v2410 = vand.u32 %v2043, 4294901760
        %v2411 = vsub.f32 %v2043, %v2410
        %2412 = vmatmul.f32.gmra.mxu0 %v2411
        %v2413 = vpop.f32.mrf.mxu0
        %v2414 = vadd.f32 %v2309, %v2413
        %v2415 = vand.u32 %v2046, 4294901760
        %v2416 = vsub.f32 %v2046, %v2415
        %2417 = vmatmul.f32.gmra.mxu0 %v2416
        %v2418 = vpop.f32.mrf.mxu0
        %v2419 = vadd.f32 %v2313, %v2418
        %v2420 = vand.u32 %v2049, 4294901760
        %v2421 = vsub.f32 %v2049, %v2420
        %2422 = vmatmul.f32.gmra.mxu0 %v2421
        %v2423 = vpop.f32.mrf.mxu0
        %v2424 = vadd.f32 %v2317, %v2423
        %v2425 = vand.u32 %v2052, 4294901760
        %v2426 = vsub.f32 %v2052, %v2425
        %2427 = vmatmul.f32.gmra.mxu0 %v2426
        %v2428 = vpop.f32.mrf.mxu0
        %v2429 = vadd.f32 %v2321, %v2428
        %v2430 = vand.u32 %v2055, 4294901760
        %v2431 = vsub.f32 %v2055, %v2430
        %2432 = vmatmul.f32.gmra.mxu0 %v2431
        %v2433 = vpop.f32.mrf.mxu0
        %v2434 = vadd.f32 %v2325, %v2433
        %v2435 = vand.u32 %v2058, 4294901760
        %v2436 = vsub.f32 %v2058, %v2435
        %2437 = vmatmul.f32.gmra.mxu0 %v2436
        %v2438 = vpop.f32.mrf.mxu0
        %v2439 = vadd.f32 %v2329, %v2438
        %v2440 = vand.u32 %v2061, 4294901760
        %v2441 = vsub.f32 %v2061, %v2440
        %2442 = vmatmul.f32.gmra.mxu0 %v2441
        %v2443 = vpop.f32.mrf.mxu0
        %v2444 = vadd.f32 %v2333, %v2443
        %v2445 = vand.u32 %v2064, 4294901760
        %v2446 = vsub.f32 %v2064, %v2445
        %2447 = vmatmul.f32.gmra.mxu0 %v2446
        %v2448 = vpop.f32.mrf.mxu0
        %v2449 = vadd.f32 %v2337, %v2448
        %v2450 = vand.u32 %v2067, 4294901760
        %v2451 = vsub.f32 %v2067, %v2450
        %2452 = vmatmul.f32.gmra.mxu0 %v2451
        %v2453 = vpop.f32.mrf.mxu0
        %v2454 = vadd.f32 %v2341, %v2453
        %2455 = vdwg.mxu0
        %2456 = vmatpush.msra.mxu0 0.0
        %2457 = vmatpush.msra.mxu0 0.0
        %2458 = vmatpush.msra.mxu0 0.0
        %2459 = vmatpush.msra.mxu0 0.0
        %2460 = vmatpush.msra.mxu0 0.0
        %2461 = vmatpush.msra.mxu0 0.0
        %2462 = vmatpush.msra.mxu0 0.0
        %2463 = vmatpush.msra.mxu0 0.0
        %v2464 = vand.u32 %v869, 4294901760
        %2465 = vmatpush.msra.mxu0 %v2464
        %v2466 = vand.u32 %v868, 4294901760
        %2467 = vmatpush.msra.mxu0 %v2466
        %v2468 = vand.u32 %v867, 4294901760
        %2469 = vmatpush.msra.mxu0 %v2468
        %v2470 = vand.u32 %v866, 4294901760
        %2471 = vmatpush.msra.mxu0 %v2470
        %v2472 = vand.u32 %v865, 4294901760
        %2473 = vmatpush.msra.mxu0 %v2472
        %v2474 = vand.u32 %v864, 4294901760
        %2475 = vmatpush.msra.mxu0 %v2474
        %v2476 = vand.u32 %v863, 4294901760
        %2477 = vmatpush.msra.mxu0 %v2476
        %v2478 = vand.u32 %v862, 4294901760
        %2479 = vmatpush.msra.mxu0 %v2478
        %v2480 = vand.u32 %v2022, 4294901760
        %v2481 = vsub.f32 %v2022, %v2480
        %v2482 = vand.u32 %v2481, 4294901760
        %2483 = vmatmul.f32.gmra.mxu0 %v2482
        %v2484 = vpop.f32.mrf.mxu0
        %v2485 = vadd.f32 %v2379, %v2484
        %v2486 = vand.u32 %v2025, 4294901760
        %v2487 = vsub.f32 %v2025, %v2486
        %v2488 = vand.u32 %v2487, 4294901760
        %2489 = vmatmul.f32.gmra.mxu0 %v2488
        %v2490 = vpop.f32.mrf.mxu0
        %v2491 = vadd.f32 %v2384, %v2490
        %v2492 = vand.u32 %v2028, 4294901760
        %v2493 = vsub.f32 %v2028, %v2492
        %v2494 = vand.u32 %v2493, 4294901760
        %2495 = vmatmul.f32.gmra.mxu0 %v2494
        %v2496 = vpop.f32.mrf.mxu0
        %v2497 = vadd.f32 %v2389, %v2496
        %v2498 = vand.u32 %v2031, 4294901760
        %v2499 = vsub.f32 %v2031, %v2498
        %v2500 = vand.u32 %v2499, 4294901760
        %2501 = vmatmul.f32.gmra.mxu0 %v2500
        %v2502 = vpop.f32.mrf.mxu0
        %v2503 = vadd.f32 %v2394, %v2502
        %v2504 = vand.u32 %v2034, 4294901760
        %v2505 = vsub.f32 %v2034, %v2504
        %v2506 = vand.u32 %v2505, 4294901760
        %2507 = vmatmul.f32.gmra.mxu0 %v2506
        %v2508 = vpop.f32.mrf.mxu0
        %v2509 = vadd.f32 %v2399, %v2508
        %v2510 = vand.u32 %v2037, 4294901760
        %v2511 = vsub.f32 %v2037, %v2510
        %v2512 = vand.u32 %v2511, 4294901760
        %2513 = vmatmul.f32.gmra.mxu0 %v2512
        %v2514 = vpop.f32.mrf.mxu0
        %v2515 = vadd.f32 %v2404, %v2514
        %v2516 = vand.u32 %v2040, 4294901760
        %v2517 = vsub.f32 %v2040, %v2516
        %v2518 = vand.u32 %v2517, 4294901760
        %2519 = vmatmul.f32.gmra.mxu0 %v2518
        %v2520 = vpop.f32.mrf.mxu0
        %v2521 = vadd.f32 %v2409, %v2520
        %v2522 = vand.u32 %v2043, 4294901760
        %v2523 = vsub.f32 %v2043, %v2522
        %v2524 = vand.u32 %v2523, 4294901760
        %2525 = vmatmul.f32.gmra.mxu0 %v2524
        %v2526 = vpop.f32.mrf.mxu0
        %v2527 = vadd.f32 %v2414, %v2526
        %v2528 = vand.u32 %v2046, 4294901760
        %v2529 = vsub.f32 %v2046, %v2528
        %v2530 = vand.u32 %v2529, 4294901760
        %2531 = vmatmul.f32.gmra.mxu0 %v2530
        %v2532 = vpop.f32.mrf.mxu0
        %v2533 = vadd.f32 %v2419, %v2532
        %v2534 = vand.u32 %v2049, 4294901760
        %v2535 = vsub.f32 %v2049, %v2534
        %v2536 = vand.u32 %v2535, 4294901760
        %2537 = vmatmul.f32.gmra.mxu0 %v2536
        %v2538 = vpop.f32.mrf.mxu0
        %v2539 = vadd.f32 %v2424, %v2538
        %v2540 = vand.u32 %v2052, 4294901760
        %v2541 = vsub.f32 %v2052, %v2540
        %v2542 = vand.u32 %v2541, 4294901760
        %2543 = vmatmul.f32.gmra.mxu0 %v2542
        %v2544 = vpop.f32.mrf.mxu0
        %v2545 = vadd.f32 %v2429, %v2544
        %v2546 = vand.u32 %v2055, 4294901760
        %v2547 = vsub.f32 %v2055, %v2546
        %v2548 = vand.u32 %v2547, 4294901760
        %2549 = vmatmul.f32.gmra.mxu0 %v2548
        %v2550 = vpop.f32.mrf.mxu0
        %v2551 = vadd.f32 %v2434, %v2550
        %v2552 = vand.u32 %v2058, 4294901760
        %v2553 = vsub.f32 %v2058, %v2552
        %v2554 = vand.u32 %v2553, 4294901760
        %2555 = vmatmul.f32.gmra.mxu0 %v2554
        %v2556 = vpop.f32.mrf.mxu0
        %v2557 = vadd.f32 %v2439, %v2556
        %v2558 = vand.u32 %v2061, 4294901760
        %v2559 = vsub.f32 %v2061, %v2558
        %v2560 = vand.u32 %v2559, 4294901760
        %2561 = vmatmul.f32.gmra.mxu0 %v2560
        %v2562 = vpop.f32.mrf.mxu0
        %v2563 = vadd.f32 %v2444, %v2562
        %v2564 = vand.u32 %v2064, 4294901760
        %v2565 = vsub.f32 %v2064, %v2564
        %v2566 = vand.u32 %v2565, 4294901760
        %2567 = vmatmul.f32.gmra.mxu0 %v2566
        %v2568 = vpop.f32.mrf.mxu0
        %v2569 = vadd.f32 %v2449, %v2568
        %v2570 = vand.u32 %v2067, 4294901760
        %v2571 = vsub.f32 %v2067, %v2570
        %v2572 = vand.u32 %v2571, 4294901760
        %2573 = vmatmul.f32.gmra.mxu0 %v2572
        %v2574 = vpop.f32.mrf.mxu0
        %v2575 = vadd.f32 %v2454, %v2574
        %2576 = vdwg.mxu0
        %2577 = vmatpush.msra.mxu0 0.0
        %2578 = vmatpush.msra.mxu0 0.0
        %2579 = vmatpush.msra.mxu0 0.0
        %2580 = vmatpush.msra.mxu0 0.0
        %2581 = vmatpush.msra.mxu0 0.0
        %2582 = vmatpush.msra.mxu0 0.0
        %2583 = vmatpush.msra.mxu0 0.0
        %2584 = vmatpush.msra.mxu0 0.0
        %v2585 = vand.u32 %v869, 4294901760
        %v2586 = vsub.f32 %v869, %v2585
        %v2587 = vand.u32 %v2586, 4294901760
        %2588 = vmatpush.msra.mxu0 %v2587
        %v2589 = vand.u32 %v868, 4294901760
        %v2590 = vsub.f32 %v868, %v2589
        %v2591 = vand.u32 %v2590, 4294901760
        %2592 = vmatpush.msra.mxu0 %v2591
        %v2593 = vand.u32 %v867, 4294901760
        %v2594 = vsub.f32 %v867, %v2593
        %v2595 = vand.u32 %v2594, 4294901760
        %2596 = vmatpush.msra.mxu0 %v2595
        %v2597 = vand.u32 %v866, 4294901760
        %v2598 = vsub.f32 %v866, %v2597
        %v2599 = vand.u32 %v2598, 4294901760
        %2600 = vmatpush.msra.mxu0 %v2599
        %v2601 = vand.u32 %v865, 4294901760
        %v2602 = vsub.f32 %v865, %v2601
        %v2603 = vand.u32 %v2602, 4294901760
        %2604 = vmatpush.msra.mxu0 %v2603
        %v2605 = vand.u32 %v864, 4294901760
        %v2606 = vsub.f32 %v864, %v2605
        %v2607 = vand.u32 %v2606, 4294901760
        %2608 = vmatpush.msra.mxu0 %v2607
        %v2609 = vand.u32 %v863, 4294901760
        %v2610 = vsub.f32 %v863, %v2609
        %v2611 = vand.u32 %v2610, 4294901760
        %2612 = vmatpush.msra.mxu0 %v2611
        %v2613 = vand.u32 %v862, 4294901760
        %v2614 = vsub.f32 %v862, %v2613
        %v2615 = vand.u32 %v2614, 4294901760
        %2616 = vmatpush.msra.mxu0 %v2615
        %v2617 = vand.u32 %v2022, 4294901760
        %2618 = vmatmul.f32.gmra.mxu0 %v2617
        %v2619 = vpop.f32.mrf.mxu0
        %v2620 = vadd.f32 %v2485, %v2619
        %v2621 = vand.u32 %v2025, 4294901760
        %2622 = vmatmul.f32.gmra.mxu0 %v2621
        %v2623 = vpop.f32.mrf.mxu0
        %v2624 = vadd.f32 %v2491, %v2623
        %v2625 = vand.u32 %v2028, 4294901760
        %2626 = vmatmul.f32.gmra.mxu0 %v2625
        %v2627 = vpop.f32.mrf.mxu0
        %v2628 = vadd.f32 %v2497, %v2627
        %v2629 = vand.u32 %v2031, 4294901760
        %2630 = vmatmul.f32.gmra.mxu0 %v2629
        %v2631 = vpop.f32.mrf.mxu0
        %v2632 = vadd.f32 %v2503, %v2631
        %v2633 = vand.u32 %v2034, 4294901760
        %2634 = vmatmul.f32.gmra.mxu0 %v2633
        %v2635 = vpop.f32.mrf.mxu0
        %v2636 = vadd.f32 %v2509, %v2635
        %v2637 = vand.u32 %v2037, 4294901760
        %2638 = vmatmul.f32.gmra.mxu0 %v2637
        %v2639 = vpop.f32.mrf.mxu0
        %v2640 = vadd.f32 %v2515, %v2639
        %v2641 = vand.u32 %v2040, 4294901760
        %2642 = vmatmul.f32.gmra.mxu0 %v2641
        %v2643 = vpop.f32.mrf.mxu0
        %v2644 = vadd.f32 %v2521, %v2643
        %v2645 = vand.u32 %v2043, 4294901760
        %2646 = vmatmul.f32.gmra.mxu0 %v2645
        %v2647 = vpop.f32.mrf.mxu0
        %v2648 = vadd.f32 %v2527, %v2647
        %v2649 = vand.u32 %v2046, 4294901760
        %2650 = vmatmul.f32.gmra.mxu0 %v2649
        %v2651 = vpop.f32.mrf.mxu0
        %v2652 = vadd.f32 %v2533, %v2651
        %v2653 = vand.u32 %v2049, 4294901760
        %2654 = vmatmul.f32.gmra.mxu0 %v2653
        %v2655 = vpop.f32.mrf.mxu0
        %v2656 = vadd.f32 %v2539, %v2655
        %v2657 = vand.u32 %v2052, 4294901760
        %2658 = vmatmul.f32.gmra.mxu0 %v2657
        %v2659 = vpop.f32.mrf.mxu0
        %v2660 = vadd.f32 %v2545, %v2659
        %v2661 = vand.u32 %v2055, 4294901760
        %2662 = vmatmul.f32.gmra.mxu0 %v2661
        %v2663 = vpop.f32.mrf.mxu0
        %v2664 = vadd.f32 %v2551, %v2663
        %v2665 = vand.u32 %v2058, 4294901760
        %2666 = vmatmul.f32.gmra.mxu0 %v2665
        %v2667 = vpop.f32.mrf.mxu0
        %v2668 = vadd.f32 %v2557, %v2667
        %v2669 = vand.u32 %v2061, 4294901760
        %2670 = vmatmul.f32.gmra.mxu0 %v2669
        %v2671 = vpop.f32.mrf.mxu0
        %v2672 = vadd.f32 %v2563, %v2671
        %v2673 = vand.u32 %v2064, 4294901760
        %2674 = vmatmul.f32.gmra.mxu0 %v2673
        %v2675 = vpop.f32.mrf.mxu0
        %v2676 = vadd.f32 %v2569, %v2675
        %v2677 = vand.u32 %v2067, 4294901760
        %2678 = vmatmul.f32.gmra.mxu0 %v2677
        %v2679 = vpop.f32.mrf.mxu0
        %v2680 = vadd.f32 %v2575, %v2679
        %2681 = vdwg.mxu0
        %2682 = vmatpush.msra.mxu0 0.0
        %2683 = vmatpush.msra.mxu0 0.0
        %2684 = vmatpush.msra.mxu0 0.0
        %2685 = vmatpush.msra.mxu0 0.0
        %2686 = vmatpush.msra.mxu0 0.0
        %2687 = vmatpush.msra.mxu0 0.0
        %2688 = vmatpush.msra.mxu0 0.0
        %2689 = vmatpush.msra.mxu0 0.0
        %v2690 = vand.u32 %v869, 4294901760
        %2691 = vmatpush.msra.mxu0 %v2690
        %v2692 = vand.u32 %v868, 4294901760
        %2693 = vmatpush.msra.mxu0 %v2692
        %v2694 = vand.u32 %v867, 4294901760
        %2695 = vmatpush.msra.mxu0 %v2694
        %v2696 = vand.u32 %v866, 4294901760
        %2697 = vmatpush.msra.mxu0 %v2696
        %v2698 = vand.u32 %v865, 4294901760
        %2699 = vmatpush.msra.mxu0 %v2698
        %v2700 = vand.u32 %v864, 4294901760
        %2701 = vmatpush.msra.mxu0 %v2700
        %v2702 = vand.u32 %v863, 4294901760
        %2703 = vmatpush.msra.mxu0 %v2702
        %v2704 = vand.u32 %v862, 4294901760
        %2705 = vmatpush.msra.mxu0 %v2704
        %v2706 = vand.u32 %v2022, 4294901760
        %2707 = vmatmul.f32.gmra.mxu0 %v2706
        %v2708 = vpop.f32.mrf.mxu0
        %v2709 = vadd.f32 %v2620, %v2708
        %v2710 = vand.u32 %v2025, 4294901760
        %2711 = vmatmul.f32.gmra.mxu0 %v2710
        %v2712 = vpop.f32.mrf.mxu0
        %v2713 = vadd.f32 %v2624, %v2712
        %v2714 = vand.u32 %v2028, 4294901760
        %2715 = vmatmul.f32.gmra.mxu0 %v2714
        %v2716 = vpop.f32.mrf.mxu0
        %v2717 = vadd.f32 %v2628, %v2716
        %v2718 = vand.u32 %v2031, 4294901760
        %2719 = vmatmul.f32.gmra.mxu0 %v2718
        %v2720 = vpop.f32.mrf.mxu0
        %v2721 = vadd.f32 %v2632, %v2720
        %v2722 = vand.u32 %v2034, 4294901760
        %2723 = vmatmul.f32.gmra.mxu0 %v2722
        %v2724 = vpop.f32.mrf.mxu0
        %v2725 = vadd.f32 %v2636, %v2724
        %v2726 = vand.u32 %v2037, 4294901760
        %2727 = vmatmul.f32.gmra.mxu0 %v2726
        %v2728 = vpop.f32.mrf.mxu0
        %v2729 = vadd.f32 %v2640, %v2728
        %v2730 = vand.u32 %v2040, 4294901760
        %2731 = vmatmul.f32.gmra.mxu0 %v2730
        %v2732 = vpop.f32.mrf.mxu0
        %v2733 = vadd.f32 %v2644, %v2732
        %v2734 = vand.u32 %v2043, 4294901760
        %2735 = vmatmul.f32.gmra.mxu0 %v2734
        %v2736 = vpop.f32.mrf.mxu0
        %v2737 = vadd.f32 %v2648, %v2736
        %v2738 = vand.u32 %v2046, 4294901760
        %2739 = vmatmul.f32.gmra.mxu0 %v2738
        %v2740 = vpop.f32.mrf.mxu0
        %v2741 = vadd.f32 %v2652, %v2740
        %v2742 = vand.u32 %v2049, 4294901760
        %2743 = vmatmul.f32.gmra.mxu0 %v2742
        %v2744 = vpop.f32.mrf.mxu0
        %v2745 = vadd.f32 %v2656, %v2744
        %v2746 = vand.u32 %v2052, 4294901760
        %2747 = vmatmul.f32.gmra.mxu0 %v2746
        %v2748 = vpop.f32.mrf.mxu0
        %v2749 = vadd.f32 %v2660, %v2748
        %v2750 = vand.u32 %v2055, 4294901760
        %2751 = vmatmul.f32.gmra.mxu0 %v2750
        %v2752 = vpop.f32.mrf.mxu0
        %v2753 = vadd.f32 %v2664, %v2752
        %v2754 = vand.u32 %v2058, 4294901760
        %2755 = vmatmul.f32.gmra.mxu0 %v2754
        %v2756 = vpop.f32.mrf.mxu0
        %v2757 = vadd.f32 %v2668, %v2756
        %v2758 = vand.u32 %v2061, 4294901760
        %2759 = vmatmul.f32.gmra.mxu0 %v2758
        %v2760 = vpop.f32.mrf.mxu0
        %v2761 = vadd.f32 %v2672, %v2760
        %v2762 = vand.u32 %v2064, 4294901760
        %2763 = vmatmul.f32.gmra.mxu0 %v2762
        %v2764 = vpop.f32.mrf.mxu0
        %v2765 = vadd.f32 %v2676, %v2764
        %v2766 = vand.u32 %v2067, 4294901760
        %2767 = vmatmul.f32.gmra.mxu0 %v2766
        %v2768 = vpop.f32.mrf.mxu0
        %v2769 = vadd.f32 %v2680, %v2768
        %2770 = vdwg.mxu0
        %v2771 = vld [vmem:[#allocation5] sm:$0xff]
        %v2772 = vld [vmem:[#allocation5 + $0x8] sm:$0xff]
        %v2773 = vld [vmem:[#allocation5 + $0x10] sm:$0xff]
        %v2774 = vld [vmem:[#allocation5 + $0x18] sm:$0xff]
        %v2775 = vld [vmem:[#allocation5 + $0x20] sm:$0xff]
        %v2776 = vld [vmem:[#allocation5 + $0x28] sm:$0xff]
        %v2777 = vld [vmem:[#allocation5 + $0x30] sm:$0xff]
        %v2778 = vld [vmem:[#allocation5 + $0x38] sm:$0xff]
        %v2780 = vperm.slane %v1969, 0
        %2781 = vset.pattern.permute.xlu0 0
        %2782 = vperm.xlu0 %2781, %v2780
        %v2783 = vpop.permute.xlu0 %2782
        %v2785 = vmul.f32 %v2771, %v2783
        %v2786 = vmul.f32 %v2772, %v2783
        %v2787 = vmul.f32 %v2773, %v2783
        %v2788 = vmul.f32 %v2774, %v2783
        %v2789 = vmul.f32 %v2775, %v2783
        %v2790 = vmul.f32 %v2776, %v2783
        %v2791 = vmul.f32 %v2777, %v2783
        %v2792 = vmul.f32 %v2778, %v2783
        %v2793 = vperm.slane %v1978, 0
        %v2794 = vmul.f32 %v1562, %v2793
        %v2795 = vmul.f32 %v1563, %v2793
        %v2796 = vmul.f32 %v1564, %v2793
        %v2797 = vmul.f32 %v1565, %v2793
        %v2798 = vmul.f32 %v1566, %v2793
        %v2799 = vmul.f32 %v1567, %v2793
        %v2800 = vmul.f32 %v1568, %v2793
        %v2801 = vmul.f32 %v1569, %v2793
        %v2802 = vand.u32 %v2769, 4294901760
        %2803 = vmatpush.msra.mxu0 %v2802
        %v2804 = vand.u32 %v2765, 4294901760
        %2805 = vmatpush.msra.mxu0 %v2804
        %v2806 = vand.u32 %v2761, 4294901760
        %2807 = vmatpush.msra.mxu0 %v2806
        %v2808 = vand.u32 %v2757, 4294901760
        %2809 = vmatpush.msra.mxu0 %v2808
        %v2810 = vand.u32 %v2753, 4294901760
        %2811 = vmatpush.msra.mxu0 %v2810
        %v2812 = vand.u32 %v2749, 4294901760
        %2813 = vmatpush.msra.mxu0 %v2812
        %v2814 = vand.u32 %v2745, 4294901760
        %2815 = vmatpush.msra.mxu0 %v2814
        %v2816 = vand.u32 %v2741, 4294901760
        %2817 = vmatpush.msra.mxu0 %v2816
        %v2818 = vand.u32 %v2737, 4294901760
        %2819 = vmatpush.msra.mxu0 %v2818
        %v2820 = vand.u32 %v2733, 4294901760
        %2821 = vmatpush.msra.mxu0 %v2820
        %v2822 = vand.u32 %v2729, 4294901760
        %2823 = vmatpush.msra.mxu0 %v2822
        %v2824 = vand.u32 %v2725, 4294901760
        %2825 = vmatpush.msra.mxu0 %v2824
        %v2826 = vand.u32 %v2721, 4294901760
        %2827 = vmatpush.msra.mxu0 %v2826
        %v2828 = vand.u32 %v2717, 4294901760
        %2829 = vmatpush.msra.mxu0 %v2828
        %v2830 = vand.u32 %v2713, 4294901760
        %2831 = vmatpush.msra.mxu0 %v2830
        %v2832 = vand.u32 %v2709, 4294901760
        %2833 = vmatpush.msra.mxu0 %v2832
        %v2834 = vand.u32 %v2794, 4294901760
        %v2835 = vsub.f32 %v2794, %v2834
        %v2836 = vand.u32 %v2835, 4294901760
        %v2837 = vsub.f32 %v2835, %v2836
        %v2838 = vand.u32 %v2837, 4294901760
        %2839 = vmatmul.f32.gmra.mxu0 %v2838
        %v2840 = vpop.f32.mrf.mxu0
        %v2841 = vadd.f32 0.0, %v2840
        %v2842 = vand.u32 %v2795, 4294901760
        %v2843 = vsub.f32 %v2795, %v2842
        %v2844 = vand.u32 %v2843, 4294901760
        %v2845 = vsub.f32 %v2843, %v2844
        %v2846 = vand.u32 %v2845, 4294901760
        %2847 = vmatmul.f32.gmra.mxu0 %v2846
        %v2848 = vpop.f32.mrf.mxu0
        %v2849 = vadd.f32 0.0, %v2848
        %v2850 = vand.u32 %v2796, 4294901760
        %v2851 = vsub.f32 %v2796, %v2850
        %v2852 = vand.u32 %v2851, 4294901760
        %v2853 = vsub.f32 %v2851, %v2852
        %v2854 = vand.u32 %v2853, 4294901760
        %2855 = vmatmul.f32.gmra.mxu0 %v2854
        %v2856 = vpop.f32.mrf.mxu0
        %v2857 = vadd.f32 0.0, %v2856
        %v2858 = vand.u32 %v2797, 4294901760
        %v2859 = vsub.f32 %v2797, %v2858
        %v2860 = vand.u32 %v2859, 4294901760
        %v2861 = vsub.f32 %v2859, %v2860
        %v2862 = vand.u32 %v2861, 4294901760
        %2863 = vmatmul.f32.gmra.mxu0 %v2862
        %v2864 = vpop.f32.mrf.mxu0
        %v2865 = vadd.f32 0.0, %v2864
        %v2866 = vand.u32 %v2798, 4294901760
        %v2867 = vsub.f32 %v2798, %v2866
        %v2868 = vand.u32 %v2867, 4294901760
        %v2869 = vsub.f32 %v2867, %v2868
        %v2870 = vand.u32 %v2869, 4294901760
        %2871 = vmatmul.f32.gmra.mxu0 %v2870
        %v2872 = vpop.f32.mrf.mxu0
        %v2873 = vadd.f32 0.0, %v2872
        %v2874 = vand.u32 %v2799, 4294901760
        %v2875 = vsub.f32 %v2799, %v2874
        %v2876 = vand.u32 %v2875, 4294901760
        %v2877 = vsub.f32 %v2875, %v2876
        %v2878 = vand.u32 %v2877, 4294901760
        %2879 = vmatmul.f32.gmra.mxu0 %v2878
        %v2880 = vpop.f32.mrf.mxu0
        %v2881 = vadd.f32 0.0, %v2880
        %v2882 = vand.u32 %v2800, 4294901760
        %v2883 = vsub.f32 %v2800, %v2882
        %v2884 = vand.u32 %v2883, 4294901760
        %v2885 = vsub.f32 %v2883, %v2884
        %v2886 = vand.u32 %v2885, 4294901760
        %2887 = vmatmul.f32.gmra.mxu0 %v2886
        %v2888 = vpop.f32.mrf.mxu0
        %v2889 = vadd.f32 0.0, %v2888
        %v2890 = vand.u32 %v2801, 4294901760
        %v2891 = vsub.f32 %v2801, %v2890
        %v2892 = vand.u32 %v2891, 4294901760
        %v2893 = vsub.f32 %v2891, %v2892
        %v2894 = vand.u32 %v2893, 4294901760
        %2895 = vmatmul.f32.gmra.mxu0 %v2894
        %v2896 = vpop.f32.mrf.mxu0
        %v2897 = vadd.f32 0.0, %v2896
        %2898 = vdwg.mxu0
        %v2899 = vand.u32 %v2769, 4294901760
        %v2900 = vsub.f32 %v2769, %v2899
        %v2901 = vand.u32 %v2900, 4294901760
        %v2902 = vsub.f32 %v2900, %v2901
        %v2903 = vand.u32 %v2902, 4294901760
        %2904 = vmatpush.msra.mxu0 %v2903
        %v2905 = vand.u32 %v2765, 4294901760
        %v2906 = vsub.f32 %v2765, %v2905
        %v2907 = vand.u32 %v2906, 4294901760
        %v2908 = vsub.f32 %v2906, %v2907
        %v2909 = vand.u32 %v2908, 4294901760
        %2910 = vmatpush.msra.mxu0 %v2909
        %v2911 = vand.u32 %v2761, 4294901760
        %v2912 = vsub.f32 %v2761, %v2911
        %v2913 = vand.u32 %v2912, 4294901760
        %v2914 = vsub.f32 %v2912, %v2913
        %v2915 = vand.u32 %v2914, 4294901760
        %2916 = vmatpush.msra.mxu0 %v2915
        %v2917 = vand.u32 %v2757, 4294901760
        %v2918 = vsub.f32 %v2757, %v2917
        %v2919 = vand.u32 %v2918, 4294901760
        %v2920 = vsub.f32 %v2918, %v2919
        %v2921 = vand.u32 %v2920, 4294901760
        %2922 = vmatpush.msra.mxu0 %v2921
        %v2923 = vand.u32 %v2753, 4294901760
        %v2924 = vsub.f32 %v2753, %v2923
        %v2925 = vand.u32 %v2924, 4294901760
        %v2926 = vsub.f32 %v2924, %v2925
        %v2927 = vand.u32 %v2926, 4294901760
        %2928 = vmatpush.msra.mxu0 %v2927
        %v2929 = vand.u32 %v2749, 4294901760
        %v2930 = vsub.f32 %v2749, %v2929
        %v2931 = vand.u32 %v2930, 4294901760
        %v2932 = vsub.f32 %v2930, %v2931
        %v2933 = vand.u32 %v2932, 4294901760
        %2934 = vmatpush.msra.mxu0 %v2933
        %v2935 = vand.u32 %v2745, 4294901760
        %v2936 = vsub.f32 %v2745, %v2935
        %v2937 = vand.u32 %v2936, 4294901760
        %v2938 = vsub.f32 %v2936, %v2937
        %v2939 = vand.u32 %v2938, 4294901760
        %2940 = vmatpush.msra.mxu0 %v2939
        %v2941 = vand.u32 %v2741, 4294901760
        %v2942 = vsub.f32 %v2741, %v2941
        %v2943 = vand.u32 %v2942, 4294901760
        %v2944 = vsub.f32 %v2942, %v2943
        %v2945 = vand.u32 %v2944, 4294901760
        %2946 = vmatpush.msra.mxu0 %v2945
        %v2947 = vand.u32 %v2737, 4294901760
        %v2948 = vsub.f32 %v2737, %v2947
        %v2949 = vand.u32 %v2948, 4294901760
        %v2950 = vsub.f32 %v2948, %v2949
        %v2951 = vand.u32 %v2950, 4294901760
        %2952 = vmatpush.msra.mxu0 %v2951
        %v2953 = vand.u32 %v2733, 4294901760
        %v2954 = vsub.f32 %v2733, %v2953
        %v2955 = vand.u32 %v2954, 4294901760
        %v2956 = vsub.f32 %v2954, %v2955
        %v2957 = vand.u32 %v2956, 4294901760
        %2958 = vmatpush.msra.mxu0 %v2957
        %v2959 = vand.u32 %v2729, 4294901760
        %v2960 = vsub.f32 %v2729, %v2959
        %v2961 = vand.u32 %v2960, 4294901760
        %v2962 = vsub.f32 %v2960, %v2961
        %v2963 = vand.u32 %v2962, 4294901760
        %2964 = vmatpush.msra.mxu0 %v2963
        %v2965 = vand.u32 %v2725, 4294901760
        %v2966 = vsub.f32 %v2725, %v2965
        %v2967 = vand.u32 %v2966, 4294901760
        %v2968 = vsub.f32 %v2966, %v2967
        %v2969 = vand.u32 %v2968, 4294901760
        %2970 = vmatpush.msra.mxu0 %v2969
        %v2971 = vand.u32 %v2721, 4294901760
        %v2972 = vsub.f32 %v2721, %v2971
        %v2973 = vand.u32 %v2972, 4294901760
        %v2974 = vsub.f32 %v2972, %v2973
        %v2975 = vand.u32 %v2974, 4294901760
        %2976 = vmatpush.msra.mxu0 %v2975
        %v2977 = vand.u32 %v2717, 4294901760
        %v2978 = vsub.f32 %v2717, %v2977
        %v2979 = vand.u32 %v2978, 4294901760
        %v2980 = vsub.f32 %v2978, %v2979
        %v2981 = vand.u32 %v2980, 4294901760
        %2982 = vmatpush.msra.mxu0 %v2981
        %v2983 = vand.u32 %v2713, 4294901760
        %v2984 = vsub.f32 %v2713, %v2983
        %v2985 = vand.u32 %v2984, 4294901760
        %v2986 = vsub.f32 %v2984, %v2985
        %v2987 = vand.u32 %v2986, 4294901760
        %2988 = vmatpush.msra.mxu0 %v2987
        %v2989 = vand.u32 %v2709, 4294901760
        %v2990 = vsub.f32 %v2709, %v2989
        %v2991 = vand.u32 %v2990, 4294901760
        %v2992 = vsub.f32 %v2990, %v2991
        %v2993 = vand.u32 %v2992, 4294901760
        %2994 = vmatpush.msra.mxu0 %v2993
        %v2995 = vand.u32 %v2794, 4294901760
        %2996 = vmatmul.f32.gmra.mxu0 %v2995
        %v2997 = vpop.f32.mrf.mxu0
        %v2998 = vadd.f32 %v2841, %v2997
        %v2999 = vand.u32 %v2795, 4294901760
        %3000 = vmatmul.f32.gmra.mxu0 %v2999
        %v3001 = vpop.f32.mrf.mxu0
        %v3002 = vadd.f32 %v2849, %v3001
        %v3003 = vand.u32 %v2796, 4294901760
        %3004 = vmatmul.f32.gmra.mxu0 %v3003
        %v3005 = vpop.f32.mrf.mxu0
        %v3006 = vadd.f32 %v2857, %v3005
        %v3007 = vand.u32 %v2797, 4294901760
        %3008 = vmatmul.f32.gmra.mxu0 %v3007
        %v3009 = vpop.f32.mrf.mxu0
        %v3010 = vadd.f32 %v2865, %v3009
        %v3011 = vand.u32 %v2798, 4294901760
        %3012 = vmatmul.f32.gmra.mxu0 %v3011
        %v3013 = vpop.f32.mrf.mxu0
        %v3014 = vadd.f32 %v2873, %v3013
        %v3015 = vand.u32 %v2799, 4294901760
        %3016 = vmatmul.f32.gmra.mxu0 %v3015
        %v3017 = vpop.f32.mrf.mxu0
        %v3018 = vadd.f32 %v2881, %v3017
        %v3019 = vand.u32 %v2800, 4294901760
        %3020 = vmatmul.f32.gmra.mxu0 %v3019
        %v3021 = vpop.f32.mrf.mxu0
        %v3022 = vadd.f32 %v2889, %v3021
        %v3023 = vand.u32 %v2801, 4294901760
        %3024 = vmatmul.f32.gmra.mxu0 %v3023
        %v3025 = vpop.f32.mrf.mxu0
        %v3026 = vadd.f32 %v2897, %v3025
        %3027 = vdwg.mxu0
        %v3028 = vand.u32 %v2769, 4294901760
        %v3029 = vsub.f32 %v2769, %v3028
        %3030 = vmatpush.msra.mxu0 %v3029
        %v3031 = vand.u32 %v2765, 4294901760
        %v3032 = vsub.f32 %v2765, %v3031
        %3033 = vmatpush.msra.mxu0 %v3032
        %v3034 = vand.u32 %v2761, 4294901760
        %v3035 = vsub.f32 %v2761, %v3034
        %3036 = vmatpush.msra.mxu0 %v3035
        %v3037 = vand.u32 %v2757, 4294901760
        %v3038 = vsub.f32 %v2757, %v3037
        %3039 = vmatpush.msra.mxu0 %v3038
        %v3040 = vand.u32 %v2753, 4294901760
        %v3041 = vsub.f32 %v2753, %v3040
        %3042 = vmatpush.msra.mxu0 %v3041
        %v3043 = vand.u32 %v2749, 4294901760
        %v3044 = vsub.f32 %v2749, %v3043
        %3045 = vmatpush.msra.mxu0 %v3044
        %v3046 = vand.u32 %v2745, 4294901760
        %v3047 = vsub.f32 %v2745, %v3046
        %3048 = vmatpush.msra.mxu0 %v3047
        %v3049 = vand.u32 %v2741, 4294901760
        %v3050 = vsub.f32 %v2741, %v3049
        %3051 = vmatpush.msra.mxu0 %v3050
        %v3052 = vand.u32 %v2737, 4294901760
        %v3053 = vsub.f32 %v2737, %v3052
        %3054 = vmatpush.msra.mxu0 %v3053
        %v3055 = vand.u32 %v2733, 4294901760
        %v3056 = vsub.f32 %v2733, %v3055
        %3057 = vmatpush.msra.mxu0 %v3056
        %v3058 = vand.u32 %v2729, 4294901760
        %v3059 = vsub.f32 %v2729, %v3058
        %3060 = vmatpush.msra.mxu0 %v3059
        %v3061 = vand.u32 %v2725, 4294901760
        %v3062 = vsub.f32 %v2725, %v3061
        %3063 = vmatpush.msra.mxu0 %v3062
        %v3064 = vand.u32 %v2721, 4294901760
        %v3065 = vsub.f32 %v2721, %v3064
        %3066 = vmatpush.msra.mxu0 %v3065
        %v3067 = vand.u32 %v2717, 4294901760
        %v3068 = vsub.f32 %v2717, %v3067
        %3069 = vmatpush.msra.mxu0 %v3068
        %v3070 = vand.u32 %v2713, 4294901760
        %v3071 = vsub.f32 %v2713, %v3070
        %3072 = vmatpush.msra.mxu0 %v3071
        %v3073 = vand.u32 %v2709, 4294901760
        %v3074 = vsub.f32 %v2709, %v3073
        %3075 = vmatpush.msra.mxu0 %v3074
        %v3076 = vand.u32 %v2794, 4294901760
        %v3077 = vsub.f32 %v2794, %v3076
        %3078 = vmatmul.f32.gmra.mxu0 %v3077
        %v3079 = vpop.f32.mrf.mxu0
        %v3080 = vadd.f32 %v2998, %v3079
        %v3081 = vand.u32 %v2795, 4294901760
        %v3082 = vsub.f32 %v2795, %v3081
        %3083 = vmatmul.f32.gmra.mxu0 %v3082
        %v3084 = vpop.f32.mrf.mxu0
        %v3085 = vadd.f32 %v3002, %v3084
        %v3086 = vand.u32 %v2796, 4294901760
        %v3087 = vsub.f32 %v2796, %v3086
        %3088 = vmatmul.f32.gmra.mxu0 %v3087
        %v3089 = vpop.f32.mrf.mxu0
        %v3090 = vadd.f32 %v3006, %v3089
        %v3091 = vand.u32 %v2797, 4294901760
        %v3092 = vsub.f32 %v2797, %v3091
        %3093 = vmatmul.f32.gmra.mxu0 %v3092
        %v3094 = vpop.f32.mrf.mxu0
        %v3095 = vadd.f32 %v3010, %v3094
        %v3096 = vand.u32 %v2798, 4294901760
        %v3097 = vsub.f32 %v2798, %v3096
        %3098 = vmatmul.f32.gmra.mxu0 %v3097
        %v3099 = vpop.f32.mrf.mxu0
        %v3100 = vadd.f32 %v3014, %v3099
        %v3101 = vand.u32 %v2799, 4294901760
        %v3102 = vsub.f32 %v2799, %v3101
        %3103 = vmatmul.f32.gmra.mxu0 %v3102
        %v3104 = vpop.f32.mrf.mxu0
        %v3105 = vadd.f32 %v3018, %v3104
        %v3106 = vand.u32 %v2800, 4294901760
        %v3107 = vsub.f32 %v2800, %v3106
        %3108 = vmatmul.f32.gmra.mxu0 %v3107
        %v3109 = vpop.f32.mrf.mxu0
        %v3110 = vadd.f32 %v3022, %v3109
        %v3111 = vand.u32 %v2801, 4294901760
        %v3112 = vsub.f32 %v2801, %v3111
        %3113 = vmatmul.f32.gmra.mxu0 %v3112
        %v3114 = vpop.f32.mrf.mxu0
        %v3115 = vadd.f32 %v3026, %v3114
        %3116 = vdwg.mxu0
        %v3117 = vand.u32 %v2769, 4294901760
        %3118 = vmatpush.msra.mxu0 %v3117
        %v3119 = vand.u32 %v2765, 4294901760
        %3120 = vmatpush.msra.mxu0 %v3119
        %v3121 = vand.u32 %v2761, 4294901760
        %3122 = vmatpush.msra.mxu0 %v3121
        %v3123 = vand.u32 %v2757, 4294901760
        %3124 = vmatpush.msra.mxu0 %v3123
        %v3125 = vand.u32 %v2753, 4294901760
        %3126 = vmatpush.msra.mxu0 %v3125
        %v3127 = vand.u32 %v2749, 4294901760
        %3128 = vmatpush.msra.mxu0 %v3127
        %v3129 = vand.u32 %v2745, 4294901760
        %3130 = vmatpush.msra.mxu0 %v3129
        %v3131 = vand.u32 %v2741, 4294901760
        %3132 = vmatpush.msra.mxu0 %v3131
        %v3133 = vand.u32 %v2737, 4294901760
        %3134 = vmatpush.msra.mxu0 %v3133
        %v3135 = vand.u32 %v2733, 4294901760
        %3136 = vmatpush.msra.mxu0 %v3135
        %v3137 = vand.u32 %v2729, 4294901760
        %3138 = vmatpush.msra.mxu0 %v3137
        %v3139 = vand.u32 %v2725, 4294901760
        %3140 = vmatpush.msra.mxu0 %v3139
        %v3141 = vand.u32 %v2721, 4294901760
        %3142 = vmatpush.msra.mxu0 %v3141
        %v3143 = vand.u32 %v2717, 4294901760
        %3144 = vmatpush.msra.mxu0 %v3143
        %v3145 = vand.u32 %v2713, 4294901760
        %3146 = vmatpush.msra.mxu0 %v3145
        %v3147 = vand.u32 %v2709, 4294901760
        %3148 = vmatpush.msra.mxu0 %v3147
        %v3149 = vand.u32 %v2794, 4294901760
        %v3150 = vsub.f32 %v2794, %v3149
        %v3151 = vand.u32 %v3150, 4294901760
        %3152 = vmatmul.f32.gmra.mxu0 %v3151
        %v3153 = vpop.f32.mrf.mxu0
        %v3154 = vadd.f32 %v3080, %v3153
        %v3155 = vand.u32 %v2795, 4294901760
        %v3156 = vsub.f32 %v2795, %v3155
        %v3157 = vand.u32 %v3156, 4294901760
        %3158 = vmatmul.f32.gmra.mxu0 %v3157
        %v3159 = vpop.f32.mrf.mxu0
        %v3160 = vadd.f32 %v3085, %v3159
        %v3161 = vand.u32 %v2796, 4294901760
        %v3162 = vsub.f32 %v2796, %v3161
        %v3163 = vand.u32 %v3162, 4294901760
        %3164 = vmatmul.f32.gmra.mxu0 %v3163
        %v3165 = vpop.f32.mrf.mxu0
        %v3166 = vadd.f32 %v3090, %v3165
        %v3167 = vand.u32 %v2797, 4294901760
        %v3168 = vsub.f32 %v2797, %v3167
        %v3169 = vand.u32 %v3168, 4294901760
        %3170 = vmatmul.f32.gmra.mxu0 %v3169
        %v3171 = vpop.f32.mrf.mxu0
        %v3172 = vadd.f32 %v3095, %v3171
        %v3173 = vand.u32 %v2798, 4294901760
        %v3174 = vsub.f32 %v2798, %v3173
        %v3175 = vand.u32 %v3174, 4294901760
        %3176 = vmatmul.f32.gmra.mxu0 %v3175
        %v3177 = vpop.f32.mrf.mxu0
        %v3178 = vadd.f32 %v3100, %v3177
        %v3179 = vand.u32 %v2799, 4294901760
        %v3180 = vsub.f32 %v2799, %v3179
        %v3181 = vand.u32 %v3180, 4294901760
        %3182 = vmatmul.f32.gmra.mxu0 %v3181
        %v3183 = vpop.f32.mrf.mxu0
        %v3184 = vadd.f32 %v3105, %v3183
        %v3185 = vand.u32 %v2800, 4294901760
        %v3186 = vsub.f32 %v2800, %v3185
        %v3187 = vand.u32 %v3186, 4294901760
        %3188 = vmatmul.f32.gmra.mxu0 %v3187
        %v3189 = vpop.f32.mrf.mxu0
        %v3190 = vadd.f32 %v3110, %v3189
        %v3191 = vand.u32 %v2801, 4294901760
        %v3192 = vsub.f32 %v2801, %v3191
        %v3193 = vand.u32 %v3192, 4294901760
        %3194 = vmatmul.f32.gmra.mxu0 %v3193
        %v3195 = vpop.f32.mrf.mxu0
        %v3196 = vadd.f32 %v3115, %v3195
        %3197 = vdwg.mxu0
        %v3198 = vand.u32 %v2769, 4294901760
        %v3199 = vsub.f32 %v2769, %v3198
        %v3200 = vand.u32 %v3199, 4294901760
        %3201 = vmatpush.msra.mxu0 %v3200
        %v3202 = vand.u32 %v2765, 4294901760
        %v3203 = vsub.f32 %v2765, %v3202
        %v3204 = vand.u32 %v3203, 4294901760
        %3205 = vmatpush.msra.mxu0 %v3204
        %v3206 = vand.u32 %v2761, 4294901760
        %v3207 = vsub.f32 %v2761, %v3206
        %v3208 = vand.u32 %v3207, 4294901760
        %3209 = vmatpush.msra.mxu0 %v3208
        %v3210 = vand.u32 %v2757, 4294901760
        %v3211 = vsub.f32 %v2757, %v3210
        %v3212 = vand.u32 %v3211, 4294901760
        %3213 = vmatpush.msra.mxu0 %v3212
        %v3214 = vand.u32 %v2753, 4294901760
        %v3215 = vsub.f32 %v2753, %v3214
        %v3216 = vand.u32 %v3215, 4294901760
        %3217 = vmatpush.msra.mxu0 %v3216
        %v3218 = vand.u32 %v2749, 4294901760
        %v3219 = vsub.f32 %v2749, %v3218
        %v3220 = vand.u32 %v3219, 4294901760
        %3221 = vmatpush.msra.mxu0 %v3220
        %v3222 = vand.u32 %v2745, 4294901760
        %v3223 = vsub.f32 %v2745, %v3222
        %v3224 = vand.u32 %v3223, 4294901760
        %3225 = vmatpush.msra.mxu0 %v3224
        %v3226 = vand.u32 %v2741, 4294901760
        %v3227 = vsub.f32 %v2741, %v3226
        %v3228 = vand.u32 %v3227, 4294901760
        %3229 = vmatpush.msra.mxu0 %v3228
        %v3230 = vand.u32 %v2737, 4294901760
        %v3231 = vsub.f32 %v2737, %v3230
        %v3232 = vand.u32 %v3231, 4294901760
        %3233 = vmatpush.msra.mxu0 %v3232
        %v3234 = vand.u32 %v2733, 4294901760
        %v3235 = vsub.f32 %v2733, %v3234
        %v3236 = vand.u32 %v3235, 4294901760
        %3237 = vmatpush.msra.mxu0 %v3236
        %v3238 = vand.u32 %v2729, 4294901760
        %v3239 = vsub.f32 %v2729, %v3238
        %v3240 = vand.u32 %v3239, 4294901760
        %3241 = vmatpush.msra.mxu0 %v3240
        %v3242 = vand.u32 %v2725, 4294901760
        %v3243 = vsub.f32 %v2725, %v3242
        %v3244 = vand.u32 %v3243, 4294901760
        %3245 = vmatpush.msra.mxu0 %v3244
        %v3246 = vand.u32 %v2721, 4294901760
        %v3247 = vsub.f32 %v2721, %v3246
        %v3248 = vand.u32 %v3247, 4294901760
        %3249 = vmatpush.msra.mxu0 %v3248
        %v3250 = vand.u32 %v2717, 4294901760
        %v3251 = vsub.f32 %v2717, %v3250
        %v3252 = vand.u32 %v3251, 4294901760
        %3253 = vmatpush.msra.mxu0 %v3252
        %v3254 = vand.u32 %v2713, 4294901760
        %v3255 = vsub.f32 %v2713, %v3254
        %v3256 = vand.u32 %v3255, 4294901760
        %3257 = vmatpush.msra.mxu0 %v3256
        %v3258 = vand.u32 %v2709, 4294901760
        %v3259 = vsub.f32 %v2709, %v3258
        %v3260 = vand.u32 %v3259, 4294901760
        %3261 = vmatpush.msra.mxu0 %v3260
        %v3262 = vand.u32 %v2794, 4294901760
        %3263 = vmatmul.f32.gmra.mxu0 %v3262
        %v3264 = vpop.f32.mrf.mxu0
        %v3265 = vadd.f32 %v3154, %v3264
        %v3266 = vand.u32 %v2795, 4294901760
        %3267 = vmatmul.f32.gmra.mxu0 %v3266
        %v3268 = vpop.f32.mrf.mxu0
        %v3269 = vadd.f32 %v3160, %v3268
        %v3270 = vand.u32 %v2796, 4294901760
        %3271 = vmatmul.f32.gmra.mxu0 %v3270
        %v3272 = vpop.f32.mrf.mxu0
        %v3273 = vadd.f32 %v3166, %v3272
        %v3274 = vand.u32 %v2797, 4294901760
        %3275 = vmatmul.f32.gmra.mxu0 %v3274
        %v3276 = vpop.f32.mrf.mxu0
        %v3277 = vadd.f32 %v3172, %v3276
        %v3278 = vand.u32 %v2798, 4294901760
        %3279 = vmatmul.f32.gmra.mxu0 %v3278
        %v3280 = vpop.f32.mrf.mxu0
        %v3281 = vadd.f32 %v3178, %v3280
        %v3282 = vand.u32 %v2799, 4294901760
        %3283 = vmatmul.f32.gmra.mxu0 %v3282
        %v3284 = vpop.f32.mrf.mxu0
        %v3285 = vadd.f32 %v3184, %v3284
        %v3286 = vand.u32 %v2800, 4294901760
        %3287 = vmatmul.f32.gmra.mxu0 %v3286
        %v3288 = vpop.f32.mrf.mxu0
        %v3289 = vadd.f32 %v3190, %v3288
        %v3290 = vand.u32 %v2801, 4294901760
        %3291 = vmatmul.f32.gmra.mxu0 %v3290
        %v3292 = vpop.f32.mrf.mxu0
        %v3293 = vadd.f32 %v3196, %v3292
        %3294 = vdwg.mxu0
        %v3295 = vand.u32 %v2769, 4294901760
        %3296 = vmatpush.msra.mxu0 %v3295
        %v3297 = vand.u32 %v2765, 4294901760
        %3298 = vmatpush.msra.mxu0 %v3297
        %v3299 = vand.u32 %v2761, 4294901760
        %3300 = vmatpush.msra.mxu0 %v3299
        %v3301 = vand.u32 %v2757, 4294901760
        %3302 = vmatpush.msra.mxu0 %v3301
        %v3303 = vand.u32 %v2753, 4294901760
        %3304 = vmatpush.msra.mxu0 %v3303
        %v3305 = vand.u32 %v2749, 4294901760
        %3306 = vmatpush.msra.mxu0 %v3305
        %v3307 = vand.u32 %v2745, 4294901760
        %3308 = vmatpush.msra.mxu0 %v3307
        %v3309 = vand.u32 %v2741, 4294901760
        %3310 = vmatpush.msra.mxu0 %v3309
        %v3311 = vand.u32 %v2737, 4294901760
        %3312 = vmatpush.msra.mxu0 %v3311
        %v3313 = vand.u32 %v2733, 4294901760
        %3314 = vmatpush.msra.mxu0 %v3313
        %v3315 = vand.u32 %v2729, 4294901760
        %3316 = vmatpush.msra.mxu0 %v3315
        %v3317 = vand.u32 %v2725, 4294901760
        %3318 = vmatpush.msra.mxu0 %v3317
        %v3319 = vand.u32 %v2721, 4294901760
        %3320 = vmatpush.msra.mxu0 %v3319
        %v3321 = vand.u32 %v2717, 4294901760
        %3322 = vmatpush.msra.mxu0 %v3321
        %v3323 = vand.u32 %v2713, 4294901760
        %3324 = vmatpush.msra.mxu0 %v3323
        %v3325 = vand.u32 %v2709, 4294901760
        %3326 = vmatpush.msra.mxu0 %v3325
        %v3327 = vand.u32 %v2794, 4294901760
        %3328 = vmatmul.f32.gmra.mxu0 %v3327
        %v3329 = vpop.f32.mrf.mxu0
        %v3330 = vadd.f32 %v3265, %v3329
        %v3331 = vand.u32 %v2795, 4294901760
        %3332 = vmatmul.f32.gmra.mxu0 %v3331
        %v3333 = vpop.f32.mrf.mxu0
        %v3334 = vadd.f32 %v3269, %v3333
        %v3335 = vand.u32 %v2796, 4294901760
        %3336 = vmatmul.f32.gmra.mxu0 %v3335
        %v3337 = vpop.f32.mrf.mxu0
        %v3338 = vadd.f32 %v3273, %v3337
        %v3339 = vand.u32 %v2797, 4294901760
        %3340 = vmatmul.f32.gmra.mxu0 %v3339
        %v3341 = vpop.f32.mrf.mxu0
        %v3342 = vadd.f32 %v3277, %v3341
        %v3343 = vand.u32 %v2798, 4294901760
        %3344 = vmatmul.f32.gmra.mxu0 %v3343
        %v3345 = vpop.f32.mrf.mxu0
        %v3346 = vadd.f32 %v3281, %v3345
        %v3347 = vand.u32 %v2799, 4294901760
        %3348 = vmatmul.f32.gmra.mxu0 %v3347
        %v3349 = vpop.f32.mrf.mxu0
        %v3350 = vadd.f32 %v3285, %v3349
        %v3351 = vand.u32 %v2800, 4294901760
        %3352 = vmatmul.f32.gmra.mxu0 %v3351
        %v3353 = vpop.f32.mrf.mxu0
        %v3354 = vadd.f32 %v3289, %v3353
        %v3355 = vand.u32 %v2801, 4294901760
        %3356 = vmatmul.f32.gmra.mxu0 %v3355
        %v3357 = vpop.f32.mrf.mxu0
        %v3358 = vadd.f32 %v3293, %v3357
        %3359 = vdwg.mxu0
        %v3360 = vadd.f32 %v2785, %v3330
        %v3361 = vadd.f32 %v2786, %v3334
        %v3362 = vadd.f32 %v2787, %v3338
        %v3363 = vadd.f32 %v2788, %v3342
        %v3364 = vadd.f32 %v2789, %v3346
        %v3365 = vadd.f32 %v2790, %v3350
        %v3366 = vadd.f32 %v2791, %v3354
        %v3367 = vadd.f32 %v2792, %v3358
        %3368 = vst [vmem:[#allocation5] sm:$0xff] %v3360
        %3369 = vst [vmem:[#allocation5 + $0x8] sm:$0xff] %v3361
        %3370 = vst [vmem:[#allocation5 + $0x10] sm:$0xff] %v3362
        %3371 = vst [vmem:[#allocation5 + $0x18] sm:$0xff] %v3363
        %3372 = vst [vmem:[#allocation5 + $0x20] sm:$0xff] %v3364
        %3373 = vst [vmem:[#allocation5 + $0x28] sm:$0xff] %v3365
        %3374 = vst [vmem:[#allocation5 + $0x30] sm:$0xff] %v3366
        %3375 = vst [vmem:[#allocation5 + $0x38] sm:$0xff] %v3367
        %p3376 = scmp.eq.s32.totalorder %s21, 1
        // Predicated region
        $region53: #{tpu_custom_call.1} parent=39 // pred_check
          %p3377 = pneg %p3376
        $region54: #{tpu_custom_call.1} parent=39 // pred_check_branch
          %3379 = sbr.rel (%p3377) target = $region56
        $region55: #{tpu_custom_call.1} parent=39 // pred_region
          %v3380 = vld [vmem:[#allocation5] sm:$0xff]
          %v3381 = vld [vmem:[#allocation5 + $0x8] sm:$0xff]
          %v3382 = vld [vmem:[#allocation5 + $0x10] sm:$0xff]
          %v3383 = vld [vmem:[#allocation5 + $0x18] sm:$0xff]
          %v3384 = vld [vmem:[#allocation5 + $0x20] sm:$0xff]
          %v3385 = vld [vmem:[#allocation5 + $0x28] sm:$0xff]
          %v3386 = vld [vmem:[#allocation5 + $0x30] sm:$0xff]
          %v3387 = vld [vmem:[#allocation5 + $0x38] sm:$0xff]
          %v3388 = vld [vmem:[#allocation4] sm:$0x1]
          %v3389 = vrcp.pop %v3388
          %v3390 = vmul.f32 %v3388, %v3389
          %v3391 = vsub.f32 1.0, %v3390
          %v3392 = vmul.f32 %v3389, %v3391
          %v3393 = vadd.f32 %v3389, %v3392
          %vm3394 = vweird.f32 %v3388
          %vm3395 = vweird.f32 %v3389
          %vm3396 = vmor %vm3394, %vm3395
          %v3397 = vsel %vm3396, %v3389, %v3393
          %v3398 = vand.u32 2147483647, %v3388
          %vm3399 = vcmp.eq.f32.partialorder %v3398, 8.507059e+37
          %v3400 = vand.u32 %v3388, 2147483648
          %v3401 = vor.u32 1.1754944e-38, %v3400
          %v3402 = vsel %vm3399, %v3401, %v3397
          %v3404 = vperm.slane %v3402, 0
          %3405 = vset.pattern.permute.xlu0 0
          %3406 = vperm.xlu0 %3405, %v3404
          %v3407 = vpop.permute.xlu0 %3406
          %v3409 = vmul.f32 %v3380, %v3407
          %v3410 = vmul.f32 %v3381, %v3407
          %v3411 = vmul.f32 %v3382, %v3407
          %v3412 = vmul.f32 %v3383, %v3407
          %v3413 = vmul.f32 %v3384, %v3407
          %v3414 = vmul.f32 %v3385, %v3407
          %v3415 = vmul.f32 %v3386, %v3407
          %v3416 = vmul.f32 %v3387, %v3407
          %vm3417 = vcmp.gt.f32.partialorder %v3409, 0.0
          %vm3418 = vcmp.gt.f32.partialorder %v3410, 0.0
          %vm3419 = vcmp.gt.f32.partialorder %v3411, 0.0
          %vm3420 = vcmp.gt.f32.partialorder %v3412, 0.0
          %vm3421 = vcmp.gt.f32.partialorder %v3413, 0.0
          %vm3422 = vcmp.gt.f32.partialorder %v3414, 0.0
          %vm3423 = vcmp.gt.f32.partialorder %v3415, 0.0
          %vm3424 = vcmp.gt.f32.partialorder %v3416, 0.0
          %v3425 = vmin.f32 %v3409, 0.0
          %v3426 = vmin.f32 %v3410, 0.0
          %v3427 = vmin.f32 %v3411, 0.0
          %v3428 = vmin.f32 %v3412, 0.0
          %v3429 = vmin.f32 %v3413, 0.0
          %v3430 = vmin.f32 %v3414, 0.0
          %v3431 = vmin.f32 %v3415, 0.0
          %v3432 = vmin.f32 %v3416, 0.0
          %v3433 = vmul.f32 %v3425, 1.442695
          %v3434 = vpow.pop %v3433
          %v3435 = vmul.f32 %v3426, 1.442695
          %v3436 = vpow.pop %v3435
          %v3437 = vmul.f32 %v3427, 1.442695
          %v3438 = vpow.pop %v3437
          %v3439 = vmul.f32 %v3428, 1.442695
          %v3440 = vpow.pop %v3439
          %v3441 = vmul.f32 %v3429, 1.442695
          %v3442 = vpow.pop %v3441
          %v3443 = vmul.f32 %v3430, 1.442695
          %v3444 = vpow.pop %v3443
          %v3445 = vmul.f32 %v3431, 1.442695
          %v3446 = vpow.pop %v3445
          %v3447 = vmul.f32 %v3432, 1.442695
          %v3448 = vpow.pop %v3447
          %v3449 = vsub.f32 %v3434, 1.0
          %v3450 = vsub.f32 %v3436, 1.0
          %v3451 = vsub.f32 %v3438, 1.0
          %v3452 = vsub.f32 %v3440, 1.0
          %v3453 = vsub.f32 %v3442, 1.0
          %v3454 = vsub.f32 %v3444, 1.0
          %v3455 = vsub.f32 %v3446, 1.0
          %v3456 = vsub.f32 %v3448, 1.0
          %v3457 = vsel %vm3417, %v3409, %v3449
          %v3458 = vsel %vm3418, %v3410, %v3450
          %v3459 = vsel %vm3419, %v3411, %v3451
          %v3460 = vsel %vm3420, %v3412, %v3452
          %v3461 = vsel %vm3421, %v3413, %v3453
          %v3462 = vsel %vm3422, %v3414, %v3454
          %v3463 = vsel %vm3423, %v3415, %v3455
          %v3464 = vsel %vm3424, %v3416, %v3456
          %3465 = vst [vmem:[#allocation11] sm:$0xff] %v3457
          %3466 = vst [vmem:[#allocation11 + $0x8] sm:$0xff] %v3458
          %3467 = vst [vmem:[#allocation11 + $0x10] sm:$0xff] %v3459
          %3468 = vst [vmem:[#allocation11 + $0x18] sm:$0xff] %v3460
          %3469 = vst [vmem:[#allocation11 + $0x20] sm:$0xff] %v3461
          %3470 = vst [vmem:[#allocation11 + $0x28] sm:$0xff] %v3462
          %3471 = vst [vmem:[#allocation11 + $0x30] sm:$0xff] %v3463
          %3472 = vst [vmem:[#allocation11 + $0x38] sm:$0xff] %v3464
        $region56: #{tpu_custom_call.1} parent=39 // pred_fallthru
          _
        // Predicated region
        $region57: #{tpu_custom_call.1} parent=39 // pred_check
          %p3473 = pneg %p149
        $region58: #{tpu_custom_call.1} parent=39 // pred_check_branch
          %3475 = sbr.rel (%p3473) target = $region60
        $region59: #{tpu_custom_call.1} parent=39 // pred_region
          %3477 = vsyncadd [#allocation8], 0
          %s3478 = sshll.u32 [#allocation11], 4
          %s3479 = int_to_ptr.vmem [resolvable:$true] %s3478
          %s3480 = sshll.u32 %s5, 4
          %s3481 = int_to_ptr.hbm [resolvable:$true] %s3480
          %3486 = dma.vmem_to_hbm [thread:$0]  %s3479, 1024, %s3481, [#allocation8], 128, 128, 8
        $region60: #{tpu_custom_call.1} parent=39 // pred_fallthru
          _
        // Predicated region
        $region61: #{tpu_custom_call.1} parent=39 // pred_check
          %p3487 = pneg %p149
        $region62: #{tpu_custom_call.1} parent=39 // pred_check_branch
          %3489 = sbr.rel (%p3487) target = $region64
        $region63: #{tpu_custom_call.1} parent=39 // pred_region
          %3491 = dma.done [#allocation8], 1024
        $region64: #{tpu_custom_call.1} parent=39 // pred_fallthru
          _
      $region40: #{tpu_custom_call.1} parent=5 // pred_fallthru
        _
      %p3492 = scmp.le.s32.totalorder 2, %s16
      // Predicated region
      $region65: #{tpu_custom_call.1} parent=5 // pred_check
        %p3493 = pneg %p3492
      $region66: #{tpu_custom_call.1} parent=5 // pred_check_branch
        %3495 = sbr.rel (%p3493) target = $region68
      $region67: #{tpu_custom_call.1} parent=5 // pred_region
        %s3496 = ssub.s32 %s16, 2
      $region68: #{tpu_custom_call.1} parent=5 // pred_fallthru
        _
    $region6: #{tpu_custom_call.1} parent=1 // loop_footer
      %s20 = sadd.s32 1, %s16
    $region7: #{tpu_custom_call.1} parent=1 // loop_footer_branch
      %15 = sbr.rel target = $region3
    $region8: #{tpu_custom_call.1} parent=1 // loop_exit
      _
    %3497 = vsyncpa [#allocation7], 1
    %s3498 = scalar_lea.sflag [#allocation7], 1
    %3499 = vsyncpa %s3498, 1
    %3500 = vsyncpa [#allocation10], 1
    %3501 = vsyncpa [#allocation8], 1
    %s3502 = scalar_lea.sflag [#allocation8], 1
    %3503 = vsyncpa %s3502, 1

</llo_original>
